<compile_context>
chip_gen: v7x
topology: tpu7x:2x2x1
jax: 0.10.0
libtpu: 0.0.40
codegen_flags: <defaults>
</compile_context>

<pallas_src>
import functools

import jax
import jax.numpy as jnp
from jax.experimental import pallas as pl
from jax.experimental.pallas import tpu as pltpu


def _round_up(x, m):
    return (x + m - 1) // m * m


def _tiling(M, max_tile=256):
    """Pick a row tile (multiple of 8) and padded M.  Prefers few, large
    blocks; for M=512 this yields tile=256 / grid=2 (even grid -> both v7x
    TensorCores busy)."""
    tile = min(max_tile, _round_up(M, 8))
    Mp = _round_up(M, tile)
    return tile, Mp


# ----------------------------------------------------------------------------
# Pallas kernels
# ----------------------------------------------------------------------------
def _stack_kernel(x_ref, wbb_ref, bbb_ref, w1_ref, b1_ref, w2_ref, b2_ref,
                  feat_ref, heads_ref):
    """Fused per-stack pipeline: x -> 1x1 conv -> relu -> (3 heads fused).

    Weights arrive in bf16; accumulation / bias / relu in f32 (v5e-friendly).
    Outputs: relu(feat) [tile, feat_ch] and combined heads [tile, nc+4]
    laid out as [hm(nc) | wh(2) | offset(2)].
    """
    x = x_ref[...].astype(jnp.bfloat16)
    feat = jnp.dot(x, wbb_ref[...], preferred_element_type=jnp.float32)
    feat = feat + bbb_ref[...]
    relu_feat = jnp.maximum(feat, 0.0)
    feat_ref[...] = relu_feat                       # reused for roi_align
    h = jnp.dot(relu_feat.astype(jnp.bfloat16), w1_ref[...],
                preferred_element_type=jnp.float32) + b1_ref[...]
    h = jnp.maximum(h, 0.0)
    heads_ref[...] = jnp.dot(h.astype(jnp.bfloat16), w2_ref[...],
                             preferred_element_type=jnp.float32) + b2_ref[...]


def pallas_stack_forward(x_flat, p, max_tile=256):
    """Run one fused stack.  x_flat: [M, in_ch] f32.  Returns
    (relu_feat [M, feat_ch] f32, heads [M, nc+4] f32)."""
    M, Cin = x_flat.shape
    feat_ch = p["wbb"].shape[1]
    hid = p["w1"].shape[1]
    cout = p["w2"].shape[1]
    tile, Mp = _tiling(M, max_tile)
    xp = jnp.pad(x_flat, ((0, Mp - M), (0, 0))) if Mp != M else x_flat

    feat, heads = pl.pallas_call(
        _stack_kernel,
        out_shape=(jax.ShapeDtypeStruct((Mp, feat_ch), jnp.float32),
                   jax.ShapeDtypeStruct((Mp, cout), jnp.float32)),
        grid=(Mp // tile,),
        in_specs=[
            pl.BlockSpec((tile, Cin), lambda i: (i, 0)),
            pl.BlockSpec((Cin, feat_ch), lambda i: (0, 0)),
            pl.BlockSpec((1, feat_ch), lambda i: (0, 0)),
            pl.BlockSpec((feat_ch, hid), lambda i: (0, 0)),
            pl.BlockSpec((1, hid), lambda i: (0, 0)),
            pl.BlockSpec((hid, cout), lambda i: (0, 0)),
            pl.BlockSpec((1, cout), lambda i: (0, 0)),
        ],
        out_specs=(pl.BlockSpec((tile, feat_ch), lambda i: (i, 0)),
                   pl.BlockSpec((tile, cout), lambda i: (i, 0))),
        compiler_params=pltpu.CompilerParams(dimension_semantics=("parallel",)),
    )(xp, p["wbb"], p["bbb"].reshape(1, -1), p["w1"], p["b1"].reshape(1, -1),
      p["w2"], p["b2"].reshape(1, -1))
    return feat[:M], heads[:M]


def _mlp2_kernel(x_ref, w1_ref, b1_ref, w2_ref, b2_ref, o_ref):
    """Two-layer stage-2 head: x @ w1 + b1 -> relu -> @ w2 + b2.
    bf16 matmuls, f32 accumulate / bias / relu."""
    x = x_ref[...].astype(jnp.bfloat16)
    h = jnp.dot(x, w1_ref[...], preferred_element_type=jnp.float32) + b1_ref[...]
    h = jnp.maximum(h, 0.0)
    o_ref[...] = jnp.dot(h.astype(jnp.bfloat16), w2_ref[...],
                         preferred_element_type=jnp.float32) + b2_ref[...]


def pallas_mlp2(x, w1, b1, w2, b2, max_tile=256):
    M, Cin = x.shape
    Cmid = w1.shape[1]
    Cout = w2.shape[1]
    tile, Mp = _tiling(M, max_tile)
    xp = jnp.pad(x, ((0, Mp - M), (0, 0))) if Mp != M else x
    out = pl.pallas_call(
        _mlp2_kernel,
        out_shape=jax.ShapeDtypeStruct((Mp, Cout), jnp.float32),
        grid=(Mp // tile,),
        in_specs=[
            pl.BlockSpec((tile, Cin), lambda i: (i, 0)),
            pl.BlockSpec((Cin, Cmid), lambda i: (0, 0)),
            pl.BlockSpec((1, Cmid), lambda i: (0, 0)),
            pl.BlockSpec((Cmid, Cout), lambda i: (0, 0)),
            pl.BlockSpec((1, Cout), lambda i: (0, 0)),
        ],
        out_specs=pl.BlockSpec((tile, Cout), lambda i: (i, 0)),
        compiler_params=pltpu.CompilerParams(dimension_semantics=("parallel",)),
    )(xp, w1, b1.reshape(1, -1), w2, b2.reshape(1, -1))
    return out[:M]


# ----------------------------------------------------------------------------
# Plain-JAX glue (topk / gathers / roi_align / bbox math)
# ----------------------------------------------------------------------------
def _bilinear(fmap, y, x):
    H, W = fmap.shape[0], fmap.shape[1]
    valid = (y > -1.0) & (y < float(H)) & (x > -1.0) & (x < float(W))
    yc = jnp.clip(y, 0.0, H - 1.0)
    xc = jnp.clip(x, 0.0, W - 1.0)
    y0 = jnp.floor(yc).astype(jnp.int32)
    x0 = jnp.floor(xc).astype(jnp.int32)
    y1 = jnp.minimum(y0 + 1, H - 1)
    x1 = jnp.minimum(x0 + 1, W - 1)
    ly = yc - y0.astype(jnp.float32)
    lx = xc - x0.astype(jnp.float32)
    v = (fmap[y0, x0] * (1 - ly) * (1 - lx)
         + fmap[y0, x1] * (1 - ly) * lx
         + fmap[y1, x0] * ly * (1 - lx)
         + fmap[y1, x1] * ly * lx)
    return jnp.where(valid, v, 0.0)


def roi_align(feat_nhwc, boxes, out_size=3):
    # TODO(synk): torchvision roi_align uses an adaptive sampling_ratio; this
    # uses a single bilinear sample at each bin center (sampling_ratio=1).
    # TODO(synk): at larger k*B convert to a Pallas scalar-prefetch gather
    # kernel; at 64 rois the jnp version is fine.
    def one(box):
        b = box[0].astype(jnp.int32)
        fmap = feat_nhwc[b]
        x1, y1, x2, y2 = box[1], box[2], box[3], box[4]
        roi_w = jnp.maximum(x2 - x1, 1.0)
        roi_h = jnp.maximum(y2 - y1, 1.0)
        bw = roi_w / out_size
        bh = roi_h / out_size
        ys = y1 + (jnp.arange(out_size, dtype=jnp.float32) + 0.5) * bh
        xs = x1 + (jnp.arange(out_size, dtype=jnp.float32) + 0.5) * bw
        return jax.vmap(lambda yy: jax.vmap(lambda xx: _bilinear(fmap, yy, xx))(xs))(ys)

    return jax.vmap(one)(boxes)                 # [N, out, out, C]


# ----------------------------------------------------------------------------
# RRNet
# ----------------------------------------------------------------------------
class RRNetPallas:
    def __init__(self, num_stacks=2, num_classes=4, in_ch=4, feat_ch=32,
                 head_conv=32, hidden=64, key=None):
        self.num_stacks = num_stacks
        self.num_classes = num_classes
        self.feat_ch = feat_ch
        self.head_conv = head_conv
        key = jax.random.PRNGKey(0) if key is None else key
        ks = list(jax.random.split(key, 7 * num_stacks + 2))
        nk = iter(ks)

        def w(shape):
            return (0.05 * jax.random.normal(next(nk), shape)).astype(jnp.float32)

        bf16 = jnp.bfloat16
        nc = num_classes
        self.stacks = []
        for _ in range(num_stacks):
            wbb = w((in_ch, feat_ch))
            bbb = jnp.zeros((feat_ch,), jnp.float32)
            # hm / wh / offset heads: conv feat->head_conv, relu, conv ->planes
            w1_hm = w((feat_ch, head_conv)); b1_hm = jnp.zeros((head_conv,), jnp.float32)
            w2_hm = w((head_conv, nc));      b2_hm = jnp.full((nc,), -2.19, jnp.float32)
            w1_wh = w((feat_ch, head_conv)); b1_wh = jnp.zeros((head_conv,), jnp.float32)
            w2_wh = w((head_conv, 2));       b2_wh = jnp.zeros((2,), jnp.float32)
            w1_of = w((feat_ch, head_conv)); b1_of = jnp.zeros((head_conv,), jnp.float32)
            w2_of = w((head_conv, 2));       b2_of = jnp.zeros((2,), jnp.float32)

            # concat first layers -> one N=3*head_conv matmul
            w1_cat = jnp.concatenate([w1_hm, w1_wh, w1_of], axis=1)
            b1_cat = jnp.concatenate([b1_hm, b1_wh, b1_of], axis=0)
            # block-diagonal second layer -> one lane-combined [., nc+4] output
            w2_bd = jnp.zeros((3 * head_conv, nc + 4), jnp.float32)
            w2_bd = w2_bd.at[:head_conv, :nc].set(w2_hm)
            w2_bd = w2_bd.at[head_conv:2 * head_conv, nc:nc + 2].set(w2_wh)
            w2_bd = w2_bd.at[2 * head_conv:, nc + 2:nc + 4].set(w2_of)
            b2_cat = jnp.concatenate([b2_hm, b2_wh, b2_of], axis=0)

            self.stacks.append(dict(
                wbb=wbb.astype(bf16), bbb=bbb,
                w1=w1_cat.astype(bf16), b1=b1_cat,
                w2=w2_bd.astype(bf16), b2=b2_cat))

        # FasterRCNN-style stage-2 head on 3x3 roi features
        self.s2_w1 = w((feat_ch * 9, hidden)).astype(bf16)
        self.s2_b1 = jnp.zeros((hidden,), jnp.float32)
        self.s2_w2 = w((hidden, 4)).astype(bf16)
        self.s2_b2 = jnp.zeros((4,), jnp.float32)

    # ---------------- topk / bbox decode (plain jnp, fuses with gathers) ----
    @staticmethod
    def _topk_flat(hm_sig_flat, W, k):
        # hm_sig_flat: [B, H*W, C]
        B, HW, C = hm_sig_flat.shape
        scores_cf = jnp.transpose(hm_sig_flat, (0, 2, 1))       # [B, C, HW]
        topk_scores, topk_inds = jax.lax.top_k(scores_cf, k)    # [B, C, k]
        topk_inds = topk_inds % HW
        topk_ys = (topk_inds // W).astype(jnp.float32)
        topk_xs = (topk_inds % W).astype(jnp.float32)
        topk_score, topk_ind = jax.lax.top_k(topk_scores.reshape(B, C * k), k)
        topk_clses = (topk_ind // k).astype(jnp.int32)

        def g(a):
            return jnp.take_along_axis(a.reshape(B, C * k), topk_ind, axis=1)

        return topk_score, g(topk_inds), topk_clses, g(topk_ys), g(topk_xs)

    def transform_bbox_flat(self, hm_flat, wh_flat, off_flat, W, k):
        # hm_flat [B,HW,nc], wh_flat/off_flat [B,HW,2]  (channels-last, flat HW)
        hm_sig = jax.nn.sigmoid(hm_flat)
        scores, inds, clses, ys, xs = self._topk_flat(hm_sig, W, k)
        off_g = jnp.take_along_axis(off_flat, inds[:, :, None], axis=1)   # [B,k,2]
        wh_g = jnp.maximum(jnp.take_along_axis(wh_flat, inds[:, :, None], axis=1), 0.0)
        x = xs + off_g[..., 0]
        y = ys + off_g[..., 1]
        px = x - 0.5 * wh_g[..., 0]
        py = y - 0.5 * wh_g[..., 1]
        pred = jnp.stack(
            [px, py, px + wh_g[..., 0], py + wh_g[..., 1],
             scores, clses.astype(jnp.float32)], axis=2)                  # [B,k,6]
        return pred

    # ---------------- full forward ----------------
    def forward(self, x, k=32):
        B, Cin, H, W = x.shape
        nc = self.num_classes
        # single NCHW -> flat channels-last conversion at the entry
        x_flat = jnp.transpose(x, (0, 2, 3, 1)).reshape(B * H * W, Cin)

        hms, whs, offsets = [], [], []
        relu_feat_last = None
        hm_flat = wh_flat = off_flat = None
        for s in range(self.num_stacks):
            relu_feat, heads = pallas_stack_forward(x_flat, self.stacks[s])
            relu_feat_last = relu_feat
            hm_flat = heads[:, :nc].reshape(B, H * W, nc)
            wh_flat = heads[:, nc:nc + 2].reshape(B, H * W, 2)
            off_flat = heads[:, nc + 2:nc + 4].reshape(B, H * W, 2)
            # NCHW only at the API boundary (tiny tensors)
            hms.append(jnp.transpose(hm_flat.reshape(B, H, W, nc), (0, 3, 1, 2)))
            whs.append(jnp.transpose(wh_flat.reshape(B, H, W, 2), (0, 3, 1, 2)))
            offsets.append(jnp.transpose(off_flat.reshape(B, H, W, 2), (0, 3, 1, 2)))

        bboxs = self.transform_bbox_flat(hm_flat, wh_flat, off_flat, W, k)  # [B,k,6]

        # TODO(synk): torchvision.ops.nms / soft_nms produce data-dependent box
        # counts; static-shape JAX keeps all k candidates per image.
        batch_idx = jnp.broadcast_to(
            jnp.arange(B, dtype=jnp.float32)[:, None, None], (B, k, 1))
        bxyxys = jnp.concatenate([batch_idx, bboxs[..., :4]], axis=2).reshape(B * k, 5)
        scores = bboxs[..., 4].reshape(B * k)
        clses = bboxs[..., 5].reshape(B * k)

        # relu(pre_feat[-1]) already computed inside the fused stack kernel
        feat_nhwc = relu_feat_last.reshape(B, H, W, self.feat_ch)
        roi_feat = roi_align(feat_nhwc, bxyxys, 3)                         # [N,3,3,Cf]
        roi_flat = jnp.transpose(roi_feat, (0, 3, 1, 2)).reshape(roi_feat.shape[0], -1)
        stage2_reg = pallas_mlp2(roi_flat, self.s2_w1, self.s2_b1,
                                 self.s2_w2, self.s2_b2)
        return hms, whs, offsets, stage2_reg, bxyxys, scores, clses


if __name__ == "__main__":
    key = jax.random.PRNGKey(0)
    kx, kp = jax.random.split(key)
    x = jax.random.normal(kx, (2, 4, 16, 16), jnp.float32)   # NCHW, like PyTorch
    model = RRNetPallas(num_stacks=2, num_classes=4, in_ch=4, feat_ch=32,
                        head_conv=32, hidden=64, key=kp)
    fwd = jax.jit(functools.partial(model.forward, k=32))
    outs = fwd(x)
    jax.block_until_ready(outs)
    print("KERNEL_OK")
</pallas_src>

<mosaic_0001>
module attributes {stable_mosaic.version = 11 : i64} {
  func.func @_stack_kernel(%arg0: i32, %arg1: memref<256x4xf32, #tpu.memory_space<vmem>>, %arg2: memref<4x32xbf16, #tpu.memory_space<vmem>>, %arg3: memref<1x32xf32, #tpu.memory_space<vmem>>, %arg4: memref<32x96xbf16, #tpu.memory_space<vmem>>, %arg5: memref<1x96xf32, #tpu.memory_space<vmem>>, %arg6: memref<96x8xbf16, #tpu.memory_space<vmem>>, %arg7: memref<1x8xf32, #tpu.memory_space<vmem>>, %arg8: memref<256x32xf32, #tpu.memory_space<vmem>>, %arg9: memref<256x8xf32, #tpu.memory_space<vmem>>) attributes {dimension_semantics = [#tpu.dimension_semantics<parallel>], iteration_bounds = array<i64: 2>, scalar_prefetch = 0 : i64, scratch_operands = 0 : i64, tpu.core_type = #tpu.core_type<tc>, window_params = [{transform_indices = @transform_0, window_bounds = array<i64: 256, 4>}, {pipeline_mode = #tpu.pipeline_mode<synchronous>, transform_indices = @transform_1, window_bounds = array<i64: 4, 32>}, {pipeline_mode = #tpu.pipeline_mode<synchronous>, transform_indices = @transform_2, window_bounds = array<i64: 1, 32>}, {pipeline_mode = #tpu.pipeline_mode<synchronous>, transform_indices = @transform_3, window_bounds = array<i64: 32, 96>}, {pipeline_mode = #tpu.pipeline_mode<synchronous>, transform_indices = @transform_4, window_bounds = array<i64: 1, 96>}, {pipeline_mode = #tpu.pipeline_mode<synchronous>, transform_indices = @transform_5, window_bounds = array<i64: 96, 8>}, {pipeline_mode = #tpu.pipeline_mode<synchronous>, transform_indices = @transform_6, window_bounds = array<i64: 1, 8>}, {transform_indices = @transform_7, window_bounds = array<i64: 256, 32>}, {transform_indices = @transform_8, window_bounds = array<i64: 256, 8>}]} {
    %c0 = arith.constant 0 : index
    %c0_0 = arith.constant 0 : index
    %0 = vector.load %arg1[%c0, %c0_0] : memref<256x4xf32, #tpu.memory_space<vmem>>, vector<256x4xf32>
    %1 = arith.truncf %0 : vector<256x4xf32> to vector<256x4xbf16>
    %c0_1 = arith.constant 0 : index
    %c0_2 = arith.constant 0 : index
    %2 = vector.load %arg2[%c0_1, %c0_2] : memref<4x32xbf16, #tpu.memory_space<vmem>>, vector<4x32xbf16>
    %cst = arith.constant dense<0.000000e+00> : vector<256x32xf32>
    %3 = tpu.matmul %1, %2, %cst {dimension_numbers = #tpu.dot_dimension_numbers<[1], [0], [0], [1], [0, 0, 1, 1], [], []>} : vector<256x4xbf16>, vector<4x32xbf16>, vector<256x32xf32> -> vector<256x32xf32>
    %c0_3 = arith.constant 0 : index
    %c0_4 = arith.constant 0 : index
    %4 = vector.load %arg3[%c0_3, %c0_4] : memref<1x32xf32, #tpu.memory_space<vmem>>, vector<1x32xf32>
    %5 = vector.broadcast %4 : vector<1x32xf32> to vector<256x32xf32>
    %6 = arith.addf %3, %5 : vector<256x32xf32>
    %cst_5 = arith.constant 0.000000e+00 : f32
    %7 = vector.broadcast %cst_5 : f32 to vector<256x32xf32>
    %8 = arith.maximumf %6, %7 : vector<256x32xf32>
    %c0_6 = arith.constant 0 : index
    %c0_7 = arith.constant 0 : index
    %9 = vector.load %arg8[%c0_6, %c0_7] : memref<256x32xf32, #tpu.memory_space<vmem>>, vector<256x32xf32>
    tpu.vector_store %arg8[%c0_6, %c0_7], %8 {strides = array<i32>} : memref<256x32xf32, #tpu.memory_space<vmem>>, vector<256x32xf32>,
    %10 = arith.truncf %8 : vector<256x32xf32> to vector<256x32xbf16>
    %c0_8 = arith.constant 0 : index
    %c0_9 = arith.constant 0 : index
    %11 = vector.load %arg4[%c0_8, %c0_9] : memref<32x96xbf16, #tpu.memory_space<vmem>>, vector<32x96xbf16>
    %cst_10 = arith.constant dense<0.000000e+00> : vector<256x96xf32>
    %12 = tpu.matmul %10, %11, %cst_10 {dimension_numbers = #tpu.dot_dimension_numbers<[1], [0], [0], [1], [0, 0, 1, 1], [], []>} : vector<256x32xbf16>, vector<32x96xbf16>, vector<256x96xf32> -> vector<256x96xf32>
    %c0_11 = arith.constant 0 : index
    %c0_12 = arith.constant 0 : index
    %13 = vector.load %arg5[%c0_11, %c0_12] : memref<1x96xf32, #tpu.memory_space<vmem>>, vector<1x96xf32>
    %14 = vector.broadcast %13 : vector<1x96xf32> to vector<256x96xf32>
    %15 = arith.addf %12, %14 : vector<256x96xf32>
    %cst_13 = arith.constant 0.000000e+00 : f32
    %16 = vector.broadcast %cst_13 : f32 to vector<256x96xf32>
    %17 = arith.maximumf %15, %16 : vector<256x96xf32>
    %18 = arith.truncf %17 : vector<256x96xf32> to vector<256x96xbf16>
    %c0_14 = arith.constant 0 : index
    %c0_15 = arith.constant 0 : index
    %19 = vector.load %arg6[%c0_14, %c0_15] : memref<96x8xbf16, #tpu.memory_space<vmem>>, vector<96x8xbf16>
    %cst_16 = arith.constant dense<0.000000e+00> : vector<256x8xf32>
    %20 = tpu.matmul %18, %19, %cst_16 {dimension_numbers = #tpu.dot_dimension_numbers<[1], [0], [0], [1], [0, 0, 1, 1], [], []>} : vector<256x96xbf16>, vector<96x8xbf16>, vector<256x8xf32> -> vector<256x8xf32>
    %c0_17 = arith.constant 0 : index
    %c0_18 = arith.constant 0 : index
    %21 = vector.load %arg7[%c0_17, %c0_18] : memref<1x8xf32, #tpu.memory_space<vmem>>, vector<1x8xf32>
    %22 = vector.broadcast %21 : vector<1x8xf32> to vector<256x8xf32>
    %23 = arith.addf %20, %22 : vector<256x8xf32>
    %c0_19 = arith.constant 0 : index
    %c0_20 = arith.constant 0 : index
    %24 = vector.load %arg9[%c0_19, %c0_20] : memref<256x8xf32, #tpu.memory_space<vmem>>, vector<256x8xf32>
    tpu.vector_store %arg9[%c0_19, %c0_20], %23 {strides = array<i32>} : memref<256x8xf32, #tpu.memory_space<vmem>>, vector<256x8xf32>,
    return
  }
  func.func @transform_0(%arg0: i32) -> (i32, i32) {
    %c0_i32 = arith.constant 0 : i32
    %c0_i32_0 = arith.constant 0 : i32
    return %arg0, %c0_i32 : i32, i32
  }
  func.func @transform_1(%arg0: i32) -> (i32, i32) {
    %c0_i32 = arith.constant 0 : i32
    %c0_i32_0 = arith.constant 0 : i32
    %c0_i32_1 = arith.constant 0 : i32
    return %c0_i32, %c0_i32_0 : i32, i32
  }
  func.func @transform_2(%arg0: i32) -> (i32, i32) {
    %c0_i32 = arith.constant 0 : i32
    %c0_i32_0 = arith.constant 0 : i32
    %c0_i32_1 = arith.constant 0 : i32
    return %c0_i32, %c0_i32_0 : i32, i32
  }
  func.func @transform_3(%arg0: i32) -> (i32, i32) {
    %c0_i32 = arith.constant 0 : i32
    %c0_i32_0 = arith.constant 0 : i32
    %c0_i32_1 = arith.constant 0 : i32
    return %c0_i32, %c0_i32_0 : i32, i32
  }
  func.func @transform_4(%arg0: i32) -> (i32, i32) {
    %c0_i32 = arith.constant 0 : i32
    %c0_i32_0 = arith.constant 0 : i32
    %c0_i32_1 = arith.constant 0 : i32
    return %c0_i32, %c0_i32_0 : i32, i32
  }
  func.func @transform_5(%arg0: i32) -> (i32, i32) {
    %c0_i32 = arith.constant 0 : i32
    %c0_i32_0 = arith.constant 0 : i32
    %c0_i32_1 = arith.constant 0 : i32
    return %c0_i32, %c0_i32_0 : i32, i32
  }
  func.func @transform_6(%arg0: i32) -> (i32, i32) {
    %c0_i32 = arith.constant 0 : i32
    %c0_i32_0 = arith.constant 0 : i32
    %c0_i32_1 = arith.constant 0 : i32
    return %c0_i32, %c0_i32_0 : i32, i32
  }
  func.func @transform_7(%arg0: i32) -> (i32, i32) {
    %c0_i32 = arith.constant 0 : i32
    %c0_i32_0 = arith.constant 0 : i32
    return %arg0, %c0_i32 : i32, i32
  }
  func.func @transform_8(%arg0: i32) -> (i32, i32) {
    %c0_i32 = arith.constant 0 : i32
    %c0_i32_0 = arith.constant 0 : i32
    return %arg0, %c0_i32 : i32, i32
  }
}

module attributes {stable_mosaic.version = 11 : i64} {
  func.func @_stack_kernel(%arg0: i32, %arg1: memref<256x4xf32, #tpu.memory_space<vmem>>, %arg2: memref<4x32xbf16, #tpu.memory_space<vmem>>, %arg3: memref<1x32xf32, #tpu.memory_space<vmem>>, %arg4: memref<32x96xbf16, #tpu.memory_space<vmem>>, %arg5: memref<1x96xf32, #tpu.memory_space<vmem>>, %arg6: memref<96x8xbf16, #tpu.memory_space<vmem>>, %arg7: memref<1x8xf32, #tpu.memory_space<vmem>>, %arg8: memref<256x32xf32, #tpu.memory_space<vmem>>, %arg9: memref<256x8xf32, #tpu.memory_space<vmem>>) attributes {dimension_semantics = [#tpu.dimension_semantics<parallel>], iteration_bounds = array<i64: 2>, scalar_prefetch = 0 : i64, scratch_operands = 0 : i64, tpu.core_type = #tpu.core_type<tc>, window_params = [{transform_indices = @transform_0, window_bounds = array<i64: 256, 4>}, {pipeline_mode = #tpu.pipeline_mode<synchronous>, transform_indices = @transform_1, window_bounds = array<i64: 4, 32>}, {pipeline_mode = #tpu.pipeline_mode<synchronous>, transform_indices = @transform_2, window_bounds = array<i64: 1, 32>}, {pipeline_mode = #tpu.pipeline_mode<synchronous>, transform_indices = @transform_3, window_bounds = array<i64: 32, 96>}, {pipeline_mode = #tpu.pipeline_mode<synchronous>, transform_indices = @transform_4, window_bounds = array<i64: 1, 96>}, {pipeline_mode = #tpu.pipeline_mode<synchronous>, transform_indices = @transform_5, window_bounds = array<i64: 96, 8>}, {pipeline_mode = #tpu.pipeline_mode<synchronous>, transform_indices = @transform_6, window_bounds = array<i64: 1, 8>}, {transform_indices = @transform_7, window_bounds = array<i64: 256, 32>}, {transform_indices = @transform_8, window_bounds = array<i64: 256, 8>}]} {
    %c0 = arith.constant 0 : index
    %c0_0 = arith.constant 0 : index
    %0 = vector.load %arg1[%c0, %c0_0] : memref<256x4xf32, #tpu.memory_space<vmem>>, vector<256x4xf32>
    %1 = arith.truncf %0 : vector<256x4xf32> to vector<256x4xbf16>
    %c0_1 = arith.constant 0 : index
    %c0_2 = arith.constant 0 : index
    %2 = vector.load %arg2[%c0_1, %c0_2] : memref<4x32xbf16, #tpu.memory_space<vmem>>, vector<4x32xbf16>
    %cst = arith.constant dense<0.000000e+00> : vector<256x32xf32>
    %3 = tpu.matmul %1, %2, %cst {dimension_numbers = #tpu.dot_dimension_numbers<[1], [0], [0], [1], [0, 0, 1, 1], [], []>} : vector<256x4xbf16>, vector<4x32xbf16>, vector<256x32xf32> -> vector<256x32xf32>
    %c0_3 = arith.constant 0 : index
    %c0_4 = arith.constant 0 : index
    %4 = vector.load %arg3[%c0_3, %c0_4] : memref<1x32xf32, #tpu.memory_space<vmem>>, vector<1x32xf32>
    %5 = vector.broadcast %4 : vector<1x32xf32> to vector<256x32xf32>
    %6 = arith.addf %3, %5 : vector<256x32xf32>
    %cst_5 = arith.constant 0.000000e+00 : f32
    %7 = vector.broadcast %cst_5 : f32 to vector<256x32xf32>
    %8 = arith.maximumf %6, %7 : vector<256x32xf32>
    %c0_6 = arith.constant 0 : index
    %c0_7 = arith.constant 0 : index
    %9 = vector.load %arg8[%c0_6, %c0_7] : memref<256x32xf32, #tpu.memory_space<vmem>>, vector<256x32xf32>
    tpu.vector_store %arg8[%c0_6, %c0_7], %8 {strides = array<i32>} : memref<256x32xf32, #tpu.memory_space<vmem>>, vector<256x32xf32>,
    %10 = arith.truncf %8 : vector<256x32xf32> to vector<256x32xbf16>
    %c0_8 = arith.constant 0 : index
    %c0_9 = arith.constant 0 : index
    %11 = vector.load %arg4[%c0_8, %c0_9] : memref<32x96xbf16, #tpu.memory_space<vmem>>, vector<32x96xbf16>
    %cst_10 = arith.constant dense<0.000000e+00> : vector<256x96xf32>
    %12 = tpu.matmul %10, %11, %cst_10 {dimension_numbers = #tpu.dot_dimension_numbers<[1], [0], [0], [1], [0, 0, 1, 1], [], []>} : vector<256x32xbf16>, vector<32x96xbf16>, vector<256x96xf32> -> vector<256x96xf32>
    %c0_11 = arith.constant 0 : index
    %c0_12 = arith.constant 0 : index
    %13 = vector.load %arg5[%c0_11, %c0_12] : memref<1x96xf32, #tpu.memory_space<vmem>>, vector<1x96xf32>
    %14 = vector.broadcast %13 : vector<1x96xf32> to vector<256x96xf32>
    %15 = arith.addf %12, %14 : vector<256x96xf32>
    %cst_13 = arith.constant 0.000000e+00 : f32
    %16 = vector.broadcast %cst_13 : f32 to vector<256x96xf32>
    %17 = arith.maximumf %15, %16 : vector<256x96xf32>
    %18 = arith.truncf %17 : vector<256x96xf32> to vector<256x96xbf16>
    %c0_14 = arith.constant 0 : index
    %c0_15 = arith.constant 0 : index
    %19 = vector.load %arg6[%c0_14, %c0_15] : memref<96x8xbf16, #tpu.memory_space<vmem>>, vector<96x8xbf16>
    %cst_16 = arith.constant dense<0.000000e+00> : vector<256x8xf32>
    %20 = tpu.matmul %18, %19, %cst_16 {dimension_numbers = #tpu.dot_dimension_numbers<[1], [0], [0], [1], [0, 0, 1, 1], [], []>} : vector<256x96xbf16>, vector<96x8xbf16>, vector<256x8xf32> -> vector<256x8xf32>
    %c0_17 = arith.constant 0 : index
    %c0_18 = arith.constant 0 : index
    %21 = vector.load %arg7[%c0_17, %c0_18] : memref<1x8xf32, #tpu.memory_space<vmem>>, vector<1x8xf32>
    %22 = vector.broadcast %21 : vector<1x8xf32> to vector<256x8xf32>
    %23 = arith.addf %20, %22 : vector<256x8xf32>
    %c0_19 = arith.constant 0 : index
    %c0_20 = arith.constant 0 : index
    %24 = vector.load %arg9[%c0_19, %c0_20] : memref<256x8xf32, #tpu.memory_space<vmem>>, vector<256x8xf32>
    tpu.vector_store %arg9[%c0_19, %c0_20], %23 {strides = array<i32>} : memref<256x8xf32, #tpu.memory_space<vmem>>, vector<256x8xf32>,
    return
  }
  func.func @transform_0(%arg0: i32) -> (i32, i32) {
    %c0_i32 = arith.constant 0 : i32
    %c0_i32_0 = arith.constant 0 : i32
    return %arg0, %c0_i32 : i32, i32
  }
  func.func @transform_1(%arg0: i32) -> (i32, i32) {
    %c0_i32 = arith.constant 0 : i32
    %c0_i32_0 = arith.constant 0 : i32
    %c0_i32_1 = arith.constant 0 : i32
    return %c0_i32, %c0_i32_0 : i32, i32
  }
  func.func @transform_2(%arg0: i32) -> (i32, i32) {
    %c0_i32 = arith.constant 0 : i32
    %c0_i32_0 = arith.constant 0 : i32
    %c0_i32_1 = arith.constant 0 : i32
    return %c0_i32, %c0_i32_0 : i32, i32
  }
  func.func @transform_3(%arg0: i32) -> (i32, i32) {
    %c0_i32 = arith.constant 0 : i32
    %c0_i32_0 = arith.constant 0 : i32
    %c0_i32_1 = arith.constant 0 : i32
    return %c0_i32, %c0_i32_0 : i32, i32
  }
  func.func @transform_4(%arg0: i32) -> (i32, i32) {
    %c0_i32 = arith.constant 0 : i32
    %c0_i32_0 = arith.constant 0 : i32
    %c0_i32_1 = arith.constant 0 : i32
    return %c0_i32, %c0_i32_0 : i32, i32
  }
  func.func @transform_5(%arg0: i32) -> (i32, i32) {
    %c0_i32 = arith.constant 0 : i32
    %c0_i32_0 = arith.constant 0 : i32
    %c0_i32_1 = arith.constant 0 : i32
    return %c0_i32, %c0_i32_0 : i32, i32
  }
  func.func @transform_6(%arg0: i32) -> (i32, i32) {
    %c0_i32 = arith.constant 0 : i32
    %c0_i32_0 = arith.constant 0 : i32
    %c0_i32_1 = arith.constant 0 : i32
    return %c0_i32, %c0_i32_0 : i32, i32
  }
  func.func @transform_7(%arg0: i32) -> (i32, i32) {
    %c0_i32 = arith.constant 0 : i32
    %c0_i32_0 = arith.constant 0 : i32
    return %arg0, %c0_i32 : i32, i32
  }
  func.func @transform_8(%arg0: i32) -> (i32, i32) {
    %c0_i32 = arith.constant 0 : i32
    %c0_i32_0 = arith.constant 0 : i32
    return %arg0, %c0_i32 : i32, i32
  }
}

module attributes {stable_mosaic.version = 11 : i64} {
  func.func @_mlp2_kernel(%arg0: i32, %arg1: memref<64x288xf32, #tpu.memory_space<vmem>>, %arg2: memref<288x64xbf16, #tpu.memory_space<vmem>>, %arg3: memref<1x64xf32, #tpu.memory_space<vmem>>, %arg4: memref<64x4xbf16, #tpu.memory_space<vmem>>, %arg5: memref<1x4xf32, #tpu.memory_space<vmem>>, %arg6: memref<64x4xf32, #tpu.memory_space<vmem>>) attributes {dimension_semantics = [#tpu.dimension_semantics<parallel>], iteration_bounds = array<i64: 1>, scalar_prefetch = 0 : i64, scratch_operands = 0 : i64, tpu.core_type = #tpu.core_type<tc>, window_params = [{transform_indices = @transform_0, window_bounds = array<i64: 64, 288>}, {pipeline_mode = #tpu.pipeline_mode<synchronous>, transform_indices = @transform_1, window_bounds = array<i64: 288, 64>}, {pipeline_mode = #tpu.pipeline_mode<synchronous>, transform_indices = @transform_2, window_bounds = array<i64: 1, 64>}, {pipeline_mode = #tpu.pipeline_mode<synchronous>, transform_indices = @transform_3, window_bounds = array<i64: 64, 4>}, {pipeline_mode = #tpu.pipeline_mode<synchronous>, transform_indices = @transform_4, window_bounds = array<i64: 1, 4>}, {transform_indices = @transform_5, window_bounds = array<i64: 64, 4>}]} {
    %c0 = arith.constant 0 : index
    %c0_0 = arith.constant 0 : index
    %0 = vector.load %arg1[%c0, %c0_0] : memref<64x288xf32, #tpu.memory_space<vmem>>, vector<64x288xf32>
    %1 = arith.truncf %0 : vector<64x288xf32> to vector<64x288xbf16>
    %c0_1 = arith.constant 0 : index
    %c0_2 = arith.constant 0 : index
    %2 = vector.load %arg2[%c0_1, %c0_2] : memref<288x64xbf16, #tpu.memory_space<vmem>>, vector<288x64xbf16>
    %cst = arith.constant dense<0.000000e+00> : vector<64x64xf32>
    %3 = tpu.matmul %1, %2, %cst {dimension_numbers = #tpu.dot_dimension_numbers<[1], [0], [0], [1], [0, 0, 1, 1], [], []>} : vector<64x288xbf16>, vector<288x64xbf16>, vector<64x64xf32> -> vector<64x64xf32>
    %c0_3 = arith.constant 0 : index
    %c0_4 = arith.constant 0 : index
    %4 = vector.load %arg3[%c0_3, %c0_4] : memref<1x64xf32, #tpu.memory_space<vmem>>, vector<1x64xf32>
    %5 = vector.broadcast %4 : vector<1x64xf32> to vector<64x64xf32>
    %6 = arith.addf %3, %5 : vector<64x64xf32>
    %cst_5 = arith.constant 0.000000e+00 : f32
    %7 = vector.broadcast %cst_5 : f32 to vector<64x64xf32>
    %8 = arith.maximumf %6, %7 : vector<64x64xf32>
    %9 = arith.truncf %8 : vector<64x64xf32> to vector<64x64xbf16>
    %c0_6 = arith.constant 0 : index
    %c0_7 = arith.constant 0 : index
    %10 = vector.load %arg4[%c0_6, %c0_7] : memref<64x4xbf16, #tpu.memory_space<vmem>>, vector<64x4xbf16>
    %cst_8 = arith.constant dense<0.000000e+00> : vector<64x4xf32>
    %11 = tpu.matmul %9, %10, %cst_8 {dimension_numbers = #tpu.dot_dimension_numbers<[1], [0], [0], [1], [0, 0, 1, 1], [], []>} : vector<64x64xbf16>, vector<64x4xbf16>, vector<64x4xf32> -> vector<64x4xf32>
    %c0_9 = arith.constant 0 : index
    %c0_10 = arith.constant 0 : index
    %12 = vector.load %arg5[%c0_9, %c0_10] : memref<1x4xf32, #tpu.memory_space<vmem>>, vector<1x4xf32>
    %13 = vector.broadcast %12 : vector<1x4xf32> to vector<64x4xf32>
    %14 = arith.addf %11, %13 : vector<64x4xf32>
    %c0_11 = arith.constant 0 : index
    %c0_12 = arith.constant 0 : index
    %15 = vector.load %arg6[%c0_11, %c0_12] : memref<64x4xf32, #tpu.memory_space<vmem>>, vector<64x4xf32>
    tpu.vector_store %arg6[%c0_11, %c0_12], %14 {strides = array<i32>} : memref<64x4xf32, #tpu.memory_space<vmem>>, vector<64x4xf32>,
    return
  }
  func.func @transform_0(%arg0: i32) -> (i32, i32) {
    %c0_i32 = arith.constant 0 : i32
    %c0_i32_0 = arith.constant 0 : i32
    return %arg0, %c0_i32 : i32, i32
  }
  func.func @transform_1(%arg0: i32) -> (i32, i32) {
    %c0_i32 = arith.constant 0 : i32
    %c0_i32_0 = arith.constant 0 : i32
    %c0_i32_1 = arith.constant 0 : i32
    return %c0_i32, %c0_i32_0 : i32, i32
  }
  func.func @transform_2(%arg0: i32) -> (i32, i32) {
    %c0_i32 = arith.constant 0 : i32
    %c0_i32_0 = arith.constant 0 : i32
    %c0_i32_1 = arith.constant 0 : i32
    return %c0_i32, %c0_i32_0 : i32, i32
  }
  func.func @transform_3(%arg0: i32) -> (i32, i32) {
    %c0_i32 = arith.constant 0 : i32
    %c0_i32_0 = arith.constant 0 : i32
    %c0_i32_1 = arith.constant 0 : i32
    return %c0_i32, %c0_i32_0 : i32, i32
  }
  func.func @transform_4(%arg0: i32) -> (i32, i32) {
    %c0_i32 = arith.constant 0 : i32
    %c0_i32_0 = arith.constant 0 : i32
    %c0_i32_1 = arith.constant 0 : i32
    return %c0_i32, %c0_i32_0 : i32, i32
  }
  func.func @transform_5(%arg0: i32) -> (i32, i32) {
    %c0_i32 = arith.constant 0 : i32
    %c0_i32_0 = arith.constant 0 : i32
    return %arg0, %c0_i32 : i32, i32
  }
}

</mosaic_0001>

<llo_original>
// kernel: forward.3
$region0: #{forward.3}
  #allocation0 [shape = 'u32[]', space=smem, size = 0x4, offset = 0x4, fixed_abs, tag = 'smem constant byte address 0x4 - core index']
  #allocation1 [shape = 'u32[144,128]{1,0:T(1,128)}', space=vmem, size = 0x12000, scoped, tag = 'internal scratch']
  %s0 = inlined_call_operand.vmem [shape: f32[512,4], index: 0, kind: input, shape index: {}]
  %s1 = inlined_call_operand.hbm [shape: bf16[4,32], index: 1, kind: input, shape index: {}]
  %s2 = inlined_call_operand.vmem [shape: f32[1,32], index: 2, kind: input, shape index: {}]
  %s3 = inlined_call_operand.hbm [shape: bf16[32,96], index: 3, kind: input, shape index: {}]
  %s4 = inlined_call_operand.vmem [shape: f32[1,96], index: 4, kind: input, shape index: {}]
  %s5 = inlined_call_operand.hbm [shape: bf16[96,8], index: 5, kind: input, shape index: {}]
  %s6 = inlined_call_operand.hbm [shape: f32[1,8], index: 6, kind: input, shape index: {}]
  %s7 = inlined_call_operand.hbm [shape: f32[512,32], index: 7, kind: output, shape index: {0}]
  %s8 = inlined_call_operand.vmem [shape: f32[512,8], index: 8, kind: output, shape index: {1}]
  %9 = xla_tuple %s7, %s8
  %s10 = sld [smem:[#allocation0]]
  $region85: #{forward.3} parent=0
    _
  %s12 = ssub.s32 1, %s10
  %s13 = scalar_select 0, %s12, %s10
  $region1: #{forward.3} parent=0
    #allocation2 [shape = 'u8[1024]{0}', space=vmem, size = 0x400, scoped, tag = 'input window, operand 1, single buffered']
    #allocation3 [shape = 's32[2]{0}', space=sflag, size = 0x8, scoped, tag = 'scoped memory for forward.3']
    #allocation4 [shape = 's32[2]{0}', space=sflag, size = 0x8, scoped, tag = 'scoped memory for forward.3']
    #allocation5 [shape = 'u8[8192]{0}', space=vmem, size = 0x2000, scoped, tag = 'input window, operand 3, single buffered']
    #allocation6 [shape = 's32[1]{0}', space=sflag, size = 0x4, scoped, tag = 'scoped memory for forward.3']
    #allocation7 [shape = 'u8[24576]{0}', space=vmem, size = 0x6000, scoped, tag = 'input window, operand 5, single buffered']
    #allocation8 [shape = 'u8[512]{0}', space=vmem, size = 0x400, scoped, tag = 'input window, operand 6, single buffered']
    #allocation9 [shape = 's32[1]{0}', space=sflag, size = 0x4, scoped, tag = 'scoped memory for forward.3']
    #allocation10 [shape = 'u8[262144]{0}', space=vmem, size = 0x40000, scoped, tag = 'output window, operand 0']
    %14 = vsyncpa [#allocation3], 0
    %15 = vsyncpa [#allocation6], 0
    %16 = vsyncpa [#allocation9], 0
    %17 = vsyncpa [#allocation4], 0
    %s18 = scalar_lea.sflag [#allocation4], 1
    %19 = vsyncpa %s18, 0
    loop: start=0, step=1, limit=4
    $region2: #{forward.3} parent=1 // loop_pre_header
      _
    $region3: #{forward.3} parent=1 // loop_header
      %s21 = sphi 0, %s25
      %p22 = scmp.ge.s32.totalorder %s21, 4
      %s31 = sphi 0, %s33
      %s34 = sphi 0, %s31
      %s35 = sphi 0, %s34
      %s51 = sphi 0, %s35
      %s55 = sphi 0, %s55
      %s57 = sphi 0, %s55
      %s58 = sphi 0, %s57
      %s72 = sphi 0, %s58
      %s76 = sphi 0, %s76
      %s78 = sphi 0, %s76
      %s79 = sphi 0, %s78
      %s93 = sphi 0, %s79
      %s97 = sphi 0, %s97
      %s99 = sphi 0, %s97
      %s100 = sphi 0, %s99
      %s114 = sphi 0, %s100
      %s118 = sphi 0, %s118
      %s120 = sphi 0, %s118
      %s121 = sphi 0, %s120
      %s135 = sphi 0, %s121
      %s139 = sphi 0, %s139
      %s141 = sphi 0, %s139
      %s142 = sphi 0, %s141
      %s156 = sphi 0, %s142
      %s160 = sphi 0, %s160
      %s162 = sphi 0, %s160
      %s163 = sphi 0, %s162
      %s177 = sphi 0, %s163
      %s183 = sphi 0, %s185
      %s186 = sphi 0, %s183
      %s187 = sphi 0, %s186
      %s203 = sphi 0, %s187
      %s209 = sphi 0, %s211
      %s212 = sphi 0, %s209
      %s213 = sphi 0, %s212
      %s229 = sphi 0, %s213
    $region4: #{forward.3} parent=1 // loop_header_branch
      %24 = sbr.rel (%p22) target = $region8
    $region5: #{forward.3} parent=1 // loop_body
      %s26 = ssub.s32 %s21, 1
      %s27 = ssub.s32 %s21, 2
      %s28 = sadd.s32 %s21, 1
      %s29 = ssub.s32 %s21, %s28
      %p30 = scmp.eq.s32.totalorder %s29, 0
      %s32 = sadd.s32 %s31, 1
      %s33 = scalar_select %p30, %s31, %s32
      %p36 = pneg %p30
      %p37 = scmp.eq.s32.totalorder %s21, 1
      %p38 = por %p36, %p37
      %p39 = scmp.ne.s32.totalorder %s31, %s34
      %p40 = scmp.eq.s32.totalorder %s21, 0
      %p41 = por %p39, %p40
      %p42 = scmp.ne.s32.totalorder %s31, %s34
      %p43 = scmp.eq.s32.totalorder %s26, 1
      %p44 = por %p42, %p43
      %p45 = scmp.ne.s32.totalorder %s34, %s35
      %p46 = scmp.eq.s32.totalorder %s26, 0
      %p47 = por %p45, %p46
      %p48 = scmp.ne.s32.totalorder %s34, %s35
      %p49 = scmp.eq.s32.totalorder %s27, 1
      %p50 = por %p48, %p49
      %p52 = scmp.ne.s32.totalorder %s35, %s51
      %p53 = scmp.eq.s32.totalorder %s27, 0
      %p54 = por %p52, %p53
      %s56 = sadd.s32 %s55, 1
      %p59 = scmp.eq.s32.totalorder %s21, 1
      %p60 = scmp.ne.s32.totalorder %s55, %s57
      %p61 = scmp.eq.s32.totalorder %s21, 0
      %p62 = por %p60, %p61
      %p63 = scmp.ne.s32.totalorder %s55, %s57
      %p64 = scmp.eq.s32.totalorder %s26, 1
      %p65 = por %p63, %p64
      %p66 = scmp.ne.s32.totalorder %s57, %s58
      %p67 = scmp.eq.s32.totalorder %s26, 0
      %p68 = por %p66, %p67
      %p69 = scmp.ne.s32.totalorder %s57, %s58
      %p70 = scmp.eq.s32.totalorder %s27, 1
      %p71 = por %p69, %p70
      %p73 = scmp.ne.s32.totalorder %s58, %s72
      %p74 = scmp.eq.s32.totalorder %s27, 0
      %p75 = por %p73, %p74
      %s77 = sadd.s32 %s76, 1
      %p80 = scmp.eq.s32.totalorder %s21, 1
      %p81 = scmp.ne.s32.totalorder %s76, %s78
      %p82 = scmp.eq.s32.totalorder %s21, 0
      %p83 = por %p81, %p82
      %p84 = scmp.ne.s32.totalorder %s76, %s78
      %p85 = scmp.eq.s32.totalorder %s26, 1
      %p86 = por %p84, %p85
      %p87 = scmp.ne.s32.totalorder %s78, %s79
      %p88 = scmp.eq.s32.totalorder %s26, 0
      %p89 = por %p87, %p88
      %p90 = scmp.ne.s32.totalorder %s78, %s79
      %p91 = scmp.eq.s32.totalorder %s27, 1
      %p92 = por %p90, %p91
      %p94 = scmp.ne.s32.totalorder %s79, %s93
      %p95 = scmp.eq.s32.totalorder %s27, 0
      %p96 = por %p94, %p95
      %s98 = sadd.s32 %s97, 1
      %p101 = scmp.eq.s32.totalorder %s21, 1
      %p102 = scmp.ne.s32.totalorder %s97, %s99
      %p103 = scmp.eq.s32.totalorder %s21, 0
      %p104 = por %p102, %p103
      %p105 = scmp.ne.s32.totalorder %s97, %s99
      %p106 = scmp.eq.s32.totalorder %s26, 1
      %p107 = por %p105, %p106
      %p108 = scmp.ne.s32.totalorder %s99, %s100
      %p109 = scmp.eq.s32.totalorder %s26, 0
      %p110 = por %p108, %p109
      %p111 = scmp.ne.s32.totalorder %s99, %s100
      %p112 = scmp.eq.s32.totalorder %s27, 1
      %p113 = por %p111, %p112
      %p115 = scmp.ne.s32.totalorder %s100, %s114
      %p116 = scmp.eq.s32.totalorder %s27, 0
      %p117 = por %p115, %p116
      %s119 = sadd.s32 %s118, 1
      %p122 = scmp.eq.s32.totalorder %s21, 1
      %p123 = scmp.ne.s32.totalorder %s118, %s120
      %p124 = scmp.eq.s32.totalorder %s21, 0
      %p125 = por %p123, %p124
      %p126 = scmp.ne.s32.totalorder %s118, %s120
      %p127 = scmp.eq.s32.totalorder %s26, 1
      %p128 = por %p126, %p127
      %p129 = scmp.ne.s32.totalorder %s120, %s121
      %p130 = scmp.eq.s32.totalorder %s26, 0
      %p131 = por %p129, %p130
      %p132 = scmp.ne.s32.totalorder %s120, %s121
      %p133 = scmp.eq.s32.totalorder %s27, 1
      %p134 = por %p132, %p133
      %p136 = scmp.ne.s32.totalorder %s121, %s135
      %p137 = scmp.eq.s32.totalorder %s27, 0
      %p138 = por %p136, %p137
      %s140 = sadd.s32 %s139, 1
      %p143 = scmp.eq.s32.totalorder %s21, 1
      %p144 = scmp.ne.s32.totalorder %s139, %s141
      %p145 = scmp.eq.s32.totalorder %s21, 0
      %p146 = por %p144, %p145
      %p147 = scmp.ne.s32.totalorder %s139, %s141
      %p148 = scmp.eq.s32.totalorder %s26, 1
      %p149 = por %p147, %p148
      %p150 = scmp.ne.s32.totalorder %s141, %s142
      %p151 = scmp.eq.s32.totalorder %s26, 0
      %p152 = por %p150, %p151
      %p153 = scmp.ne.s32.totalorder %s141, %s142
      %p154 = scmp.eq.s32.totalorder %s27, 1
      %p155 = por %p153, %p154
      %p157 = scmp.ne.s32.totalorder %s142, %s156
      %p158 = scmp.eq.s32.totalorder %s27, 0
      %p159 = por %p157, %p158
      %s161 = sadd.s32 %s160, 1
      %p164 = scmp.eq.s32.totalorder %s21, 1
      %p165 = scmp.ne.s32.totalorder %s160, %s162
      %p166 = scmp.eq.s32.totalorder %s21, 0
      %p167 = por %p165, %p166
      %p168 = scmp.ne.s32.totalorder %s160, %s162
      %p169 = scmp.eq.s32.totalorder %s26, 1
      %p170 = por %p168, %p169
      %p171 = scmp.ne.s32.totalorder %s162, %s163
      %p172 = scmp.eq.s32.totalorder %s26, 0
      %p173 = por %p171, %p172
      %p174 = scmp.ne.s32.totalorder %s162, %s163
      %p175 = scmp.eq.s32.totalorder %s27, 1
      %p176 = por %p174, %p175
      %p178 = scmp.ne.s32.totalorder %s163, %s177
      %p179 = scmp.eq.s32.totalorder %s27, 0
      %p180 = por %p178, %p179
      %s181 = ssub.s32 %s21, %s28
      %p182 = scmp.eq.s32.totalorder %s181, 0
      %s184 = sadd.s32 %s183, 1
      %s185 = scalar_select %p182, %s183, %s184
      %p188 = pneg %p182
      %p189 = scmp.eq.s32.totalorder %s21, 1
      %p190 = por %p188, %p189
      %p191 = scmp.ne.s32.totalorder %s183, %s186
      %p192 = scmp.eq.s32.totalorder %s21, 0
      %p193 = por %p191, %p192
      %p194 = scmp.ne.s32.totalorder %s183, %s186
      %p195 = scmp.eq.s32.totalorder %s26, 1
      %p196 = por %p194, %p195
      %p197 = scmp.ne.s32.totalorder %s186, %s187
      %p198 = scmp.eq.s32.totalorder %s26, 0
      %p199 = por %p197, %p198
      %p200 = scmp.ne.s32.totalorder %s186, %s187
      %p201 = scmp.eq.s32.totalorder %s27, 1
      %p202 = por %p200, %p201
      %p204 = scmp.ne.s32.totalorder %s187, %s203
      %p205 = scmp.eq.s32.totalorder %s27, 0
      %p206 = por %p204, %p205
      %s207 = ssub.s32 %s21, %s28
      %p208 = scmp.eq.s32.totalorder %s207, 0
      %s210 = sadd.s32 %s209, 1
      %s211 = scalar_select %p208, %s209, %s210
      %p214 = pneg %p208
      %p215 = scmp.eq.s32.totalorder %s21, 1
      %p216 = por %p214, %p215
      %p217 = scmp.ne.s32.totalorder %s209, %s212
      %p218 = scmp.eq.s32.totalorder %s21, 0
      %p219 = por %p217, %p218
      %p220 = scmp.ne.s32.totalorder %s209, %s212
      %p221 = scmp.eq.s32.totalorder %s26, 1
      %p222 = por %p220, %p221
      %p223 = scmp.ne.s32.totalorder %s212, %s213
      %p224 = scmp.eq.s32.totalorder %s26, 0
      %p225 = por %p223, %p224
      %p226 = scmp.ne.s32.totalorder %s212, %s213
      %p227 = scmp.eq.s32.totalorder %s27, 1
      %p228 = por %p226, %p227
      %p230 = scmp.ne.s32.totalorder %s213, %s229
      %p231 = scmp.eq.s32.totalorder %s27, 0
      %p232 = por %p230, %p231
      %p233 = scmp.le.s32.totalorder 1, %s21
      %p234 = scmp.lt.s32.totalorder %s21, 3
      %p235 = pnand %p233, %p234
      %p236 = pneg %p235
      // Predicated region
      $region9: #{forward.3} parent=5 // pred_check
        _
      $region10: #{forward.3} parent=5 // pred_check_branch
        %238 = sbr.rel (%p235) target = $region12
      $region11: #{forward.3} parent=5 // pred_region
        %s239 = ssub.s32 %s21, 1
        // Predicated region
        $region13: #{forward.3} parent=11 // pred_check
          %p240 = pneg %p68
        $region14: #{forward.3} parent=11 // pred_check_branch
          %242 = sbr.rel (%p240) target = $region16
        $region15: #{forward.3} parent=11 // pred_region
          %s244 = ssub.s32 32, 32
          %245 = vsyncadd [#allocation3], %s244
          %s247 = sshll.u32 [#allocation2], 4
          %s248 = int_to_ptr.vmem [resolvable:$true] %s247
          %250 = dma.hbm_to_vmem [thread:$0]  %s1, 32, %s248, [#allocation3]
        $region16: #{forward.3} parent=11 // pred_fallthru
          _
        // Predicated region
        $region17: #{forward.3} parent=11 // pred_check
          %p251 = pneg %p89
        $region18: #{forward.3} parent=11 // pred_check_branch
          %253 = sbr.rel (%p251) target = $region20
        $region19: #{forward.3} parent=11 // pred_region
          _
        $region20: #{forward.3} parent=11 // pred_fallthru
          _
        // Predicated region
        $region21: #{forward.3} parent=11 // pred_check
          %p254 = pneg %p110
        $region22: #{forward.3} parent=11 // pred_check_branch
          %256 = sbr.rel (%p254) target = $region24
        $region23: #{forward.3} parent=11 // pred_region
          %s258 = ssub.s32 256, 256
          %259 = vsyncadd [#allocation6], %s258
          %s260 = sshll.u32 [#allocation5], 4
          %s261 = int_to_ptr.vmem [resolvable:$true] %s260
          %266 = dma.hbm_to_vmem [thread:$0]  %s3, 256, %s261, [#allocation6], 64, 64, 4
        $region24: #{forward.3} parent=11 // pred_fallthru
          _
        // Predicated region
        $region25: #{forward.3} parent=11 // pred_check
          %p267 = pneg %p131
        $region26: #{forward.3} parent=11 // pred_check_branch
          %269 = sbr.rel (%p267) target = $region28
        $region27: #{forward.3} parent=11 // pred_region
          _
        $region28: #{forward.3} parent=11 // pred_fallthru
          _
        // Predicated region
        $region29: #{forward.3} parent=11 // pred_check
          %p270 = pneg %p152
        $region30: #{forward.3} parent=11 // pred_check_branch
          %272 = sbr.rel (%p270) target = $region32
        $region31: #{forward.3} parent=11 // pred_region
          %s274 = ssub.s32 768, 768
          %275 = vsyncadd [#allocation6], %s274
          %s276 = sshll.u32 [#allocation7], 4
          %s277 = int_to_ptr.vmem [resolvable:$true] %s276
          %282 = dma.hbm_to_vmem [thread:$0]  %s5, 768, %s277, [#allocation6], 64, 64, 4
        $region32: #{forward.3} parent=11 // pred_fallthru
          _
        // Predicated region
        $region33: #{forward.3} parent=11 // pred_check
          %p283 = pneg %p173
        $region34: #{forward.3} parent=11 // pred_check_branch
          %285 = sbr.rel (%p283) target = $region36
        $region35: #{forward.3} parent=11 // pred_region
          %s287 = ssub.s32 16, 16
          %288 = vsyncadd [#allocation9], %s287
          %s290 = sshll.u32 [#allocation8], 4
          %s291 = int_to_ptr.vmem [resolvable:$true] %s290
          %293 = dma.hbm_to_vmem [thread:$0]  %s6, 16, %s291, [#allocation9]
        $region36: #{forward.3} parent=11 // pred_fallthru
          _
      $region12: #{forward.3} parent=5 // pred_fallthru
        _
      %p294 = scmp.lt.s32.totalorder %s21, 2
      // Predicated region
      $region37: #{forward.3} parent=5 // pred_check
        %p295 = pneg %p294
      $region38: #{forward.3} parent=5 // pred_check_branch
        %297 = sbr.rel (%p295) target = $region40
      $region39: #{forward.3} parent=5 // pred_region
        // Predicated region
        $region41: #{forward.3} parent=39 // pred_check
          %p298 = pneg %p41
        $region42: #{forward.3} parent=39 // pred_check_branch
          %300 = sbr.rel (%p298) target = $region44
        $region43: #{forward.3} parent=39 // pred_region
          %s301 = smul.u32 32, %s21
          %p302 = scmp.lt.s32.totalorder %s301, 63
          %s303 = scalar_select %p302, %s301, 63
          %s304 = smul.addr %s303, 8
          %s305 = scalar_lea.vmem %s0, %s304
          %s306 = smul.u32 32, %s21
        $region44: #{forward.3} parent=39 // pred_fallthru
          _
      $region40: #{forward.3} parent=5 // pred_fallthru
        _
      %p307 = scmp.le.s32.totalorder 1, %s21
      %p308 = scmp.lt.s32.totalorder %s21, 3
      %p309 = pnand %p307, %p308
      %p310 = pneg %p309
      // Predicated region
      $region45: #{forward.3} parent=5 // pred_check
        _
      $region46: #{forward.3} parent=5 // pred_check_branch
        %312 = sbr.rel (%p309) target = $region48
      $region47: #{forward.3} parent=5 // pred_region
        %s313 = ssub.s32 %s21, 1
        // Predicated region
        $region49: #{forward.3} parent=47 // pred_check
          %p314 = pneg %p68
        $region50: #{forward.3} parent=47 // pred_check_branch
          %316 = sbr.rel (%p314) target = $region52
        $region51: #{forward.3} parent=47 // pred_region
          %317 = dma.done [#allocation3], 32
        $region52: #{forward.3} parent=47 // pred_fallthru
          _
        // Predicated region
        $region53: #{forward.3} parent=47 // pred_check
          %p318 = pneg %p110
        $region54: #{forward.3} parent=47 // pred_check_branch
          %320 = sbr.rel (%p318) target = $region56
        $region55: #{forward.3} parent=47 // pred_region
          %321 = dma.done [#allocation6], 256
        $region56: #{forward.3} parent=47 // pred_fallthru
          _
        // Predicated region
        $region57: #{forward.3} parent=47 // pred_check
          %p322 = pneg %p152
        $region58: #{forward.3} parent=47 // pred_check_branch
          %324 = sbr.rel (%p322) target = $region60
        $region59: #{forward.3} parent=47 // pred_region
          %325 = dma.done [#allocation6], 768
        $region60: #{forward.3} parent=47 // pred_fallthru
          _
        // Predicated region
        $region61: #{forward.3} parent=47 // pred_check
          %p326 = pneg %p173
        $region62: #{forward.3} parent=47 // pred_check_branch
          %328 = sbr.rel (%p326) target = $region64
        $region63: #{forward.3} parent=47 // pred_region
          %329 = dma.done [#allocation9], 16
        $region64: #{forward.3} parent=47 // pred_fallthru
          _
        %s330 = smul.u32 32, %s26
        %p331 = scmp.lt.s32.totalorder %s330, 63
        %s332 = scalar_select %p331, %s330, 63
        %s333 = smul.addr %s332, 8
        %s334 = scalar_lea.vmem %s0, %s333
        %p335 = pneg %p47
        %p336 = pneg %p44
        %p337 = pneg %p68
        %p338 = pneg %p65
        %p339 = pneg %p89
        %p340 = pneg %p86
        %p341 = pneg %p110
        %p342 = pneg %p107
        %p343 = pneg %p131
        %p344 = pneg %p128
        %p345 = pneg %p152
        %p346 = pneg %p149
        %p347 = pneg %p173
        %p348 = pneg %p170
        %p349 = pneg %p199
        %p350 = pneg %p196
        %s351 = sand.u32 %s186, 1
        %s352 = scalar_lea.sflag [#allocation4], %s351
        %s353 = sand.u32 %s186, 1
        %s354 = smul.addr %s353, 256
        %s355 = scalar_lea.vmem [#allocation10], %s354
        %p356 = pneg %p225
        %p357 = pneg %p222
        %s358 = smul.u32 32, %s26
        %p359 = scmp.lt.s32.totalorder %s358, 63
        %s360 = scalar_select %p359, %s358, 63
        %s361 = smul.addr %s360, 8
        %s362 = scalar_lea.vmem %s8, %s361
        %s363 = smul.u32 32, %s26
        %p364 = scmp.lt.s32.totalorder %s363, 63
        %s365 = scalar_select %p364, %s363, 63
        %s366 = smul.addr %s365, 8
        %s367 = scalar_lea.vmem %s0, %s366
        %s368 = smul.u32 32, %s26
        %s369 = smul.u32 32, %s26
        %s370 = smul.u32 32, %s26
        %p371 = scmp.lt.s32.totalorder %s370, 63
        %s372 = scalar_select %p371, %s370, 63
        %s373 = smul.addr %s372, 8
        %s374 = scalar_lea.vmem %s8, %s373
        %s375 = smul.u32 32, %s26
        %v377 = vld [vmem:[%s367] sm:$0xff]
        %v378 = vld [vmem:[%s367 + $0x8] sm:$0xff]
        %v379 = vld [vmem:[%s367 + $0x10] sm:$0xff]
        %v380 = vld [vmem:[%s367 + $0x18] sm:$0xff]
        %v381 = vld [vmem:[%s367 + $0x20] sm:$0xff]
        %v382 = vld [vmem:[%s367 + $0x28] sm:$0xff]
        %v383 = vld [vmem:[%s367 + $0x30] sm:$0xff]
        %v384 = vld [vmem:[%s367 + $0x38] sm:$0xff]
        %v385 = vld [vmem:[%s367 + $0x40] sm:$0xff]
        %v386 = vld [vmem:[%s367 + $0x48] sm:$0xff]
        %v387 = vld [vmem:[%s367 + $0x50] sm:$0xff]
        %v388 = vld [vmem:[%s367 + $0x58] sm:$0xff]
        %v389 = vld [vmem:[%s367 + $0x60] sm:$0xff]
        %v390 = vld [vmem:[%s367 + $0x68] sm:$0xff]
        %v391 = vld [vmem:[%s367 + $0x70] sm:$0xff]
        %v392 = vld [vmem:[%s367 + $0x78] sm:$0xff]
        %v393 = vld [vmem:[%s367 + $0x80] sm:$0xff]
        %v394 = vld [vmem:[%s367 + $0x88] sm:$0xff]
        %v395 = vld [vmem:[%s367 + $0x90] sm:$0xff]
        %v396 = vld [vmem:[%s367 + $0x98] sm:$0xff]
        %v397 = vld [vmem:[%s367 + $0xa0] sm:$0xff]
        %v398 = vld [vmem:[%s367 + $0xa8] sm:$0xff]
        %v399 = vld [vmem:[%s367 + $0xb0] sm:$0xff]
        %v400 = vld [vmem:[%s367 + $0xb8] sm:$0xff]
        %v401 = vld [vmem:[%s367 + $0xc0] sm:$0xff]
        %v402 = vld [vmem:[%s367 + $0xc8] sm:$0xff]
        %v403 = vld [vmem:[%s367 + $0xd0] sm:$0xff]
        %v404 = vld [vmem:[%s367 + $0xd8] sm:$0xff]
        %v405 = vld [vmem:[%s367 + $0xe0] sm:$0xff]
        %v406 = vld [vmem:[%s367 + $0xe8] sm:$0xff]
        %v407 = vld [vmem:[%s367 + $0xf0] sm:$0xff]
        %v408 = vld [vmem:[%s367 + $0xf8] sm:$0xff]
        %v409 = vpack.c.bf16 %v378, %v377
        %v410 = vpack.c.bf16 %v380, %v379
        %v411 = vpack.c.bf16 %v382, %v381
        %v412 = vpack.c.bf16 %v384, %v383
        %v413 = vpack.c.bf16 %v386, %v385
        %v414 = vpack.c.bf16 %v388, %v387
        %v415 = vpack.c.bf16 %v390, %v389
        %v416 = vpack.c.bf16 %v392, %v391
        %v417 = vpack.c.bf16 %v394, %v393
        %v418 = vpack.c.bf16 %v396, %v395
        %v419 = vpack.c.bf16 %v398, %v397
        %v420 = vpack.c.bf16 %v400, %v399
        %v421 = vpack.c.bf16 %v402, %v401
        %v422 = vpack.c.bf16 %v404, %v403
        %v423 = vpack.c.bf16 %v406, %v405
        %v424 = vpack.c.bf16 %v408, %v407
        %v425 = vld [vmem:[#allocation2] sm:$0x3]
        %v426 = vld [vmem:[%s2] sm:$0x1]
        %v428 = vlaneseq
        %v429 = vshrl.u32 %v428, 7
        %v430 = vsub.s32 0, %v429
        %v431 = vrot.slane %v426, %v430
        %vm433 = vcmask 31744
        %v435 = vsel %vm433, %v409, 0
        %v438 = vsel %vm433, %v410, 0
        %v441 = vsel %vm433, %v411, 0
        %v444 = vsel %vm433, %v412, 0
        %v447 = vsel %vm433, %v413, 0
        %v450 = vsel %vm433, %v414, 0
        %v453 = vsel %vm433, %v415, 0
        %v456 = vsel %vm433, %v416, 0
        %v459 = vsel %vm433, %v417, 0
        %v462 = vsel %vm433, %v418, 0
        %v465 = vsel %vm433, %v419, 0
        %v468 = vsel %vm433, %v420, 0
        %v471 = vsel %vm433, %v421, 0
        %v474 = vsel %vm433, %v422, 0
        %v477 = vsel %vm433, %v423, 0
        %v480 = vsel %vm433, %v424, 0
        %vm482 = vcmask 1041408
        %v484 = vsel %vm482, %v425, 0
        %486 = vmatprep.subr.bf16.mxu0 0
        %487 = vmatpush1.bf16.msra.mxu0 %v484
        %488 = vmatprep.subr.bf16.mxu0 0
        %489 = vmatpush1.bf16.msra.mxu0 0
        %490 = vmatprep.subr.bf16.mxu0 0
        %491 = vmatpush1.bf16.msra.mxu0 0
        %492 = vmatprep.subr.bf16.mxu0 0
        %493 = vmatpush1.bf16.msra.mxu0 0
        %494 = vmatprep.subr.bf16.mxu0 0
        %495 = vmatpush1.bf16.msra.mxu0 0
        %496 = vmatprep.subr.bf16.mxu0 0
        %497 = vmatpush1.bf16.msra.mxu0 0
        %498 = vmatprep.subr.bf16.mxu0 0
        %499 = vmatpush1.bf16.msra.mxu0 0
        %500 = vmatprep.subr.bf16.mxu0 0
        %501 = vmatpush1.bf16.msra.mxu0 0
        %502 = vmatprep.subr.bf16.mxu0 0
        %503 = vmatpush1.bf16.msra.mxu0 0
        %504 = vmatprep.subr.bf16.mxu0 0
        %505 = vmatpush1.bf16.msra.mxu0 0
        %506 = vmatprep.subr.bf16.mxu0 0
        %507 = vmatpush1.bf16.msra.mxu0 0
        %508 = vmatprep.subr.bf16.mxu0 0
        %509 = vmatpush1.bf16.msra.mxu0 0
        %510 = vmatprep.subr.bf16.mxu0 0
        %511 = vmatpush1.bf16.msra.mxu0 0
        %512 = vmatprep.subr.bf16.mxu0 0
        %513 = vmatpush1.bf16.msra.mxu0 0
        %514 = vmatprep.subr.bf16.mxu0 0
        %515 = vmatpush1.bf16.msra.mxu0 0
        %516 = vmatprep.subr.bf16.mxu0 0
        %517 = vmatpush1.bf16.msra.mxu0 0
        %518 = vmatprep.mubr.bf16.mxu0 0
        %519 = vmatmul.mubr.bf16.gmra.mrb[0].mxu0 %v435
        %v520 = vpop.f32.mrb[0].mxu0
        %v521 = vadd.f32 %v431, %v520
        %v522 = vpop.f32.mrb[0].mxu0
        %v523 = vpop.f32.mrb[0].mxu0
        %v524 = vadd.f32 %v431, %v523
        %v525 = vpop.f32.mrb[0].mxu0
        %526 = vmatprep.mubr.bf16.mxu0 0
        %527 = vmatmul.mubr.bf16.gmra.mrb[0].mxu0 %v438
        %v528 = vpop.f32.mrb[0].mxu0
        %v529 = vadd.f32 %v431, %v528
        %v530 = vpop.f32.mrb[0].mxu0
        %v531 = vpop.f32.mrb[0].mxu0
        %v532 = vadd.f32 %v431, %v531
        %v533 = vpop.f32.mrb[0].mxu0
        %534 = vmatprep.mubr.bf16.mxu0 0
        %535 = vmatmul.mubr.bf16.gmra.mrb[0].mxu0 %v441
        %v536 = vpop.f32.mrb[0].mxu0
        %v537 = vadd.f32 %v431, %v536
        %v538 = vpop.f32.mrb[0].mxu0
        %v539 = vpop.f32.mrb[0].mxu0
        %v540 = vadd.f32 %v431, %v539
        %v541 = vpop.f32.mrb[0].mxu0
        %542 = vmatprep.mubr.bf16.mxu0 0
        %543 = vmatmul.mubr.bf16.gmra.mrb[0].mxu0 %v444
        %v544 = vpop.f32.mrb[0].mxu0
        %v545 = vadd.f32 %v431, %v544
        %v546 = vpop.f32.mrb[0].mxu0
        %v547 = vpop.f32.mrb[0].mxu0
        %v548 = vadd.f32 %v431, %v547
        %v549 = vpop.f32.mrb[0].mxu0
        %550 = vmatprep.mubr.bf16.mxu0 0
        %551 = vmatmul.mubr.bf16.gmra.mrb[0].mxu0 %v447
        %v552 = vpop.f32.mrb[0].mxu0
        %v553 = vadd.f32 %v431, %v552
        %v554 = vpop.f32.mrb[0].mxu0
        %v555 = vpop.f32.mrb[0].mxu0
        %v556 = vadd.f32 %v431, %v555
        %v557 = vpop.f32.mrb[0].mxu0
        %558 = vmatprep.mubr.bf16.mxu0 0
        %559 = vmatmul.mubr.bf16.gmra.mrb[0].mxu0 %v450
        %v560 = vpop.f32.mrb[0].mxu0
        %v561 = vadd.f32 %v431, %v560
        %v562 = vpop.f32.mrb[0].mxu0
        %v563 = vpop.f32.mrb[0].mxu0
        %v564 = vadd.f32 %v431, %v563
        %v565 = vpop.f32.mrb[0].mxu0
        %566 = vmatprep.mubr.bf16.mxu0 0
        %567 = vmatmul.mubr.bf16.gmra.mrb[0].mxu0 %v453
        %v568 = vpop.f32.mrb[0].mxu0
        %v569 = vadd.f32 %v431, %v568
        %v570 = vpop.f32.mrb[0].mxu0
        %v571 = vpop.f32.mrb[0].mxu0
        %v572 = vadd.f32 %v431, %v571
        %v573 = vpop.f32.mrb[0].mxu0
        %574 = vmatprep.mubr.bf16.mxu0 0
        %575 = vmatmul.mubr.bf16.gmra.mrb[0].mxu0 %v456
        %v576 = vpop.f32.mrb[0].mxu0
        %v577 = vadd.f32 %v431, %v576
        %v578 = vpop.f32.mrb[0].mxu0
        %v579 = vpop.f32.mrb[0].mxu0
        %v580 = vadd.f32 %v431, %v579
        %v581 = vpop.f32.mrb[0].mxu0
        %582 = vmatprep.mubr.bf16.mxu0 0
        %583 = vmatmul.mubr.bf16.gmra.mrb[0].mxu0 %v459
        %v584 = vpop.f32.mrb[0].mxu0
        %v585 = vadd.f32 %v431, %v584
        %v586 = vpop.f32.mrb[0].mxu0
        %v587 = vpop.f32.mrb[0].mxu0
        %v588 = vadd.f32 %v431, %v587
        %v589 = vpop.f32.mrb[0].mxu0
        %590 = vmatprep.mubr.bf16.mxu0 0
        %591 = vmatmul.mubr.bf16.gmra.mrb[0].mxu0 %v462
        %v592 = vpop.f32.mrb[0].mxu0
        %v593 = vadd.f32 %v431, %v592
        %v594 = vpop.f32.mrb[0].mxu0
        %v595 = vpop.f32.mrb[0].mxu0
        %v596 = vadd.f32 %v431, %v595
        %v597 = vpop.f32.mrb[0].mxu0
        %598 = vmatprep.mubr.bf16.mxu0 0
        %599 = vmatmul.mubr.bf16.gmra.mrb[0].mxu0 %v465
        %v600 = vpop.f32.mrb[0].mxu0
        %v601 = vadd.f32 %v431, %v600
        %v602 = vpop.f32.mrb[0].mxu0
        %v603 = vpop.f32.mrb[0].mxu0
        %v604 = vadd.f32 %v431, %v603
        %v605 = vpop.f32.mrb[0].mxu0
        %606 = vmatprep.mubr.bf16.mxu0 0
        %607 = vmatmul.mubr.bf16.gmra.mrb[0].mxu0 %v468
        %v608 = vpop.f32.mrb[0].mxu0
        %v609 = vadd.f32 %v431, %v608
        %v610 = vpop.f32.mrb[0].mxu0
        %v611 = vpop.f32.mrb[0].mxu0
        %v612 = vadd.f32 %v431, %v611
        %v613 = vpop.f32.mrb[0].mxu0
        %614 = vmatprep.mubr.bf16.mxu0 0
        %615 = vmatmul.mubr.bf16.gmra.mrb[0].mxu0 %v471
        %v616 = vpop.f32.mrb[0].mxu0
        %v617 = vadd.f32 %v431, %v616
        %v618 = vpop.f32.mrb[0].mxu0
        %v619 = vpop.f32.mrb[0].mxu0
        %v620 = vadd.f32 %v431, %v619
        %v621 = vpop.f32.mrb[0].mxu0
        %622 = vmatprep.mubr.bf16.mxu0 0
        %623 = vmatmul.mubr.bf16.gmra.mrb[0].mxu0 %v474
        %v624 = vpop.f32.mrb[0].mxu0
        %v625 = vadd.f32 %v431, %v624
        %v626 = vpop.f32.mrb[0].mxu0
        %v627 = vpop.f32.mrb[0].mxu0
        %v628 = vadd.f32 %v431, %v627
        %v629 = vpop.f32.mrb[0].mxu0
        %630 = vmatprep.mubr.bf16.mxu0 0
        %631 = vmatmul.mubr.bf16.gmra.mrb[0].mxu0 %v477
        %v632 = vpop.f32.mrb[0].mxu0
        %v633 = vadd.f32 %v431, %v632
        %v634 = vpop.f32.mrb[0].mxu0
        %v635 = vpop.f32.mrb[0].mxu0
        %v636 = vadd.f32 %v431, %v635
        %v637 = vpop.f32.mrb[0].mxu0
        %638 = vmatprep.mubr.bf16.mxu0 0
        %639 = vmatmul.mubr.bf16.gmra.mrb[0].mxu0 %v480
        %v640 = vpop.f32.mrb[0].mxu0
        %v641 = vadd.f32 %v431, %v640
        %v642 = vpop.f32.mrb[0].mxu0
        %v643 = vpop.f32.mrb[0].mxu0
        %v644 = vadd.f32 %v431, %v643
        %v645 = vpop.f32.mrb[0].mxu0
        %646 = vdwg.mxu0
        %v647 = vmax.f32 %v521, 0.0
        %v648 = vmax.f32 %v524, 0.0
        %v649 = vmax.f32 %v529, 0.0
        %v650 = vmax.f32 %v532, 0.0
        %v651 = vmax.f32 %v537, 0.0
        %v652 = vmax.f32 %v540, 0.0
        %v653 = vmax.f32 %v545, 0.0
        %v654 = vmax.f32 %v548, 0.0
        %v655 = vmax.f32 %v553, 0.0
        %v656 = vmax.f32 %v556, 0.0
        %v657 = vmax.f32 %v561, 0.0
        %v658 = vmax.f32 %v564, 0.0
        %v659 = vmax.f32 %v569, 0.0
        %v660 = vmax.f32 %v572, 0.0
        %v661 = vmax.f32 %v577, 0.0
        %v662 = vmax.f32 %v580, 0.0
        %v663 = vmax.f32 %v585, 0.0
        %v664 = vmax.f32 %v588, 0.0
        %v665 = vmax.f32 %v593, 0.0
        %v666 = vmax.f32 %v596, 0.0
        %v667 = vmax.f32 %v601, 0.0
        %v668 = vmax.f32 %v604, 0.0
        %v669 = vmax.f32 %v609, 0.0
        %v670 = vmax.f32 %v612, 0.0
        %v671 = vmax.f32 %v617, 0.0
        %v672 = vmax.f32 %v620, 0.0
        %v673 = vmax.f32 %v625, 0.0
        %v674 = vmax.f32 %v628, 0.0
        %v675 = vmax.f32 %v633, 0.0
        %v676 = vmax.f32 %v636, 0.0
        %v677 = vmax.f32 %v641, 0.0
        %v678 = vmax.f32 %v644, 0.0
        %vm679 = vcmask 261120
        %680 = vst.msk [vmem:[%s355] sm:$0xff] %vm679, %v647
        %681 = vst.msk [vmem:[%s355 + $0x8] sm:$0xff] %vm679, %v648
        %682 = vst.msk [vmem:[%s355 + $0x10] sm:$0xff] %vm679, %v649
        %683 = vst.msk [vmem:[%s355 + $0x18] sm:$0xff] %vm679, %v650
        %684 = vst.msk [vmem:[%s355 + $0x20] sm:$0xff] %vm679, %v651
        %685 = vst.msk [vmem:[%s355 + $0x28] sm:$0xff] %vm679, %v652
        %686 = vst.msk [vmem:[%s355 + $0x30] sm:$0xff] %vm679, %v653
        %687 = vst.msk [vmem:[%s355 + $0x38] sm:$0xff] %vm679, %v654
        %688 = vst.msk [vmem:[%s355 + $0x40] sm:$0xff] %vm679, %v655
        %689 = vst.msk [vmem:[%s355 + $0x48] sm:$0xff] %vm679, %v656
        %690 = vst.msk [vmem:[%s355 + $0x50] sm:$0xff] %vm679, %v657
        %691 = vst.msk [vmem:[%s355 + $0x58] sm:$0xff] %vm679, %v658
        %692 = vst.msk [vmem:[%s355 + $0x60] sm:$0xff] %vm679, %v659
        %693 = vst.msk [vmem:[%s355 + $0x68] sm:$0xff] %vm679, %v660
        %694 = vst.msk [vmem:[%s355 + $0x70] sm:$0xff] %vm679, %v661
        %695 = vst.msk [vmem:[%s355 + $0x78] sm:$0xff] %vm679, %v662
        %696 = vst.msk [vmem:[%s355 + $0x80] sm:$0xff] %vm679, %v663
        %697 = vst.msk [vmem:[%s355 + $0x88] sm:$0xff] %vm679, %v664
        %698 = vst.msk [vmem:[%s355 + $0x90] sm:$0xff] %vm679, %v665
        %699 = vst.msk [vmem:[%s355 + $0x98] sm:$0xff] %vm679, %v666
        %700 = vst.msk [vmem:[%s355 + $0xa0] sm:$0xff] %vm679, %v667
        %701 = vst.msk [vmem:[%s355 + $0xa8] sm:$0xff] %vm679, %v668
        %702 = vst.msk [vmem:[%s355 + $0xb0] sm:$0xff] %vm679, %v669
        %703 = vst.msk [vmem:[%s355 + $0xb8] sm:$0xff] %vm679, %v670
        %704 = vst.msk [vmem:[%s355 + $0xc0] sm:$0xff] %vm679, %v671
        %705 = vst.msk [vmem:[%s355 + $0xc8] sm:$0xff] %vm679, %v672
        %706 = vst.msk [vmem:[%s355 + $0xd0] sm:$0xff] %vm679, %v673
        %707 = vst.msk [vmem:[%s355 + $0xd8] sm:$0xff] %vm679, %v674
        %708 = vst.msk [vmem:[%s355 + $0xe0] sm:$0xff] %vm679, %v675
        %709 = vst.msk [vmem:[%s355 + $0xe8] sm:$0xff] %vm679, %v676
        %710 = vst.msk [vmem:[%s355 + $0xf0] sm:$0xff] %vm679, %v677
        %711 = vst.msk [vmem:[%s355 + $0xf8] sm:$0xff] %vm679, %v678
        %v712 = vpack.c.bf16 %v648, %v647
        %v713 = vpack.c.bf16 %v650, %v649
        %v714 = vpack.c.bf16 %v652, %v651
        %v715 = vpack.c.bf16 %v654, %v653
        %v716 = vpack.c.bf16 %v656, %v655
        %v717 = vpack.c.bf16 %v658, %v657
        %v718 = vpack.c.bf16 %v660, %v659
        %v719 = vpack.c.bf16 %v662, %v661
        %v720 = vpack.c.bf16 %v664, %v663
        %v721 = vpack.c.bf16 %v666, %v665
        %v722 = vpack.c.bf16 %v668, %v667
        %v723 = vpack.c.bf16 %v670, %v669
        %v724 = vpack.c.bf16 %v672, %v671
        %v725 = vpack.c.bf16 %v674, %v673
        %v726 = vpack.c.bf16 %v676, %v675
        %v727 = vpack.c.bf16 %v678, %v677
        %v728 = vld [vmem:[#allocation5] sm:$0xf]
        %v729 = vld [vmem:[#allocation5 + $0x4] sm:$0xf]
        %v730 = vld [vmem:[#allocation5 + $0x8] sm:$0xf]
        %v731 = vld [vmem:[#allocation5 + $0xc] sm:$0xf]
        %v732 = vld [vmem:[%s4] sm:$0x1]
        %v734 = vlaneseq
        %v735 = vshrl.u32 %v734, 7
        %v736 = vsub.s32 0, %v735
        %v737 = vrot.slane %v732, %v736
        %v743 = vunpack.c.l.b16 %v728
        %v744 = vunpack.c.l.b16 %v729
        %v745 = vunpack.c.l.b16 %v730
        %v746 = vunpack.c.l.b16 %v731
        %v747 = vpack.c.b16 %v744, %v743
        %v748 = vpack.c.b16 %v746, %v745
        %v752 = vsel %vm679, %v712, 0
        %v755 = vsel %vm679, %v713, 0
        %v758 = vsel %vm679, %v714, 0
        %v761 = vsel %vm679, %v715, 0
        %v764 = vsel %vm679, %v716, 0
        %v767 = vsel %vm679, %v717, 0
        %v770 = vsel %vm679, %v718, 0
        %v773 = vsel %vm679, %v719, 0
        %v776 = vsel %vm679, %v720, 0
        %v779 = vsel %vm679, %v721, 0
        %v782 = vsel %vm679, %v722, 0
        %v785 = vsel %vm679, %v723, 0
        %v788 = vsel %vm679, %v724, 0
        %v791 = vsel %vm679, %v725, 0
        %v794 = vsel %vm679, %v726, 0
        %v797 = vsel %vm679, %v727, 0
        %799 = vmatprep.subr.bf16.mxu0 0
        %800 = vmatpush1.bf16.msra.mxu0 %v747
        %801 = vmatprep.subr.bf16.mxu0 0
        %802 = vmatpush1.bf16.msra.mxu0 %v748
        %803 = vmatprep.subr.bf16.mxu0 0
        %804 = vmatpush1.bf16.msra.mxu0 0
        %805 = vmatprep.subr.bf16.mxu0 0
        %806 = vmatpush1.bf16.msra.mxu0 0
        %807 = vmatprep.subr.bf16.mxu0 0
        %808 = vmatpush1.bf16.msra.mxu0 0
        %809 = vmatprep.subr.bf16.mxu0 0
        %810 = vmatpush1.bf16.msra.mxu0 0
        %811 = vmatprep.subr.bf16.mxu0 0
        %812 = vmatpush1.bf16.msra.mxu0 0
        %813 = vmatprep.subr.bf16.mxu0 0
        %814 = vmatpush1.bf16.msra.mxu0 0
        %815 = vmatprep.subr.bf16.mxu0 0
        %816 = vmatpush1.bf16.msra.mxu0 0
        %817 = vmatprep.subr.bf16.mxu0 0
        %818 = vmatpush1.bf16.msra.mxu0 0
        %819 = vmatprep.subr.bf16.mxu0 0
        %820 = vmatpush1.bf16.msra.mxu0 0
        %821 = vmatprep.subr.bf16.mxu0 0
        %822 = vmatpush1.bf16.msra.mxu0 0
        %823 = vmatprep.subr.bf16.mxu0 0
        %824 = vmatpush1.bf16.msra.mxu0 0
        %825 = vmatprep.subr.bf16.mxu0 0
        %826 = vmatpush1.bf16.msra.mxu0 0
        %827 = vmatprep.subr.bf16.mxu0 0
        %828 = vmatpush1.bf16.msra.mxu0 0
        %829 = vmatprep.subr.bf16.mxu0 0
        %830 = vmatpush1.bf16.msra.mxu0 0
        %831 = vmatprep.mubr.bf16.mxu0 0
        %832 = vmatmul.mubr.bf16.gmra.mrb[0].mxu0 %v752
        %v833 = vpop.f32.mrb[0].mxu0
        %v834 = vadd.f32 %v737, %v833
        %v835 = vpop.f32.mrb[0].mxu0
        %v836 = vpop.f32.mrb[0].mxu0
        %v837 = vadd.f32 %v737, %v836
        %v838 = vpop.f32.mrb[0].mxu0
        %839 = vmatprep.mubr.bf16.mxu0 0
        %840 = vmatmul.mubr.bf16.gmra.mrb[0].mxu0 %v755
        %v841 = vpop.f32.mrb[0].mxu0
        %v842 = vadd.f32 %v737, %v841
        %v843 = vpop.f32.mrb[0].mxu0
        %v844 = vpop.f32.mrb[0].mxu0
        %v845 = vadd.f32 %v737, %v844
        %v846 = vpop.f32.mrb[0].mxu0
        %847 = vmatprep.mubr.bf16.mxu0 0
        %848 = vmatmul.mubr.bf16.gmra.mrb[0].mxu0 %v758
        %v849 = vpop.f32.mrb[0].mxu0
        %v850 = vadd.f32 %v737, %v849
        %v851 = vpop.f32.mrb[0].mxu0
        %v852 = vpop.f32.mrb[0].mxu0
        %v853 = vadd.f32 %v737, %v852
        %v854 = vpop.f32.mrb[0].mxu0
        %855 = vmatprep.mubr.bf16.mxu0 0
        %856 = vmatmul.mubr.bf16.gmra.mrb[0].mxu0 %v761
        %v857 = vpop.f32.mrb[0].mxu0
        %v858 = vadd.f32 %v737, %v857
        %v859 = vpop.f32.mrb[0].mxu0
        %v860 = vpop.f32.mrb[0].mxu0
        %v861 = vadd.f32 %v737, %v860
        %v862 = vpop.f32.mrb[0].mxu0
        %863 = vmatprep.mubr.bf16.mxu0 0
        %864 = vmatmul.mubr.bf16.gmra.mrb[0].mxu0 %v764
        %v865 = vpop.f32.mrb[0].mxu0
        %v866 = vadd.f32 %v737, %v865
        %v867 = vpop.f32.mrb[0].mxu0
        %v868 = vpop.f32.mrb[0].mxu0
        %v869 = vadd.f32 %v737, %v868
        %v870 = vpop.f32.mrb[0].mxu0
        %871 = vmatprep.mubr.bf16.mxu0 0
        %872 = vmatmul.mubr.bf16.gmra.mrb[0].mxu0 %v767
        %v873 = vpop.f32.mrb[0].mxu0
        %v874 = vadd.f32 %v737, %v873
        %v875 = vpop.f32.mrb[0].mxu0
        %v876 = vpop.f32.mrb[0].mxu0
        %v877 = vadd.f32 %v737, %v876
        %v878 = vpop.f32.mrb[0].mxu0
        %879 = vmatprep.mubr.bf16.mxu0 0
        %880 = vmatmul.mubr.bf16.gmra.mrb[0].mxu0 %v770
        %v881 = vpop.f32.mrb[0].mxu0
        %v882 = vadd.f32 %v737, %v881
        %v883 = vpop.f32.mrb[0].mxu0
        %v884 = vpop.f32.mrb[0].mxu0
        %v885 = vadd.f32 %v737, %v884
        %v886 = vpop.f32.mrb[0].mxu0
        %887 = vmatprep.mubr.bf16.mxu0 0
        %888 = vmatmul.mubr.bf16.gmra.mrb[0].mxu0 %v773
        %v889 = vpop.f32.mrb[0].mxu0
        %v890 = vadd.f32 %v737, %v889
        %v891 = vpop.f32.mrb[0].mxu0
        %v892 = vpop.f32.mrb[0].mxu0
        %v893 = vadd.f32 %v737, %v892
        %v894 = vpop.f32.mrb[0].mxu0
        %895 = vmatprep.mubr.bf16.mxu0 0
        %896 = vmatmul.mubr.bf16.gmra.mrb[0].mxu0 %v776
        %v897 = vpop.f32.mrb[0].mxu0
        %v898 = vadd.f32 %v737, %v897
        %v899 = vpop.f32.mrb[0].mxu0
        %v900 = vpop.f32.mrb[0].mxu0
        %v901 = vadd.f32 %v737, %v900
        %v902 = vpop.f32.mrb[0].mxu0
        %903 = vmatprep.mubr.bf16.mxu0 0
        %904 = vmatmul.mubr.bf16.gmra.mrb[0].mxu0 %v779
        %v905 = vpop.f32.mrb[0].mxu0
        %v906 = vadd.f32 %v737, %v905
        %v907 = vpop.f32.mrb[0].mxu0
        %v908 = vpop.f32.mrb[0].mxu0
        %v909 = vadd.f32 %v737, %v908
        %v910 = vpop.f32.mrb[0].mxu0
        %911 = vmatprep.mubr.bf16.mxu0 0
        %912 = vmatmul.mubr.bf16.gmra.mrb[0].mxu0 %v782
        %v913 = vpop.f32.mrb[0].mxu0
        %v914 = vadd.f32 %v737, %v913
        %v915 = vpop.f32.mrb[0].mxu0
        %v916 = vpop.f32.mrb[0].mxu0
        %v917 = vadd.f32 %v737, %v916
        %v918 = vpop.f32.mrb[0].mxu0
        %919 = vmatprep.mubr.bf16.mxu0 0
        %920 = vmatmul.mubr.bf16.gmra.mrb[0].mxu0 %v785
        %v921 = vpop.f32.mrb[0].mxu0
        %v922 = vadd.f32 %v737, %v921
        %v923 = vpop.f32.mrb[0].mxu0
        %v924 = vpop.f32.mrb[0].mxu0
        %v925 = vadd.f32 %v737, %v924
        %v926 = vpop.f32.mrb[0].mxu0
        %927 = vmatprep.mubr.bf16.mxu0 0
        %928 = vmatmul.mubr.bf16.gmra.mrb[0].mxu0 %v788
        %v929 = vpop.f32.mrb[0].mxu0
        %v930 = vadd.f32 %v737, %v929
        %v931 = vpop.f32.mrb[0].mxu0
        %v932 = vpop.f32.mrb[0].mxu0
        %v933 = vadd.f32 %v737, %v932
        %v934 = vpop.f32.mrb[0].mxu0
        %935 = vmatprep.mubr.bf16.mxu0 0
        %936 = vmatmul.mubr.bf16.gmra.mrb[0].mxu0 %v791
        %v937 = vpop.f32.mrb[0].mxu0
        %v938 = vadd.f32 %v737, %v937
        %v939 = vpop.f32.mrb[0].mxu0
        %v940 = vpop.f32.mrb[0].mxu0
        %v941 = vadd.f32 %v737, %v940
        %v942 = vpop.f32.mrb[0].mxu0
        %943 = vmatprep.mubr.bf16.mxu0 0
        %944 = vmatmul.mubr.bf16.gmra.mrb[0].mxu0 %v794
        %v945 = vpop.f32.mrb[0].mxu0
        %v946 = vadd.f32 %v737, %v945
        %v947 = vpop.f32.mrb[0].mxu0
        %v948 = vpop.f32.mrb[0].mxu0
        %v949 = vadd.f32 %v737, %v948
        %v950 = vpop.f32.mrb[0].mxu0
        %951 = vmatprep.mubr.bf16.mxu0 0
        %952 = vmatmul.mubr.bf16.gmra.mrb[0].mxu0 %v797
        %v953 = vpop.f32.mrb[0].mxu0
        %v954 = vadd.f32 %v737, %v953
        %v955 = vpop.f32.mrb[0].mxu0
        %v956 = vpop.f32.mrb[0].mxu0
        %v957 = vadd.f32 %v737, %v956
        %v958 = vpop.f32.mrb[0].mxu0
        %959 = vdwg.mxu0
        %v960 = vmax.f32 %v834, 0.0
        %v961 = vmax.f32 %v837, 0.0
        %v962 = vmax.f32 %v842, 0.0
        %v963 = vmax.f32 %v845, 0.0
        %v964 = vmax.f32 %v850, 0.0
        %v965 = vmax.f32 %v853, 0.0
        %v966 = vmax.f32 %v858, 0.0
        %v967 = vmax.f32 %v861, 0.0
        %v968 = vmax.f32 %v866, 0.0
        %v969 = vmax.f32 %v869, 0.0
        %v970 = vmax.f32 %v874, 0.0
        %v971 = vmax.f32 %v877, 0.0
        %v972 = vmax.f32 %v882, 0.0
        %v973 = vmax.f32 %v885, 0.0
        %v974 = vmax.f32 %v890, 0.0
        %v975 = vmax.f32 %v893, 0.0
        %v976 = vmax.f32 %v898, 0.0
        %v977 = vmax.f32 %v901, 0.0
        %v978 = vmax.f32 %v906, 0.0
        %v979 = vmax.f32 %v909, 0.0
        %v980 = vmax.f32 %v914, 0.0
        %v981 = vmax.f32 %v917, 0.0
        %v982 = vmax.f32 %v922, 0.0
        %v983 = vmax.f32 %v925, 0.0
        %v984 = vmax.f32 %v930, 0.0
        %v985 = vmax.f32 %v933, 0.0
        %v986 = vmax.f32 %v938, 0.0
        %v987 = vmax.f32 %v941, 0.0
        %v988 = vmax.f32 %v946, 0.0
        %v989 = vmax.f32 %v949, 0.0
        %v990 = vmax.f32 %v954, 0.0
        %v991 = vmax.f32 %v957, 0.0
        %v992 = vpack.c.bf16 %v961, %v960
        %v993 = vpack.c.bf16 %v963, %v962
        %v994 = vpack.c.bf16 %v965, %v964
        %v995 = vpack.c.bf16 %v967, %v966
        %v996 = vpack.c.bf16 %v969, %v968
        %v997 = vpack.c.bf16 %v971, %v970
        %v998 = vpack.c.bf16 %v973, %v972
        %v999 = vpack.c.bf16 %v975, %v974
        %v1000 = vpack.c.bf16 %v977, %v976
        %v1001 = vpack.c.bf16 %v979, %v978
        %v1002 = vpack.c.bf16 %v981, %v980
        %v1003 = vpack.c.bf16 %v983, %v982
        %v1004 = vpack.c.bf16 %v985, %v984
        %v1005 = vpack.c.bf16 %v987, %v986
        %v1006 = vpack.c.bf16 %v989, %v988
        %v1007 = vpack.c.bf16 %v991, %v990
        %v1008 = vld [vmem:[#allocation7] sm:$0xf]
        %v1009 = vld [vmem:[#allocation7 + $0x4] sm:$0xf]
        %v1010 = vld [vmem:[#allocation7 + $0x8] sm:$0xf]
        %v1011 = vld [vmem:[#allocation7 + $0xc] sm:$0xf]
        %v1012 = vld [vmem:[#allocation7 + $0x10] sm:$0xf]
        %v1013 = vld [vmem:[#allocation7 + $0x14] sm:$0xf]
        %v1014 = vld [vmem:[#allocation7 + $0x18] sm:$0xf]
        %v1015 = vld [vmem:[#allocation7 + $0x1c] sm:$0xf]
        %v1016 = vld [vmem:[#allocation7 + $0x20] sm:$0xf]
        %v1017 = vld [vmem:[#allocation7 + $0x24] sm:$0xf]
        %v1018 = vld [vmem:[#allocation7 + $0x28] sm:$0xf]
        %v1019 = vld [vmem:[#allocation7 + $0x2c] sm:$0xf]
        %v1020 = vld [vmem:[#allocation8] sm:$0x1]
        %v1022 = vlaneseq
        %v1023 = vshrl.u32 %v1022, 7
        %v1024 = vsub.s32 0, %v1023
        %v1025 = vrot.slane %v1020, %v1024
        %v1039 = vunpack.c.l.b16 %v1008
        %v1040 = vunpack.c.l.b16 %v1009
        %v1041 = vunpack.c.l.b16 %v1010
        %v1042 = vunpack.c.l.b16 %v1011
        %v1043 = vunpack.c.l.b16 %v1012
        %v1044 = vunpack.c.l.b16 %v1013
        %v1045 = vunpack.c.l.b16 %v1014
        %v1046 = vunpack.c.l.b16 %v1015
        %v1047 = vunpack.c.l.b16 %v1016
        %v1048 = vunpack.c.l.b16 %v1017
        %v1049 = vunpack.c.l.b16 %v1018
        %v1050 = vunpack.c.l.b16 %v1019
        %v1051 = vpack.c.b16 %v1040, %v1039
        %v1052 = vpack.c.b16 %v1042, %v1041
        %v1053 = vpack.c.b16 %v1044, %v1043
        %v1054 = vpack.c.b16 %v1046, %v1045
        %v1055 = vpack.c.b16 %v1048, %v1047
        %v1056 = vpack.c.b16 %v1050, %v1049
        %vm1063 = vcmask 785408
        %v1065 = vsel %vm1063, %v992, 0
        %v1068 = vsel %vm1063, %v993, 0
        %v1071 = vsel %vm1063, %v994, 0
        %v1074 = vsel %vm1063, %v995, 0
        %v1077 = vsel %vm1063, %v996, 0
        %v1080 = vsel %vm1063, %v997, 0
        %v1083 = vsel %vm1063, %v998, 0
        %v1086 = vsel %vm1063, %v999, 0
        %v1089 = vsel %vm1063, %v1000, 0
        %v1092 = vsel %vm1063, %v1001, 0
        %v1095 = vsel %vm1063, %v1002, 0
        %v1098 = vsel %vm1063, %v1003, 0
        %v1101 = vsel %vm1063, %v1004, 0
        %v1104 = vsel %vm1063, %v1005, 0
        %v1107 = vsel %vm1063, %v1006, 0
        %v1110 = vsel %vm1063, %v1007, 0
        %1112 = vmatprep.subr.bf16.mxu0 0
        %1113 = vmatpush1.bf16.msra.mxu0 %v1051
        %1114 = vmatprep.subr.bf16.mxu0 0
        %1115 = vmatpush1.bf16.msra.mxu0 %v1052
        %1116 = vmatprep.subr.bf16.mxu0 0
        %1117 = vmatpush1.bf16.msra.mxu0 %v1053
        %1118 = vmatprep.subr.bf16.mxu0 0
        %1119 = vmatpush1.bf16.msra.mxu0 %v1054
        %1120 = vmatprep.subr.bf16.mxu0 0
        %1121 = vmatpush1.bf16.msra.mxu0 %v1055
        %1122 = vmatprep.subr.bf16.mxu0 0
        %1123 = vmatpush1.bf16.msra.mxu0 %v1056
        %1124 = vmatprep.subr.bf16.mxu0 0
        %1125 = vmatpush1.bf16.msra.mxu0 0
        %1126 = vmatprep.subr.bf16.mxu0 0
        %1127 = vmatpush1.bf16.msra.mxu0 0
        %1128 = vmatprep.subr.bf16.mxu0 0
        %1129 = vmatpush1.bf16.msra.mxu0 0
        %1130 = vmatprep.subr.bf16.mxu0 0
        %1131 = vmatpush1.bf16.msra.mxu0 0
        %1132 = vmatprep.subr.bf16.mxu0 0
        %1133 = vmatpush1.bf16.msra.mxu0 0
        %1134 = vmatprep.subr.bf16.mxu0 0
        %1135 = vmatpush1.bf16.msra.mxu0 0
        %1136 = vmatprep.subr.bf16.mxu0 0
        %1137 = vmatpush1.bf16.msra.mxu0 0
        %1138 = vmatprep.subr.bf16.mxu0 0
        %1139 = vmatpush1.bf16.msra.mxu0 0
        %1140 = vmatprep.subr.bf16.mxu0 0
        %1141 = vmatpush1.bf16.msra.mxu0 0
        %1142 = vmatprep.subr.bf16.mxu0 0
        %1143 = vmatpush1.bf16.msra.mxu0 0
        %1144 = vmatprep.mubr.bf16.mxu0 0
        %1145 = vmatmul.mubr.bf16.gmra.mrb[0].mxu0 %v1065
        %v1146 = vpop.f32.mrb[0].mxu0
        %v1147 = vadd.f32 %v1025, %v1146
        %v1148 = vpop.f32.mrb[0].mxu0
        %v1149 = vpop.f32.mrb[0].mxu0
        %v1150 = vadd.f32 %v1025, %v1149
        %v1151 = vpop.f32.mrb[0].mxu0
        %1152 = vmatprep.mubr.bf16.mxu0 0
        %1153 = vmatmul.mubr.bf16.gmra.mrb[0].mxu0 %v1068
        %v1154 = vpop.f32.mrb[0].mxu0
        %v1155 = vadd.f32 %v1025, %v1154
        %v1156 = vpop.f32.mrb[0].mxu0
        %v1157 = vpop.f32.mrb[0].mxu0
        %v1158 = vadd.f32 %v1025, %v1157
        %v1159 = vpop.f32.mrb[0].mxu0
        %1160 = vmatprep.mubr.bf16.mxu0 0
        %1161 = vmatmul.mubr.bf16.gmra.mrb[0].mxu0 %v1071
        %v1162 = vpop.f32.mrb[0].mxu0
        %v1163 = vadd.f32 %v1025, %v1162
        %v1164 = vpop.f32.mrb[0].mxu0
        %v1165 = vpop.f32.mrb[0].mxu0
        %v1166 = vadd.f32 %v1025, %v1165
        %v1167 = vpop.f32.mrb[0].mxu0
        %1168 = vmatprep.mubr.bf16.mxu0 0
        %1169 = vmatmul.mubr.bf16.gmra.mrb[0].mxu0 %v1074
        %v1170 = vpop.f32.mrb[0].mxu0
        %v1171 = vadd.f32 %v1025, %v1170
        %v1172 = vpop.f32.mrb[0].mxu0
        %v1173 = vpop.f32.mrb[0].mxu0
        %v1174 = vadd.f32 %v1025, %v1173
        %v1175 = vpop.f32.mrb[0].mxu0
        %1176 = vmatprep.mubr.bf16.mxu0 0
        %1177 = vmatmul.mubr.bf16.gmra.mrb[0].mxu0 %v1077
        %v1178 = vpop.f32.mrb[0].mxu0
        %v1179 = vadd.f32 %v1025, %v1178
        %v1180 = vpop.f32.mrb[0].mxu0
        %v1181 = vpop.f32.mrb[0].mxu0
        %v1182 = vadd.f32 %v1025, %v1181
        %v1183 = vpop.f32.mrb[0].mxu0
        %1184 = vmatprep.mubr.bf16.mxu0 0
        %1185 = vmatmul.mubr.bf16.gmra.mrb[0].mxu0 %v1080
        %v1186 = vpop.f32.mrb[0].mxu0
        %v1187 = vadd.f32 %v1025, %v1186
        %v1188 = vpop.f32.mrb[0].mxu0
        %v1189 = vpop.f32.mrb[0].mxu0
        %v1190 = vadd.f32 %v1025, %v1189
        %v1191 = vpop.f32.mrb[0].mxu0
        %1192 = vmatprep.mubr.bf16.mxu0 0
        %1193 = vmatmul.mubr.bf16.gmra.mrb[0].mxu0 %v1083
        %v1194 = vpop.f32.mrb[0].mxu0
        %v1195 = vadd.f32 %v1025, %v1194
        %v1196 = vpop.f32.mrb[0].mxu0
        %v1197 = vpop.f32.mrb[0].mxu0
        %v1198 = vadd.f32 %v1025, %v1197
        %v1199 = vpop.f32.mrb[0].mxu0
        %1200 = vmatprep.mubr.bf16.mxu0 0
        %1201 = vmatmul.mubr.bf16.gmra.mrb[0].mxu0 %v1086
        %v1202 = vpop.f32.mrb[0].mxu0
        %v1203 = vadd.f32 %v1025, %v1202
        %v1204 = vpop.f32.mrb[0].mxu0
        %v1205 = vpop.f32.mrb[0].mxu0
        %v1206 = vadd.f32 %v1025, %v1205
        %v1207 = vpop.f32.mrb[0].mxu0
        %1208 = vmatprep.mubr.bf16.mxu0 0
        %1209 = vmatmul.mubr.bf16.gmra.mrb[0].mxu0 %v1089
        %v1210 = vpop.f32.mrb[0].mxu0
        %v1211 = vadd.f32 %v1025, %v1210
        %v1212 = vpop.f32.mrb[0].mxu0
        %v1213 = vpop.f32.mrb[0].mxu0
        %v1214 = vadd.f32 %v1025, %v1213
        %v1215 = vpop.f32.mrb[0].mxu0
        %1216 = vmatprep.mubr.bf16.mxu0 0
        %1217 = vmatmul.mubr.bf16.gmra.mrb[0].mxu0 %v1092
        %v1218 = vpop.f32.mrb[0].mxu0
        %v1219 = vadd.f32 %v1025, %v1218
        %v1220 = vpop.f32.mrb[0].mxu0
        %v1221 = vpop.f32.mrb[0].mxu0
        %v1222 = vadd.f32 %v1025, %v1221
        %v1223 = vpop.f32.mrb[0].mxu0
        %1224 = vmatprep.mubr.bf16.mxu0 0
        %1225 = vmatmul.mubr.bf16.gmra.mrb[0].mxu0 %v1095
        %v1226 = vpop.f32.mrb[0].mxu0
        %v1227 = vadd.f32 %v1025, %v1226
        %v1228 = vpop.f32.mrb[0].mxu0
        %v1229 = vpop.f32.mrb[0].mxu0
        %v1230 = vadd.f32 %v1025, %v1229
        %v1231 = vpop.f32.mrb[0].mxu0
        %1232 = vmatprep.mubr.bf16.mxu0 0
        %1233 = vmatmul.mubr.bf16.gmra.mrb[0].mxu0 %v1098
        %v1234 = vpop.f32.mrb[0].mxu0
        %v1235 = vadd.f32 %v1025, %v1234
        %v1236 = vpop.f32.mrb[0].mxu0
        %v1237 = vpop.f32.mrb[0].mxu0
        %v1238 = vadd.f32 %v1025, %v1237
        %v1239 = vpop.f32.mrb[0].mxu0
        %1240 = vmatprep.mubr.bf16.mxu0 0
        %1241 = vmatmul.mubr.bf16.gmra.mrb[0].mxu0 %v1101
        %v1242 = vpop.f32.mrb[0].mxu0
        %v1243 = vadd.f32 %v1025, %v1242
        %v1244 = vpop.f32.mrb[0].mxu0
        %v1245 = vpop.f32.mrb[0].mxu0
        %v1246 = vadd.f32 %v1025, %v1245
        %v1247 = vpop.f32.mrb[0].mxu0
        %1248 = vmatprep.mubr.bf16.mxu0 0
        %1249 = vmatmul.mubr.bf16.gmra.mrb[0].mxu0 %v1104
        %v1250 = vpop.f32.mrb[0].mxu0
        %v1251 = vadd.f32 %v1025, %v1250
        %v1252 = vpop.f32.mrb[0].mxu0
        %v1253 = vpop.f32.mrb[0].mxu0
        %v1254 = vadd.f32 %v1025, %v1253
        %v1255 = vpop.f32.mrb[0].mxu0
        %1256 = vmatprep.mubr.bf16.mxu0 0
        %1257 = vmatmul.mubr.bf16.gmra.mrb[0].mxu0 %v1107
        %v1258 = vpop.f32.mrb[0].mxu0
        %v1259 = vadd.f32 %v1025, %v1258
        %v1260 = vpop.f32.mrb[0].mxu0
        %v1261 = vpop.f32.mrb[0].mxu0
        %v1262 = vadd.f32 %v1025, %v1261
        %v1263 = vpop.f32.mrb[0].mxu0
        %1264 = vmatprep.mubr.bf16.mxu0 0
        %1265 = vmatmul.mubr.bf16.gmra.mrb[0].mxu0 %v1110
        %v1266 = vpop.f32.mrb[0].mxu0
        %v1267 = vadd.f32 %v1025, %v1266
        %v1268 = vpop.f32.mrb[0].mxu0
        %v1269 = vpop.f32.mrb[0].mxu0
        %v1270 = vadd.f32 %v1025, %v1269
        %v1271 = vpop.f32.mrb[0].mxu0
        %1272 = vdwg.mxu0
        %vm1273 = vcmask 64512
        %1274 = vst.msk [vmem:[%s374] sm:$0xff] %vm1273, %v1147
        %1275 = vst.msk [vmem:[%s374 + $0x8] sm:$0xff] %vm1273, %v1150
        %1276 = vst.msk [vmem:[%s374 + $0x10] sm:$0xff] %vm1273, %v1155
        %1277 = vst.msk [vmem:[%s374 + $0x18] sm:$0xff] %vm1273, %v1158
        %1278 = vst.msk [vmem:[%s374 + $0x20] sm:$0xff] %vm1273, %v1163
        %1279 = vst.msk [vmem:[%s374 + $0x28] sm:$0xff] %vm1273, %v1166
        %1280 = vst.msk [vmem:[%s374 + $0x30] sm:$0xff] %vm1273, %v1171
        %1281 = vst.msk [vmem:[%s374 + $0x38] sm:$0xff] %vm1273, %v1174
        %1282 = vst.msk [vmem:[%s374 + $0x40] sm:$0xff] %vm1273, %v1179
        %1283 = vst.msk [vmem:[%s374 + $0x48] sm:$0xff] %vm1273, %v1182
        %1284 = vst.msk [vmem:[%s374 + $0x50] sm:$0xff] %vm1273, %v1187
        %1285 = vst.msk [vmem:[%s374 + $0x58] sm:$0xff] %vm1273, %v1190
        %1286 = vst.msk [vmem:[%s374 + $0x60] sm:$0xff] %vm1273, %v1195
        %1287 = vst.msk [vmem:[%s374 + $0x68] sm:$0xff] %vm1273, %v1198
        %1288 = vst.msk [vmem:[%s374 + $0x70] sm:$0xff] %vm1273, %v1203
        %1289 = vst.msk [vmem:[%s374 + $0x78] sm:$0xff] %vm1273, %v1206
        %1290 = vst.msk [vmem:[%s374 + $0x80] sm:$0xff] %vm1273, %v1211
        %1291 = vst.msk [vmem:[%s374 + $0x88] sm:$0xff] %vm1273, %v1214
        %1292 = vst.msk [vmem:[%s374 + $0x90] sm:$0xff] %vm1273, %v1219
        %1293 = vst.msk [vmem:[%s374 + $0x98] sm:$0xff] %vm1273, %v1222
        %1294 = vst.msk [vmem:[%s374 + $0xa0] sm:$0xff] %vm1273, %v1227
        %1295 = vst.msk [vmem:[%s374 + $0xa8] sm:$0xff] %vm1273, %v1230
        %1296 = vst.msk [vmem:[%s374 + $0xb0] sm:$0xff] %vm1273, %v1235
        %1297 = vst.msk [vmem:[%s374 + $0xb8] sm:$0xff] %vm1273, %v1238
        %1298 = vst.msk [vmem:[%s374 + $0xc0] sm:$0xff] %vm1273, %v1243
        %1299 = vst.msk [vmem:[%s374 + $0xc8] sm:$0xff] %vm1273, %v1246
        %1300 = vst.msk [vmem:[%s374 + $0xd0] sm:$0xff] %vm1273, %v1251
        %1301 = vst.msk [vmem:[%s374 + $0xd8] sm:$0xff] %vm1273, %v1254
        %1302 = vst.msk [vmem:[%s374 + $0xe0] sm:$0xff] %vm1273, %v1259
        %1303 = vst.msk [vmem:[%s374 + $0xe8] sm:$0xff] %vm1273, %v1262
        %1304 = vst.msk [vmem:[%s374 + $0xf0] sm:$0xff] %vm1273, %v1267
        %1305 = vst.msk [vmem:[%s374 + $0xf8] sm:$0xff] %vm1273, %v1270
        %s1306 = sand.u32 %s186, 1
        %s1307 = scalar_lea.sflag [#allocation4], %s1306
        %s1308 = sand.u32 %s186, 1
        %s1309 = smul.addr %s1308, 256
        %s1310 = scalar_lea.vmem [#allocation10], %s1309
        %s1311 = smul.u32 32, %s26
        %p1312 = scmp.lt.s32.totalorder %s1311, 63
        %s1313 = scalar_select %p1312, %s1311, 63
        %s1314 = smul.addr %s1313, 8
        %s1315 = scalar_lea.vmem %s8, %s1314
        // Predicated region
        $region65: #{forward.3} parent=47 // pred_check
          %p1316 = pneg %p196
        $region66: #{forward.3} parent=47 // pred_check_branch
          %1318 = sbr.rel (%p1316) target = $region68
        $region67: #{forward.3} parent=47 // pred_region
          %s1319 = smul.u32 32, %s26
          %s1321 = ssub.s32 4096, 4096
          %1322 = vsyncadd %s1307, %s1321
          %s1323 = smul.addr %s1319, 128
          %s1324 = scalar_lea.hbm %s7, %s1323
          %s1325 = sshll.u32 %s1310, 4
          %s1326 = int_to_ptr.vmem [resolvable:$true] %s1325
          %1331 = dma.vmem_to_hbm [thread:$0]  %s1326, 4096, %s1324, %s1307, 128, 128, 8
        $region68: #{forward.3} parent=47 // pred_fallthru
          _
        // Predicated region
        $region69: #{forward.3} parent=47 // pred_check
          %p1332 = pneg %p222
        $region70: #{forward.3} parent=47 // pred_check_branch
          %1334 = sbr.rel (%p1332) target = $region72
        $region71: #{forward.3} parent=47 // pred_region
          %s1335 = smul.u32 32, %s26
        $region72: #{forward.3} parent=47 // pred_fallthru
          _
      $region48: #{forward.3} parent=5 // pred_fallthru
        _
      %p1336 = scmp.le.s32.totalorder 2, %s21
      // Predicated region
      $region73: #{forward.3} parent=5 // pred_check
        %p1337 = pneg %p1336
      $region74: #{forward.3} parent=5 // pred_check_branch
        %1339 = sbr.rel (%p1337) target = $region76
      $region75: #{forward.3} parent=5 // pred_region
        %s1340 = ssub.s32 %s21, 2
        // Predicated region
        $region77: #{forward.3} parent=75 // pred_check
          %p1341 = pneg %p202
        $region78: #{forward.3} parent=75 // pred_check_branch
          %1343 = sbr.rel (%p1341) target = $region80
        $region79: #{forward.3} parent=75 // pred_region
          %s1344 = sand.u32 %s187, 1
          %s1345 = scalar_lea.sflag [#allocation4], %s1344
          %s1346 = sand.u32 %s187, 1
          %s1347 = smul.addr %s1346, 256
          %s1348 = scalar_lea.vmem [#allocation10], %s1347
          %1349 = dma.done %s1345, 4096
        $region80: #{forward.3} parent=75 // pred_fallthru
          _
        // Predicated region
        $region81: #{forward.3} parent=75 // pred_check
          %p1350 = pneg %p228
        $region82: #{forward.3} parent=75 // pred_check_branch
          %1352 = sbr.rel (%p1350) target = $region84
        $region83: #{forward.3} parent=75 // pred_region
          %s1353 = smul.u32 32, %s27
          %p1354 = scmp.lt.s32.totalorder %s1353, 63
          %s1355 = scalar_select %p1354, %s1353, 63
          %s1356 = smul.addr %s1355, 8
          %s1357 = scalar_lea.vmem %s8, %s1356
        $region84: #{forward.3} parent=75 // pred_fallthru
          _
      $region76: #{forward.3} parent=5 // pred_fallthru
        _
    $region6: #{forward.3} parent=1 // loop_footer
      %s25 = sadd.s32 1, %s21
    $region7: #{forward.3} parent=1 // loop_footer_branch
      %20 = sbr.rel target = $region3
    $region8: #{forward.3} parent=1 // loop_exit
      _
    %1358 = vsyncpa [#allocation3], 1
    %s1359 = scalar_lea.sflag [#allocation3], 1
    %1360 = vsyncpa %s1359, 1
    %1361 = vsyncpa [#allocation6], 1
    %1362 = vsyncpa [#allocation9], 1
    %1363 = vsyncpa [#allocation4], 1
    %s1364 = scalar_lea.sflag [#allocation4], 1
    %1365 = vsyncpa %s1364, 1

// kernel: forward.4
$region0: #{forward.4}
  #allocation0 [shape = 'u32[]', space=smem, size = 0x4, offset = 0x4, fixed_abs, tag = 'smem constant byte address 0x4 - core index']
  #allocation1 [shape = 'u32[144,128]{1,0:T(1,128)}', space=vmem, size = 0x12000, scoped, tag = 'internal scratch']
  %s0 = inlined_call_operand.vmem [shape: f32[512,4], index: 0, kind: input, shape index: {}]
  %s1 = inlined_call_operand.hbm [shape: bf16[4,32], index: 1, kind: input, shape index: {}]
  %s2 = inlined_call_operand.vmem [shape: f32[1,32], index: 2, kind: input, shape index: {}]
  %s3 = inlined_call_operand.hbm [shape: bf16[32,96], index: 3, kind: input, shape index: {}]
  %s4 = inlined_call_operand.vmem [shape: f32[1,96], index: 4, kind: input, shape index: {}]
  %s5 = inlined_call_operand.hbm [shape: bf16[96,8], index: 5, kind: input, shape index: {}]
  %s6 = inlined_call_operand.hbm [shape: f32[1,8], index: 6, kind: input, shape index: {}]
  %s7 = inlined_call_operand.vmem [shape: f32[512,32], index: 7, kind: output, shape index: {0}]
  %s8 = inlined_call_operand.vmem [shape: f32[512,8], index: 8, kind: output, shape index: {1}]
  %9 = xla_tuple %s7, %s8
  %s10 = sld [smem:[#allocation0]]
  $region85: #{forward.4} parent=0
    _
  %s12 = ssub.s32 1, %s10
  %s13 = scalar_select 0, %s12, %s10
  $region1: #{forward.4} parent=0
    #allocation2 [shape = 'u8[1024]{0}', space=vmem, size = 0x400, scoped, tag = 'input window, operand 1, single buffered']
    #allocation3 [shape = 's32[2]{0}', space=sflag, size = 0x8, scoped, tag = 'scoped memory for forward.4']
    #allocation4 [shape = 'u8[8192]{0}', space=vmem, size = 0x2000, scoped, tag = 'input window, operand 3, single buffered']
    #allocation5 [shape = 's32[1]{0}', space=sflag, size = 0x4, scoped, tag = 'scoped memory for forward.4']
    #allocation6 [shape = 'u8[24576]{0}', space=vmem, size = 0x6000, scoped, tag = 'input window, operand 5, single buffered']
    #allocation7 [shape = 'u8[512]{0}', space=vmem, size = 0x400, scoped, tag = 'input window, operand 6, single buffered']
    #allocation8 [shape = 's32[1]{0}', space=sflag, size = 0x4, scoped, tag = 'scoped memory for forward.4']
    %14 = vsyncpa [#allocation3], 0
    %15 = vsyncpa [#allocation5], 0
    %16 = vsyncpa [#allocation8], 0
    loop: start=0, step=1, limit=4
    $region2: #{forward.4} parent=1 // loop_pre_header
      _
    $region3: #{forward.4} parent=1 // loop_header
      %s18 = sphi 0, %s22
      %p19 = scmp.ge.s32.totalorder %s18, 4
      %s28 = sphi 0, %s30
      %s31 = sphi 0, %s28
      %s32 = sphi 0, %s31
      %s48 = sphi 0, %s32
      %s52 = sphi 0, %s52
      %s54 = sphi 0, %s52
      %s55 = sphi 0, %s54
      %s69 = sphi 0, %s55
      %s73 = sphi 0, %s73
      %s75 = sphi 0, %s73
      %s76 = sphi 0, %s75
      %s90 = sphi 0, %s76
      %s94 = sphi 0, %s94
      %s96 = sphi 0, %s94
      %s97 = sphi 0, %s96
      %s111 = sphi 0, %s97
      %s115 = sphi 0, %s115
      %s117 = sphi 0, %s115
      %s118 = sphi 0, %s117
      %s132 = sphi 0, %s118
      %s136 = sphi 0, %s136
      %s138 = sphi 0, %s136
      %s139 = sphi 0, %s138
      %s153 = sphi 0, %s139
      %s157 = sphi 0, %s157
      %s159 = sphi 0, %s157
      %s160 = sphi 0, %s159
      %s174 = sphi 0, %s160
      %s180 = sphi 0, %s182
      %s183 = sphi 0, %s180
      %s184 = sphi 0, %s183
      %s200 = sphi 0, %s184
      %s206 = sphi 0, %s208
      %s209 = sphi 0, %s206
      %s210 = sphi 0, %s209
      %s226 = sphi 0, %s210
    $region4: #{forward.4} parent=1 // loop_header_branch
      %21 = sbr.rel (%p19) target = $region8
    $region5: #{forward.4} parent=1 // loop_body
      %s23 = ssub.s32 %s18, 1
      %s24 = ssub.s32 %s18, 2
      %s25 = sadd.s32 %s18, 1
      %s26 = ssub.s32 %s18, %s25
      %p27 = scmp.eq.s32.totalorder %s26, 0
      %s29 = sadd.s32 %s28, 1
      %s30 = scalar_select %p27, %s28, %s29
      %p33 = pneg %p27
      %p34 = scmp.eq.s32.totalorder %s18, 1
      %p35 = por %p33, %p34
      %p36 = scmp.ne.s32.totalorder %s28, %s31
      %p37 = scmp.eq.s32.totalorder %s18, 0
      %p38 = por %p36, %p37
      %p39 = scmp.ne.s32.totalorder %s28, %s31
      %p40 = scmp.eq.s32.totalorder %s23, 1
      %p41 = por %p39, %p40
      %p42 = scmp.ne.s32.totalorder %s31, %s32
      %p43 = scmp.eq.s32.totalorder %s23, 0
      %p44 = por %p42, %p43
      %p45 = scmp.ne.s32.totalorder %s31, %s32
      %p46 = scmp.eq.s32.totalorder %s24, 1
      %p47 = por %p45, %p46
      %p49 = scmp.ne.s32.totalorder %s32, %s48
      %p50 = scmp.eq.s32.totalorder %s24, 0
      %p51 = por %p49, %p50
      %s53 = sadd.s32 %s52, 1
      %p56 = scmp.eq.s32.totalorder %s18, 1
      %p57 = scmp.ne.s32.totalorder %s52, %s54
      %p58 = scmp.eq.s32.totalorder %s18, 0
      %p59 = por %p57, %p58
      %p60 = scmp.ne.s32.totalorder %s52, %s54
      %p61 = scmp.eq.s32.totalorder %s23, 1
      %p62 = por %p60, %p61
      %p63 = scmp.ne.s32.totalorder %s54, %s55
      %p64 = scmp.eq.s32.totalorder %s23, 0
      %p65 = por %p63, %p64
      %p66 = scmp.ne.s32.totalorder %s54, %s55
      %p67 = scmp.eq.s32.totalorder %s24, 1
      %p68 = por %p66, %p67
      %p70 = scmp.ne.s32.totalorder %s55, %s69
      %p71 = scmp.eq.s32.totalorder %s24, 0
      %p72 = por %p70, %p71
      %s74 = sadd.s32 %s73, 1
      %p77 = scmp.eq.s32.totalorder %s18, 1
      %p78 = scmp.ne.s32.totalorder %s73, %s75
      %p79 = scmp.eq.s32.totalorder %s18, 0
      %p80 = por %p78, %p79
      %p81 = scmp.ne.s32.totalorder %s73, %s75
      %p82 = scmp.eq.s32.totalorder %s23, 1
      %p83 = por %p81, %p82
      %p84 = scmp.ne.s32.totalorder %s75, %s76
      %p85 = scmp.eq.s32.totalorder %s23, 0
      %p86 = por %p84, %p85
      %p87 = scmp.ne.s32.totalorder %s75, %s76
      %p88 = scmp.eq.s32.totalorder %s24, 1
      %p89 = por %p87, %p88
      %p91 = scmp.ne.s32.totalorder %s76, %s90
      %p92 = scmp.eq.s32.totalorder %s24, 0
      %p93 = por %p91, %p92
      %s95 = sadd.s32 %s94, 1
      %p98 = scmp.eq.s32.totalorder %s18, 1
      %p99 = scmp.ne.s32.totalorder %s94, %s96
      %p100 = scmp.eq.s32.totalorder %s18, 0
      %p101 = por %p99, %p100
      %p102 = scmp.ne.s32.totalorder %s94, %s96
      %p103 = scmp.eq.s32.totalorder %s23, 1
      %p104 = por %p102, %p103
      %p105 = scmp.ne.s32.totalorder %s96, %s97
      %p106 = scmp.eq.s32.totalorder %s23, 0
      %p107 = por %p105, %p106
      %p108 = scmp.ne.s32.totalorder %s96, %s97
      %p109 = scmp.eq.s32.totalorder %s24, 1
      %p110 = por %p108, %p109
      %p112 = scmp.ne.s32.totalorder %s97, %s111
      %p113 = scmp.eq.s32.totalorder %s24, 0
      %p114 = por %p112, %p113
      %s116 = sadd.s32 %s115, 1
      %p119 = scmp.eq.s32.totalorder %s18, 1
      %p120 = scmp.ne.s32.totalorder %s115, %s117
      %p121 = scmp.eq.s32.totalorder %s18, 0
      %p122 = por %p120, %p121
      %p123 = scmp.ne.s32.totalorder %s115, %s117
      %p124 = scmp.eq.s32.totalorder %s23, 1
      %p125 = por %p123, %p124
      %p126 = scmp.ne.s32.totalorder %s117, %s118
      %p127 = scmp.eq.s32.totalorder %s23, 0
      %p128 = por %p126, %p127
      %p129 = scmp.ne.s32.totalorder %s117, %s118
      %p130 = scmp.eq.s32.totalorder %s24, 1
      %p131 = por %p129, %p130
      %p133 = scmp.ne.s32.totalorder %s118, %s132
      %p134 = scmp.eq.s32.totalorder %s24, 0
      %p135 = por %p133, %p134
      %s137 = sadd.s32 %s136, 1
      %p140 = scmp.eq.s32.totalorder %s18, 1
      %p141 = scmp.ne.s32.totalorder %s136, %s138
      %p142 = scmp.eq.s32.totalorder %s18, 0
      %p143 = por %p141, %p142
      %p144 = scmp.ne.s32.totalorder %s136, %s138
      %p145 = scmp.eq.s32.totalorder %s23, 1
      %p146 = por %p144, %p145
      %p147 = scmp.ne.s32.totalorder %s138, %s139
      %p148 = scmp.eq.s32.totalorder %s23, 0
      %p149 = por %p147, %p148
      %p150 = scmp.ne.s32.totalorder %s138, %s139
      %p151 = scmp.eq.s32.totalorder %s24, 1
      %p152 = por %p150, %p151
      %p154 = scmp.ne.s32.totalorder %s139, %s153
      %p155 = scmp.eq.s32.totalorder %s24, 0
      %p156 = por %p154, %p155
      %s158 = sadd.s32 %s157, 1
      %p161 = scmp.eq.s32.totalorder %s18, 1
      %p162 = scmp.ne.s32.totalorder %s157, %s159
      %p163 = scmp.eq.s32.totalorder %s18, 0
      %p164 = por %p162, %p163
      %p165 = scmp.ne.s32.totalorder %s157, %s159
      %p166 = scmp.eq.s32.totalorder %s23, 1
      %p167 = por %p165, %p166
      %p168 = scmp.ne.s32.totalorder %s159, %s160
      %p169 = scmp.eq.s32.totalorder %s23, 0
      %p170 = por %p168, %p169
      %p171 = scmp.ne.s32.totalorder %s159, %s160
      %p172 = scmp.eq.s32.totalorder %s24, 1
      %p173 = por %p171, %p172
      %p175 = scmp.ne.s32.totalorder %s160, %s174
      %p176 = scmp.eq.s32.totalorder %s24, 0
      %p177 = por %p175, %p176
      %s178 = ssub.s32 %s18, %s25
      %p179 = scmp.eq.s32.totalorder %s178, 0
      %s181 = sadd.s32 %s180, 1
      %s182 = scalar_select %p179, %s180, %s181
      %p185 = pneg %p179
      %p186 = scmp.eq.s32.totalorder %s18, 1
      %p187 = por %p185, %p186
      %p188 = scmp.ne.s32.totalorder %s180, %s183
      %p189 = scmp.eq.s32.totalorder %s18, 0
      %p190 = por %p188, %p189
      %p191 = scmp.ne.s32.totalorder %s180, %s183
      %p192 = scmp.eq.s32.totalorder %s23, 1
      %p193 = por %p191, %p192
      %p194 = scmp.ne.s32.totalorder %s183, %s184
      %p195 = scmp.eq.s32.totalorder %s23, 0
      %p196 = por %p194, %p195
      %p197 = scmp.ne.s32.totalorder %s183, %s184
      %p198 = scmp.eq.s32.totalorder %s24, 1
      %p199 = por %p197, %p198
      %p201 = scmp.ne.s32.totalorder %s184, %s200
      %p202 = scmp.eq.s32.totalorder %s24, 0
      %p203 = por %p201, %p202
      %s204 = ssub.s32 %s18, %s25
      %p205 = scmp.eq.s32.totalorder %s204, 0
      %s207 = sadd.s32 %s206, 1
      %s208 = scalar_select %p205, %s206, %s207
      %p211 = pneg %p205
      %p212 = scmp.eq.s32.totalorder %s18, 1
      %p213 = por %p211, %p212
      %p214 = scmp.ne.s32.totalorder %s206, %s209
      %p215 = scmp.eq.s32.totalorder %s18, 0
      %p216 = por %p214, %p215
      %p217 = scmp.ne.s32.totalorder %s206, %s209
      %p218 = scmp.eq.s32.totalorder %s23, 1
      %p219 = por %p217, %p218
      %p220 = scmp.ne.s32.totalorder %s209, %s210
      %p221 = scmp.eq.s32.totalorder %s23, 0
      %p222 = por %p220, %p221
      %p223 = scmp.ne.s32.totalorder %s209, %s210
      %p224 = scmp.eq.s32.totalorder %s24, 1
      %p225 = por %p223, %p224
      %p227 = scmp.ne.s32.totalorder %s210, %s226
      %p228 = scmp.eq.s32.totalorder %s24, 0
      %p229 = por %p227, %p228
      %p230 = scmp.le.s32.totalorder 1, %s18
      %p231 = scmp.lt.s32.totalorder %s18, 3
      %p232 = pnand %p230, %p231
      %p233 = pneg %p232
      // Predicated region
      $region9: #{forward.4} parent=5 // pred_check
        _
      $region10: #{forward.4} parent=5 // pred_check_branch
        %235 = sbr.rel (%p232) target = $region12
      $region11: #{forward.4} parent=5 // pred_region
        %s236 = ssub.s32 %s18, 1
        // Predicated region
        $region13: #{forward.4} parent=11 // pred_check
          %p237 = pneg %p65
        $region14: #{forward.4} parent=11 // pred_check_branch
          %239 = sbr.rel (%p237) target = $region16
        $region15: #{forward.4} parent=11 // pred_region
          %s241 = ssub.s32 32, 32
          %242 = vsyncadd [#allocation3], %s241
          %s244 = sshll.u32 [#allocation2], 4
          %s245 = int_to_ptr.vmem [resolvable:$true] %s244
          %247 = dma.hbm_to_vmem [thread:$0]  %s1, 32, %s245, [#allocation3]
        $region16: #{forward.4} parent=11 // pred_fallthru
          _
        // Predicated region
        $region17: #{forward.4} parent=11 // pred_check
          %p248 = pneg %p86
        $region18: #{forward.4} parent=11 // pred_check_branch
          %250 = sbr.rel (%p248) target = $region20
        $region19: #{forward.4} parent=11 // pred_region
          _
        $region20: #{forward.4} parent=11 // pred_fallthru
          _
        // Predicated region
        $region21: #{forward.4} parent=11 // pred_check
          %p251 = pneg %p107
        $region22: #{forward.4} parent=11 // pred_check_branch
          %253 = sbr.rel (%p251) target = $region24
        $region23: #{forward.4} parent=11 // pred_region
          %s255 = ssub.s32 256, 256
          %256 = vsyncadd [#allocation5], %s255
          %s257 = sshll.u32 [#allocation4], 4
          %s258 = int_to_ptr.vmem [resolvable:$true] %s257
          %263 = dma.hbm_to_vmem [thread:$0]  %s3, 256, %s258, [#allocation5], 64, 64, 4
        $region24: #{forward.4} parent=11 // pred_fallthru
          _
        // Predicated region
        $region25: #{forward.4} parent=11 // pred_check
          %p264 = pneg %p128
        $region26: #{forward.4} parent=11 // pred_check_branch
          %266 = sbr.rel (%p264) target = $region28
        $region27: #{forward.4} parent=11 // pred_region
          _
        $region28: #{forward.4} parent=11 // pred_fallthru
          _
        // Predicated region
        $region29: #{forward.4} parent=11 // pred_check
          %p267 = pneg %p149
        $region30: #{forward.4} parent=11 // pred_check_branch
          %269 = sbr.rel (%p267) target = $region32
        $region31: #{forward.4} parent=11 // pred_region
          %s271 = ssub.s32 768, 768
          %272 = vsyncadd [#allocation5], %s271
          %s273 = sshll.u32 [#allocation6], 4
          %s274 = int_to_ptr.vmem [resolvable:$true] %s273
          %279 = dma.hbm_to_vmem [thread:$0]  %s5, 768, %s274, [#allocation5], 64, 64, 4
        $region32: #{forward.4} parent=11 // pred_fallthru
          _
        // Predicated region
        $region33: #{forward.4} parent=11 // pred_check
          %p280 = pneg %p170
        $region34: #{forward.4} parent=11 // pred_check_branch
          %282 = sbr.rel (%p280) target = $region36
        $region35: #{forward.4} parent=11 // pred_region
          %s284 = ssub.s32 16, 16
          %285 = vsyncadd [#allocation8], %s284
          %s287 = sshll.u32 [#allocation7], 4
          %s288 = int_to_ptr.vmem [resolvable:$true] %s287
          %290 = dma.hbm_to_vmem [thread:$0]  %s6, 16, %s288, [#allocation8]
        $region36: #{forward.4} parent=11 // pred_fallthru
          _
      $region12: #{forward.4} parent=5 // pred_fallthru
        _
      %p291 = scmp.lt.s32.totalorder %s18, 2
      // Predicated region
      $region37: #{forward.4} parent=5 // pred_check
        %p292 = pneg %p291
      $region38: #{forward.4} parent=5 // pred_check_branch
        %294 = sbr.rel (%p292) target = $region40
      $region39: #{forward.4} parent=5 // pred_region
        // Predicated region
        $region41: #{forward.4} parent=39 // pred_check
          %p295 = pneg %p38
        $region42: #{forward.4} parent=39 // pred_check_branch
          %297 = sbr.rel (%p295) target = $region44
        $region43: #{forward.4} parent=39 // pred_region
          %s298 = smul.u32 32, %s18
          %p299 = scmp.lt.s32.totalorder %s298, 63
          %s300 = scalar_select %p299, %s298, 63
          %s301 = smul.addr %s300, 8
          %s302 = scalar_lea.vmem %s0, %s301
          %s303 = smul.u32 32, %s18
        $region44: #{forward.4} parent=39 // pred_fallthru
          _
      $region40: #{forward.4} parent=5 // pred_fallthru
        _
      %p304 = scmp.le.s32.totalorder 1, %s18
      %p305 = scmp.lt.s32.totalorder %s18, 3
      %p306 = pnand %p304, %p305
      %p307 = pneg %p306
      // Predicated region
      $region45: #{forward.4} parent=5 // pred_check
        _
      $region46: #{forward.4} parent=5 // pred_check_branch
        %309 = sbr.rel (%p306) target = $region48
      $region47: #{forward.4} parent=5 // pred_region
        %s310 = ssub.s32 %s18, 1
        // Predicated region
        $region49: #{forward.4} parent=47 // pred_check
          %p311 = pneg %p65
        $region50: #{forward.4} parent=47 // pred_check_branch
          %313 = sbr.rel (%p311) target = $region52
        $region51: #{forward.4} parent=47 // pred_region
          %314 = dma.done [#allocation3], 32
        $region52: #{forward.4} parent=47 // pred_fallthru
          _
        // Predicated region
        $region53: #{forward.4} parent=47 // pred_check
          %p315 = pneg %p107
        $region54: #{forward.4} parent=47 // pred_check_branch
          %317 = sbr.rel (%p315) target = $region56
        $region55: #{forward.4} parent=47 // pred_region
          %318 = dma.done [#allocation5], 256
        $region56: #{forward.4} parent=47 // pred_fallthru
          _
        // Predicated region
        $region57: #{forward.4} parent=47 // pred_check
          %p319 = pneg %p149
        $region58: #{forward.4} parent=47 // pred_check_branch
          %321 = sbr.rel (%p319) target = $region60
        $region59: #{forward.4} parent=47 // pred_region
          %322 = dma.done [#allocation5], 768
        $region60: #{forward.4} parent=47 // pred_fallthru
          _
        // Predicated region
        $region61: #{forward.4} parent=47 // pred_check
          %p323 = pneg %p170
        $region62: #{forward.4} parent=47 // pred_check_branch
          %325 = sbr.rel (%p323) target = $region64
        $region63: #{forward.4} parent=47 // pred_region
          %326 = dma.done [#allocation8], 16
        $region64: #{forward.4} parent=47 // pred_fallthru
          _
        %s327 = smul.u32 32, %s23
        %p328 = scmp.lt.s32.totalorder %s327, 63
        %s329 = scalar_select %p328, %s327, 63
        %s330 = smul.addr %s329, 8
        %s331 = scalar_lea.vmem %s0, %s330
        %p332 = pneg %p44
        %p333 = pneg %p41
        %p334 = pneg %p65
        %p335 = pneg %p62
        %p336 = pneg %p86
        %p337 = pneg %p83
        %p338 = pneg %p107
        %p339 = pneg %p104
        %p340 = pneg %p128
        %p341 = pneg %p125
        %p342 = pneg %p149
        %p343 = pneg %p146
        %p344 = pneg %p170
        %p345 = pneg %p167
        %p346 = pneg %p196
        %p347 = pneg %p193
        %s348 = smul.u32 32, %s23
        %p349 = scmp.lt.s32.totalorder %s348, 63
        %s350 = scalar_select %p349, %s348, 63
        %s351 = smul.addr %s350, 8
        %s352 = scalar_lea.vmem %s7, %s351
        %p353 = pneg %p222
        %p354 = pneg %p219
        %s355 = smul.u32 32, %s23
        %p356 = scmp.lt.s32.totalorder %s355, 63
        %s357 = scalar_select %p356, %s355, 63
        %s358 = smul.addr %s357, 8
        %s359 = scalar_lea.vmem %s8, %s358
        %s360 = smul.u32 32, %s23
        %p361 = scmp.lt.s32.totalorder %s360, 63
        %s362 = scalar_select %p361, %s360, 63
        %s363 = smul.addr %s362, 8
        %s364 = scalar_lea.vmem %s0, %s363
        %s365 = smul.u32 32, %s23
        %s366 = smul.u32 32, %s23
        %p367 = scmp.lt.s32.totalorder %s366, 63
        %s368 = scalar_select %p367, %s366, 63
        %s369 = smul.addr %s368, 8
        %s370 = scalar_lea.vmem %s7, %s369
        %s371 = smul.u32 32, %s23
        %s372 = smul.u32 32, %s23
        %p373 = scmp.lt.s32.totalorder %s372, 63
        %s374 = scalar_select %p373, %s372, 63
        %s375 = smul.addr %s374, 8
        %s376 = scalar_lea.vmem %s8, %s375
        %s377 = smul.u32 32, %s23
        %v379 = vld [vmem:[%s364] sm:$0xff]
        %v380 = vld [vmem:[%s364 + $0x8] sm:$0xff]
        %v381 = vld [vmem:[%s364 + $0x10] sm:$0xff]
        %v382 = vld [vmem:[%s364 + $0x18] sm:$0xff]
        %v383 = vld [vmem:[%s364 + $0x20] sm:$0xff]
        %v384 = vld [vmem:[%s364 + $0x28] sm:$0xff]
        %v385 = vld [vmem:[%s364 + $0x30] sm:$0xff]
        %v386 = vld [vmem:[%s364 + $0x38] sm:$0xff]
        %v387 = vld [vmem:[%s364 + $0x40] sm:$0xff]
        %v388 = vld [vmem:[%s364 + $0x48] sm:$0xff]
        %v389 = vld [vmem:[%s364 + $0x50] sm:$0xff]
        %v390 = vld [vmem:[%s364 + $0x58] sm:$0xff]
        %v391 = vld [vmem:[%s364 + $0x60] sm:$0xff]
        %v392 = vld [vmem:[%s364 + $0x68] sm:$0xff]
        %v393 = vld [vmem:[%s364 + $0x70] sm:$0xff]
        %v394 = vld [vmem:[%s364 + $0x78] sm:$0xff]
        %v395 = vld [vmem:[%s364 + $0x80] sm:$0xff]
        %v396 = vld [vmem:[%s364 + $0x88] sm:$0xff]
        %v397 = vld [vmem:[%s364 + $0x90] sm:$0xff]
        %v398 = vld [vmem:[%s364 + $0x98] sm:$0xff]
        %v399 = vld [vmem:[%s364 + $0xa0] sm:$0xff]
        %v400 = vld [vmem:[%s364 + $0xa8] sm:$0xff]
        %v401 = vld [vmem:[%s364 + $0xb0] sm:$0xff]
        %v402 = vld [vmem:[%s364 + $0xb8] sm:$0xff]
        %v403 = vld [vmem:[%s364 + $0xc0] sm:$0xff]
        %v404 = vld [vmem:[%s364 + $0xc8] sm:$0xff]
        %v405 = vld [vmem:[%s364 + $0xd0] sm:$0xff]
        %v406 = vld [vmem:[%s364 + $0xd8] sm:$0xff]
        %v407 = vld [vmem:[%s364 + $0xe0] sm:$0xff]
        %v408 = vld [vmem:[%s364 + $0xe8] sm:$0xff]
        %v409 = vld [vmem:[%s364 + $0xf0] sm:$0xff]
        %v410 = vld [vmem:[%s364 + $0xf8] sm:$0xff]
        %v411 = vpack.c.bf16 %v380, %v379
        %v412 = vpack.c.bf16 %v382, %v381
        %v413 = vpack.c.bf16 %v384, %v383
        %v414 = vpack.c.bf16 %v386, %v385
        %v415 = vpack.c.bf16 %v388, %v387
        %v416 = vpack.c.bf16 %v390, %v389
        %v417 = vpack.c.bf16 %v392, %v391
        %v418 = vpack.c.bf16 %v394, %v393
        %v419 = vpack.c.bf16 %v396, %v395
        %v420 = vpack.c.bf16 %v398, %v397
        %v421 = vpack.c.bf16 %v400, %v399
        %v422 = vpack.c.bf16 %v402, %v401
        %v423 = vpack.c.bf16 %v404, %v403
        %v424 = vpack.c.bf16 %v406, %v405
        %v425 = vpack.c.bf16 %v408, %v407
        %v426 = vpack.c.bf16 %v410, %v409
        %v427 = vld [vmem:[#allocation2] sm:$0x3]
        %v428 = vld [vmem:[%s2] sm:$0x1]
        %v430 = vlaneseq
        %v431 = vshrl.u32 %v430, 7
        %v432 = vsub.s32 0, %v431
        %v433 = vrot.slane %v428, %v432
        %vm435 = vcmask 31744
        %v437 = vsel %vm435, %v411, 0
        %v440 = vsel %vm435, %v412, 0
        %v443 = vsel %vm435, %v413, 0
        %v446 = vsel %vm435, %v414, 0
        %v449 = vsel %vm435, %v415, 0
        %v452 = vsel %vm435, %v416, 0
        %v455 = vsel %vm435, %v417, 0
        %v458 = vsel %vm435, %v418, 0
        %v461 = vsel %vm435, %v419, 0
        %v464 = vsel %vm435, %v420, 0
        %v467 = vsel %vm435, %v421, 0
        %v470 = vsel %vm435, %v422, 0
        %v473 = vsel %vm435, %v423, 0
        %v476 = vsel %vm435, %v424, 0
        %v479 = vsel %vm435, %v425, 0
        %v482 = vsel %vm435, %v426, 0
        %vm484 = vcmask 1041408
        %v486 = vsel %vm484, %v427, 0
        %488 = vmatprep.subr.bf16.mxu0 0
        %489 = vmatpush1.bf16.msra.mxu0 %v486
        %490 = vmatprep.subr.bf16.mxu0 0
        %491 = vmatpush1.bf16.msra.mxu0 0
        %492 = vmatprep.subr.bf16.mxu0 0
        %493 = vmatpush1.bf16.msra.mxu0 0
        %494 = vmatprep.subr.bf16.mxu0 0
        %495 = vmatpush1.bf16.msra.mxu0 0
        %496 = vmatprep.subr.bf16.mxu0 0
        %497 = vmatpush1.bf16.msra.mxu0 0
        %498 = vmatprep.subr.bf16.mxu0 0
        %499 = vmatpush1.bf16.msra.mxu0 0
        %500 = vmatprep.subr.bf16.mxu0 0
        %501 = vmatpush1.bf16.msra.mxu0 0
        %502 = vmatprep.subr.bf16.mxu0 0
        %503 = vmatpush1.bf16.msra.mxu0 0
        %504 = vmatprep.subr.bf16.mxu0 0
        %505 = vmatpush1.bf16.msra.mxu0 0
        %506 = vmatprep.subr.bf16.mxu0 0
        %507 = vmatpush1.bf16.msra.mxu0 0
        %508 = vmatprep.subr.bf16.mxu0 0
        %509 = vmatpush1.bf16.msra.mxu0 0
        %510 = vmatprep.subr.bf16.mxu0 0
        %511 = vmatpush1.bf16.msra.mxu0 0
        %512 = vmatprep.subr.bf16.mxu0 0
        %513 = vmatpush1.bf16.msra.mxu0 0
        %514 = vmatprep.subr.bf16.mxu0 0
        %515 = vmatpush1.bf16.msra.mxu0 0
        %516 = vmatprep.subr.bf16.mxu0 0
        %517 = vmatpush1.bf16.msra.mxu0 0
        %518 = vmatprep.subr.bf16.mxu0 0
        %519 = vmatpush1.bf16.msra.mxu0 0
        %520 = vmatprep.mubr.bf16.mxu0 0
        %521 = vmatmul.mubr.bf16.gmra.mrb[0].mxu0 %v437
        %v522 = vpop.f32.mrb[0].mxu0
        %v523 = vadd.f32 %v433, %v522
        %v524 = vpop.f32.mrb[0].mxu0
        %v525 = vpop.f32.mrb[0].mxu0
        %v526 = vadd.f32 %v433, %v525
        %v527 = vpop.f32.mrb[0].mxu0
        %528 = vmatprep.mubr.bf16.mxu0 0
        %529 = vmatmul.mubr.bf16.gmra.mrb[0].mxu0 %v440
        %v530 = vpop.f32.mrb[0].mxu0
        %v531 = vadd.f32 %v433, %v530
        %v532 = vpop.f32.mrb[0].mxu0
        %v533 = vpop.f32.mrb[0].mxu0
        %v534 = vadd.f32 %v433, %v533
        %v535 = vpop.f32.mrb[0].mxu0
        %536 = vmatprep.mubr.bf16.mxu0 0
        %537 = vmatmul.mubr.bf16.gmra.mrb[0].mxu0 %v443
        %v538 = vpop.f32.mrb[0].mxu0
        %v539 = vadd.f32 %v433, %v538
        %v540 = vpop.f32.mrb[0].mxu0
        %v541 = vpop.f32.mrb[0].mxu0
        %v542 = vadd.f32 %v433, %v541
        %v543 = vpop.f32.mrb[0].mxu0
        %544 = vmatprep.mubr.bf16.mxu0 0
        %545 = vmatmul.mubr.bf16.gmra.mrb[0].mxu0 %v446
        %v546 = vpop.f32.mrb[0].mxu0
        %v547 = vadd.f32 %v433, %v546
        %v548 = vpop.f32.mrb[0].mxu0
        %v549 = vpop.f32.mrb[0].mxu0
        %v550 = vadd.f32 %v433, %v549
        %v551 = vpop.f32.mrb[0].mxu0
        %552 = vmatprep.mubr.bf16.mxu0 0
        %553 = vmatmul.mubr.bf16.gmra.mrb[0].mxu0 %v449
        %v554 = vpop.f32.mrb[0].mxu0
        %v555 = vadd.f32 %v433, %v554
        %v556 = vpop.f32.mrb[0].mxu0
        %v557 = vpop.f32.mrb[0].mxu0
        %v558 = vadd.f32 %v433, %v557
        %v559 = vpop.f32.mrb[0].mxu0
        %560 = vmatprep.mubr.bf16.mxu0 0
        %561 = vmatmul.mubr.bf16.gmra.mrb[0].mxu0 %v452
        %v562 = vpop.f32.mrb[0].mxu0
        %v563 = vadd.f32 %v433, %v562
        %v564 = vpop.f32.mrb[0].mxu0
        %v565 = vpop.f32.mrb[0].mxu0
        %v566 = vadd.f32 %v433, %v565
        %v567 = vpop.f32.mrb[0].mxu0
        %568 = vmatprep.mubr.bf16.mxu0 0
        %569 = vmatmul.mubr.bf16.gmra.mrb[0].mxu0 %v455
        %v570 = vpop.f32.mrb[0].mxu0
        %v571 = vadd.f32 %v433, %v570
        %v572 = vpop.f32.mrb[0].mxu0
        %v573 = vpop.f32.mrb[0].mxu0
        %v574 = vadd.f32 %v433, %v573
        %v575 = vpop.f32.mrb[0].mxu0
        %576 = vmatprep.mubr.bf16.mxu0 0
        %577 = vmatmul.mubr.bf16.gmra.mrb[0].mxu0 %v458
        %v578 = vpop.f32.mrb[0].mxu0
        %v579 = vadd.f32 %v433, %v578
        %v580 = vpop.f32.mrb[0].mxu0
        %v581 = vpop.f32.mrb[0].mxu0
        %v582 = vadd.f32 %v433, %v581
        %v583 = vpop.f32.mrb[0].mxu0
        %584 = vmatprep.mubr.bf16.mxu0 0
        %585 = vmatmul.mubr.bf16.gmra.mrb[0].mxu0 %v461
        %v586 = vpop.f32.mrb[0].mxu0
        %v587 = vadd.f32 %v433, %v586
        %v588 = vpop.f32.mrb[0].mxu0
        %v589 = vpop.f32.mrb[0].mxu0
        %v590 = vadd.f32 %v433, %v589
        %v591 = vpop.f32.mrb[0].mxu0
        %592 = vmatprep.mubr.bf16.mxu0 0
        %593 = vmatmul.mubr.bf16.gmra.mrb[0].mxu0 %v464
        %v594 = vpop.f32.mrb[0].mxu0
        %v595 = vadd.f32 %v433, %v594
        %v596 = vpop.f32.mrb[0].mxu0
        %v597 = vpop.f32.mrb[0].mxu0
        %v598 = vadd.f32 %v433, %v597
        %v599 = vpop.f32.mrb[0].mxu0
        %600 = vmatprep.mubr.bf16.mxu0 0
        %601 = vmatmul.mubr.bf16.gmra.mrb[0].mxu0 %v467
        %v602 = vpop.f32.mrb[0].mxu0
        %v603 = vadd.f32 %v433, %v602
        %v604 = vpop.f32.mrb[0].mxu0
        %v605 = vpop.f32.mrb[0].mxu0
        %v606 = vadd.f32 %v433, %v605
        %v607 = vpop.f32.mrb[0].mxu0
        %608 = vmatprep.mubr.bf16.mxu0 0
        %609 = vmatmul.mubr.bf16.gmra.mrb[0].mxu0 %v470
        %v610 = vpop.f32.mrb[0].mxu0
        %v611 = vadd.f32 %v433, %v610
        %v612 = vpop.f32.mrb[0].mxu0
        %v613 = vpop.f32.mrb[0].mxu0
        %v614 = vadd.f32 %v433, %v613
        %v615 = vpop.f32.mrb[0].mxu0
        %616 = vmatprep.mubr.bf16.mxu0 0
        %617 = vmatmul.mubr.bf16.gmra.mrb[0].mxu0 %v473
        %v618 = vpop.f32.mrb[0].mxu0
        %v619 = vadd.f32 %v433, %v618
        %v620 = vpop.f32.mrb[0].mxu0
        %v621 = vpop.f32.mrb[0].mxu0
        %v622 = vadd.f32 %v433, %v621
        %v623 = vpop.f32.mrb[0].mxu0
        %624 = vmatprep.mubr.bf16.mxu0 0
        %625 = vmatmul.mubr.bf16.gmra.mrb[0].mxu0 %v476
        %v626 = vpop.f32.mrb[0].mxu0
        %v627 = vadd.f32 %v433, %v626
        %v628 = vpop.f32.mrb[0].mxu0
        %v629 = vpop.f32.mrb[0].mxu0
        %v630 = vadd.f32 %v433, %v629
        %v631 = vpop.f32.mrb[0].mxu0
        %632 = vmatprep.mubr.bf16.mxu0 0
        %633 = vmatmul.mubr.bf16.gmra.mrb[0].mxu0 %v479
        %v634 = vpop.f32.mrb[0].mxu0
        %v635 = vadd.f32 %v433, %v634
        %v636 = vpop.f32.mrb[0].mxu0
        %v637 = vpop.f32.mrb[0].mxu0
        %v638 = vadd.f32 %v433, %v637
        %v639 = vpop.f32.mrb[0].mxu0
        %640 = vmatprep.mubr.bf16.mxu0 0
        %641 = vmatmul.mubr.bf16.gmra.mrb[0].mxu0 %v482
        %v642 = vpop.f32.mrb[0].mxu0
        %v643 = vadd.f32 %v433, %v642
        %v644 = vpop.f32.mrb[0].mxu0
        %v645 = vpop.f32.mrb[0].mxu0
        %v646 = vadd.f32 %v433, %v645
        %v647 = vpop.f32.mrb[0].mxu0
        %648 = vdwg.mxu0
        %v649 = vmax.f32 %v523, 0.0
        %v650 = vmax.f32 %v526, 0.0
        %v651 = vmax.f32 %v531, 0.0
        %v652 = vmax.f32 %v534, 0.0
        %v653 = vmax.f32 %v539, 0.0
        %v654 = vmax.f32 %v542, 0.0
        %v655 = vmax.f32 %v547, 0.0
        %v656 = vmax.f32 %v550, 0.0
        %v657 = vmax.f32 %v555, 0.0
        %v658 = vmax.f32 %v558, 0.0
        %v659 = vmax.f32 %v563, 0.0
        %v660 = vmax.f32 %v566, 0.0
        %v661 = vmax.f32 %v571, 0.0
        %v662 = vmax.f32 %v574, 0.0
        %v663 = vmax.f32 %v579, 0.0
        %v664 = vmax.f32 %v582, 0.0
        %v665 = vmax.f32 %v587, 0.0
        %v666 = vmax.f32 %v590, 0.0
        %v667 = vmax.f32 %v595, 0.0
        %v668 = vmax.f32 %v598, 0.0
        %v669 = vmax.f32 %v603, 0.0
        %v670 = vmax.f32 %v606, 0.0
        %v671 = vmax.f32 %v611, 0.0
        %v672 = vmax.f32 %v614, 0.0
        %v673 = vmax.f32 %v619, 0.0
        %v674 = vmax.f32 %v622, 0.0
        %v675 = vmax.f32 %v627, 0.0
        %v676 = vmax.f32 %v630, 0.0
        %v677 = vmax.f32 %v635, 0.0
        %v678 = vmax.f32 %v638, 0.0
        %v679 = vmax.f32 %v643, 0.0
        %v680 = vmax.f32 %v646, 0.0
        %vm681 = vcmask 261120
        %682 = vst.msk [vmem:[%s370] sm:$0xff] %vm681, %v649
        %683 = vst.msk [vmem:[%s370 + $0x8] sm:$0xff] %vm681, %v650
        %684 = vst.msk [vmem:[%s370 + $0x10] sm:$0xff] %vm681, %v651
        %685 = vst.msk [vmem:[%s370 + $0x18] sm:$0xff] %vm681, %v652
        %686 = vst.msk [vmem:[%s370 + $0x20] sm:$0xff] %vm681, %v653
        %687 = vst.msk [vmem:[%s370 + $0x28] sm:$0xff] %vm681, %v654
        %688 = vst.msk [vmem:[%s370 + $0x30] sm:$0xff] %vm681, %v655
        %689 = vst.msk [vmem:[%s370 + $0x38] sm:$0xff] %vm681, %v656
        %690 = vst.msk [vmem:[%s370 + $0x40] sm:$0xff] %vm681, %v657
        %691 = vst.msk [vmem:[%s370 + $0x48] sm:$0xff] %vm681, %v658
        %692 = vst.msk [vmem:[%s370 + $0x50] sm:$0xff] %vm681, %v659
        %693 = vst.msk [vmem:[%s370 + $0x58] sm:$0xff] %vm681, %v660
        %694 = vst.msk [vmem:[%s370 + $0x60] sm:$0xff] %vm681, %v661
        %695 = vst.msk [vmem:[%s370 + $0x68] sm:$0xff] %vm681, %v662
        %696 = vst.msk [vmem:[%s370 + $0x70] sm:$0xff] %vm681, %v663
        %697 = vst.msk [vmem:[%s370 + $0x78] sm:$0xff] %vm681, %v664
        %698 = vst.msk [vmem:[%s370 + $0x80] sm:$0xff] %vm681, %v665
        %699 = vst.msk [vmem:[%s370 + $0x88] sm:$0xff] %vm681, %v666
        %700 = vst.msk [vmem:[%s370 + $0x90] sm:$0xff] %vm681, %v667
        %701 = vst.msk [vmem:[%s370 + $0x98] sm:$0xff] %vm681, %v668
        %702 = vst.msk [vmem:[%s370 + $0xa0] sm:$0xff] %vm681, %v669
        %703 = vst.msk [vmem:[%s370 + $0xa8] sm:$0xff] %vm681, %v670
        %704 = vst.msk [vmem:[%s370 + $0xb0] sm:$0xff] %vm681, %v671
        %705 = vst.msk [vmem:[%s370 + $0xb8] sm:$0xff] %vm681, %v672
        %706 = vst.msk [vmem:[%s370 + $0xc0] sm:$0xff] %vm681, %v673
        %707 = vst.msk [vmem:[%s370 + $0xc8] sm:$0xff] %vm681, %v674
        %708 = vst.msk [vmem:[%s370 + $0xd0] sm:$0xff] %vm681, %v675
        %709 = vst.msk [vmem:[%s370 + $0xd8] sm:$0xff] %vm681, %v676
        %710 = vst.msk [vmem:[%s370 + $0xe0] sm:$0xff] %vm681, %v677
        %711 = vst.msk [vmem:[%s370 + $0xe8] sm:$0xff] %vm681, %v678
        %712 = vst.msk [vmem:[%s370 + $0xf0] sm:$0xff] %vm681, %v679
        %713 = vst.msk [vmem:[%s370 + $0xf8] sm:$0xff] %vm681, %v680
        %v714 = vpack.c.bf16 %v650, %v649
        %v715 = vpack.c.bf16 %v652, %v651
        %v716 = vpack.c.bf16 %v654, %v653
        %v717 = vpack.c.bf16 %v656, %v655
        %v718 = vpack.c.bf16 %v658, %v657
        %v719 = vpack.c.bf16 %v660, %v659
        %v720 = vpack.c.bf16 %v662, %v661
        %v721 = vpack.c.bf16 %v664, %v663
        %v722 = vpack.c.bf16 %v666, %v665
        %v723 = vpack.c.bf16 %v668, %v667
        %v724 = vpack.c.bf16 %v670, %v669
        %v725 = vpack.c.bf16 %v672, %v671
        %v726 = vpack.c.bf16 %v674, %v673
        %v727 = vpack.c.bf16 %v676, %v675
        %v728 = vpack.c.bf16 %v678, %v677
        %v729 = vpack.c.bf16 %v680, %v679
        %v730 = vld [vmem:[#allocation4] sm:$0xf]
        %v731 = vld [vmem:[#allocation4 + $0x4] sm:$0xf]
        %v732 = vld [vmem:[#allocation4 + $0x8] sm:$0xf]
        %v733 = vld [vmem:[#allocation4 + $0xc] sm:$0xf]
        %v734 = vld [vmem:[%s4] sm:$0x1]
        %v736 = vlaneseq
        %v737 = vshrl.u32 %v736, 7
        %v738 = vsub.s32 0, %v737
        %v739 = vrot.slane %v734, %v738
        %v745 = vunpack.c.l.b16 %v730
        %v746 = vunpack.c.l.b16 %v731
        %v747 = vunpack.c.l.b16 %v732
        %v748 = vunpack.c.l.b16 %v733
        %v749 = vpack.c.b16 %v746, %v745
        %v750 = vpack.c.b16 %v748, %v747
        %v754 = vsel %vm681, %v714, 0
        %v757 = vsel %vm681, %v715, 0
        %v760 = vsel %vm681, %v716, 0
        %v763 = vsel %vm681, %v717, 0
        %v766 = vsel %vm681, %v718, 0
        %v769 = vsel %vm681, %v719, 0
        %v772 = vsel %vm681, %v720, 0
        %v775 = vsel %vm681, %v721, 0
        %v778 = vsel %vm681, %v722, 0
        %v781 = vsel %vm681, %v723, 0
        %v784 = vsel %vm681, %v724, 0
        %v787 = vsel %vm681, %v725, 0
        %v790 = vsel %vm681, %v726, 0
        %v793 = vsel %vm681, %v727, 0
        %v796 = vsel %vm681, %v728, 0
        %v799 = vsel %vm681, %v729, 0
        %801 = vmatprep.subr.bf16.mxu0 0
        %802 = vmatpush1.bf16.msra.mxu0 %v749
        %803 = vmatprep.subr.bf16.mxu0 0
        %804 = vmatpush1.bf16.msra.mxu0 %v750
        %805 = vmatprep.subr.bf16.mxu0 0
        %806 = vmatpush1.bf16.msra.mxu0 0
        %807 = vmatprep.subr.bf16.mxu0 0
        %808 = vmatpush1.bf16.msra.mxu0 0
        %809 = vmatprep.subr.bf16.mxu0 0
        %810 = vmatpush1.bf16.msra.mxu0 0
        %811 = vmatprep.subr.bf16.mxu0 0
        %812 = vmatpush1.bf16.msra.mxu0 0
        %813 = vmatprep.subr.bf16.mxu0 0
        %814 = vmatpush1.bf16.msra.mxu0 0
        %815 = vmatprep.subr.bf16.mxu0 0
        %816 = vmatpush1.bf16.msra.mxu0 0
        %817 = vmatprep.subr.bf16.mxu0 0
        %818 = vmatpush1.bf16.msra.mxu0 0
        %819 = vmatprep.subr.bf16.mxu0 0
        %820 = vmatpush1.bf16.msra.mxu0 0
        %821 = vmatprep.subr.bf16.mxu0 0
        %822 = vmatpush1.bf16.msra.mxu0 0
        %823 = vmatprep.subr.bf16.mxu0 0
        %824 = vmatpush1.bf16.msra.mxu0 0
        %825 = vmatprep.subr.bf16.mxu0 0
        %826 = vmatpush1.bf16.msra.mxu0 0
        %827 = vmatprep.subr.bf16.mxu0 0
        %828 = vmatpush1.bf16.msra.mxu0 0
        %829 = vmatprep.subr.bf16.mxu0 0
        %830 = vmatpush1.bf16.msra.mxu0 0
        %831 = vmatprep.subr.bf16.mxu0 0
        %832 = vmatpush1.bf16.msra.mxu0 0
        %833 = vmatprep.mubr.bf16.mxu0 0
        %834 = vmatmul.mubr.bf16.gmra.mrb[0].mxu0 %v754
        %v835 = vpop.f32.mrb[0].mxu0
        %v836 = vadd.f32 %v739, %v835
        %v837 = vpop.f32.mrb[0].mxu0
        %v838 = vpop.f32.mrb[0].mxu0
        %v839 = vadd.f32 %v739, %v838
        %v840 = vpop.f32.mrb[0].mxu0
        %841 = vmatprep.mubr.bf16.mxu0 0
        %842 = vmatmul.mubr.bf16.gmra.mrb[0].mxu0 %v757
        %v843 = vpop.f32.mrb[0].mxu0
        %v844 = vadd.f32 %v739, %v843
        %v845 = vpop.f32.mrb[0].mxu0
        %v846 = vpop.f32.mrb[0].mxu0
        %v847 = vadd.f32 %v739, %v846
        %v848 = vpop.f32.mrb[0].mxu0
        %849 = vmatprep.mubr.bf16.mxu0 0
        %850 = vmatmul.mubr.bf16.gmra.mrb[0].mxu0 %v760
        %v851 = vpop.f32.mrb[0].mxu0
        %v852 = vadd.f32 %v739, %v851
        %v853 = vpop.f32.mrb[0].mxu0
        %v854 = vpop.f32.mrb[0].mxu0
        %v855 = vadd.f32 %v739, %v854
        %v856 = vpop.f32.mrb[0].mxu0
        %857 = vmatprep.mubr.bf16.mxu0 0
        %858 = vmatmul.mubr.bf16.gmra.mrb[0].mxu0 %v763
        %v859 = vpop.f32.mrb[0].mxu0
        %v860 = vadd.f32 %v739, %v859
        %v861 = vpop.f32.mrb[0].mxu0
        %v862 = vpop.f32.mrb[0].mxu0
        %v863 = vadd.f32 %v739, %v862
        %v864 = vpop.f32.mrb[0].mxu0
        %865 = vmatprep.mubr.bf16.mxu0 0
        %866 = vmatmul.mubr.bf16.gmra.mrb[0].mxu0 %v766
        %v867 = vpop.f32.mrb[0].mxu0
        %v868 = vadd.f32 %v739, %v867
        %v869 = vpop.f32.mrb[0].mxu0
        %v870 = vpop.f32.mrb[0].mxu0
        %v871 = vadd.f32 %v739, %v870
        %v872 = vpop.f32.mrb[0].mxu0
        %873 = vmatprep.mubr.bf16.mxu0 0
        %874 = vmatmul.mubr.bf16.gmra.mrb[0].mxu0 %v769
        %v875 = vpop.f32.mrb[0].mxu0
        %v876 = vadd.f32 %v739, %v875
        %v877 = vpop.f32.mrb[0].mxu0
        %v878 = vpop.f32.mrb[0].mxu0
        %v879 = vadd.f32 %v739, %v878
        %v880 = vpop.f32.mrb[0].mxu0
        %881 = vmatprep.mubr.bf16.mxu0 0
        %882 = vmatmul.mubr.bf16.gmra.mrb[0].mxu0 %v772
        %v883 = vpop.f32.mrb[0].mxu0
        %v884 = vadd.f32 %v739, %v883
        %v885 = vpop.f32.mrb[0].mxu0
        %v886 = vpop.f32.mrb[0].mxu0
        %v887 = vadd.f32 %v739, %v886
        %v888 = vpop.f32.mrb[0].mxu0
        %889 = vmatprep.mubr.bf16.mxu0 0
        %890 = vmatmul.mubr.bf16.gmra.mrb[0].mxu0 %v775
        %v891 = vpop.f32.mrb[0].mxu0
        %v892 = vadd.f32 %v739, %v891
        %v893 = vpop.f32.mrb[0].mxu0
        %v894 = vpop.f32.mrb[0].mxu0
        %v895 = vadd.f32 %v739, %v894
        %v896 = vpop.f32.mrb[0].mxu0
        %897 = vmatprep.mubr.bf16.mxu0 0
        %898 = vmatmul.mubr.bf16.gmra.mrb[0].mxu0 %v778
        %v899 = vpop.f32.mrb[0].mxu0
        %v900 = vadd.f32 %v739, %v899
        %v901 = vpop.f32.mrb[0].mxu0
        %v902 = vpop.f32.mrb[0].mxu0
        %v903 = vadd.f32 %v739, %v902
        %v904 = vpop.f32.mrb[0].mxu0
        %905 = vmatprep.mubr.bf16.mxu0 0
        %906 = vmatmul.mubr.bf16.gmra.mrb[0].mxu0 %v781
        %v907 = vpop.f32.mrb[0].mxu0
        %v908 = vadd.f32 %v739, %v907
        %v909 = vpop.f32.mrb[0].mxu0
        %v910 = vpop.f32.mrb[0].mxu0
        %v911 = vadd.f32 %v739, %v910
        %v912 = vpop.f32.mrb[0].mxu0
        %913 = vmatprep.mubr.bf16.mxu0 0
        %914 = vmatmul.mubr.bf16.gmra.mrb[0].mxu0 %v784
        %v915 = vpop.f32.mrb[0].mxu0
        %v916 = vadd.f32 %v739, %v915
        %v917 = vpop.f32.mrb[0].mxu0
        %v918 = vpop.f32.mrb[0].mxu0
        %v919 = vadd.f32 %v739, %v918
        %v920 = vpop.f32.mrb[0].mxu0
        %921 = vmatprep.mubr.bf16.mxu0 0
        %922 = vmatmul.mubr.bf16.gmra.mrb[0].mxu0 %v787
        %v923 = vpop.f32.mrb[0].mxu0
        %v924 = vadd.f32 %v739, %v923
        %v925 = vpop.f32.mrb[0].mxu0
        %v926 = vpop.f32.mrb[0].mxu0
        %v927 = vadd.f32 %v739, %v926
        %v928 = vpop.f32.mrb[0].mxu0
        %929 = vmatprep.mubr.bf16.mxu0 0
        %930 = vmatmul.mubr.bf16.gmra.mrb[0].mxu0 %v790
        %v931 = vpop.f32.mrb[0].mxu0
        %v932 = vadd.f32 %v739, %v931
        %v933 = vpop.f32.mrb[0].mxu0
        %v934 = vpop.f32.mrb[0].mxu0
        %v935 = vadd.f32 %v739, %v934
        %v936 = vpop.f32.mrb[0].mxu0
        %937 = vmatprep.mubr.bf16.mxu0 0
        %938 = vmatmul.mubr.bf16.gmra.mrb[0].mxu0 %v793
        %v939 = vpop.f32.mrb[0].mxu0
        %v940 = vadd.f32 %v739, %v939
        %v941 = vpop.f32.mrb[0].mxu0
        %v942 = vpop.f32.mrb[0].mxu0
        %v943 = vadd.f32 %v739, %v942
        %v944 = vpop.f32.mrb[0].mxu0
        %945 = vmatprep.mubr.bf16.mxu0 0
        %946 = vmatmul.mubr.bf16.gmra.mrb[0].mxu0 %v796
        %v947 = vpop.f32.mrb[0].mxu0
        %v948 = vadd.f32 %v739, %v947
        %v949 = vpop.f32.mrb[0].mxu0
        %v950 = vpop.f32.mrb[0].mxu0
        %v951 = vadd.f32 %v739, %v950
        %v952 = vpop.f32.mrb[0].mxu0
        %953 = vmatprep.mubr.bf16.mxu0 0
        %954 = vmatmul.mubr.bf16.gmra.mrb[0].mxu0 %v799
        %v955 = vpop.f32.mrb[0].mxu0
        %v956 = vadd.f32 %v739, %v955
        %v957 = vpop.f32.mrb[0].mxu0
        %v958 = vpop.f32.mrb[0].mxu0
        %v959 = vadd.f32 %v739, %v958
        %v960 = vpop.f32.mrb[0].mxu0
        %961 = vdwg.mxu0
        %v962 = vmax.f32 %v836, 0.0
        %v963 = vmax.f32 %v839, 0.0
        %v964 = vmax.f32 %v844, 0.0
        %v965 = vmax.f32 %v847, 0.0
        %v966 = vmax.f32 %v852, 0.0
        %v967 = vmax.f32 %v855, 0.0
        %v968 = vmax.f32 %v860, 0.0
        %v969 = vmax.f32 %v863, 0.0
        %v970 = vmax.f32 %v868, 0.0
        %v971 = vmax.f32 %v871, 0.0
        %v972 = vmax.f32 %v876, 0.0
        %v973 = vmax.f32 %v879, 0.0
        %v974 = vmax.f32 %v884, 0.0
        %v975 = vmax.f32 %v887, 0.0
        %v976 = vmax.f32 %v892, 0.0
        %v977 = vmax.f32 %v895, 0.0
        %v978 = vmax.f32 %v900, 0.0
        %v979 = vmax.f32 %v903, 0.0
        %v980 = vmax.f32 %v908, 0.0
        %v981 = vmax.f32 %v911, 0.0
        %v982 = vmax.f32 %v916, 0.0
        %v983 = vmax.f32 %v919, 0.0
        %v984 = vmax.f32 %v924, 0.0
        %v985 = vmax.f32 %v927, 0.0
        %v986 = vmax.f32 %v932, 0.0
        %v987 = vmax.f32 %v935, 0.0
        %v988 = vmax.f32 %v940, 0.0
        %v989 = vmax.f32 %v943, 0.0
        %v990 = vmax.f32 %v948, 0.0
        %v991 = vmax.f32 %v951, 0.0
        %v992 = vmax.f32 %v956, 0.0
        %v993 = vmax.f32 %v959, 0.0
        %v994 = vpack.c.bf16 %v963, %v962
        %v995 = vpack.c.bf16 %v965, %v964
        %v996 = vpack.c.bf16 %v967, %v966
        %v997 = vpack.c.bf16 %v969, %v968
        %v998 = vpack.c.bf16 %v971, %v970
        %v999 = vpack.c.bf16 %v973, %v972
        %v1000 = vpack.c.bf16 %v975, %v974
        %v1001 = vpack.c.bf16 %v977, %v976
        %v1002 = vpack.c.bf16 %v979, %v978
        %v1003 = vpack.c.bf16 %v981, %v980
        %v1004 = vpack.c.bf16 %v983, %v982
        %v1005 = vpack.c.bf16 %v985, %v984
        %v1006 = vpack.c.bf16 %v987, %v986
        %v1007 = vpack.c.bf16 %v989, %v988
        %v1008 = vpack.c.bf16 %v991, %v990
        %v1009 = vpack.c.bf16 %v993, %v992
        %v1010 = vld [vmem:[#allocation6] sm:$0xf]
        %v1011 = vld [vmem:[#allocation6 + $0x4] sm:$0xf]
        %v1012 = vld [vmem:[#allocation6 + $0x8] sm:$0xf]
        %v1013 = vld [vmem:[#allocation6 + $0xc] sm:$0xf]
        %v1014 = vld [vmem:[#allocation6 + $0x10] sm:$0xf]
        %v1015 = vld [vmem:[#allocation6 + $0x14] sm:$0xf]
        %v1016 = vld [vmem:[#allocation6 + $0x18] sm:$0xf]
        %v1017 = vld [vmem:[#allocation6 + $0x1c] sm:$0xf]
        %v1018 = vld [vmem:[#allocation6 + $0x20] sm:$0xf]
        %v1019 = vld [vmem:[#allocation6 + $0x24] sm:$0xf]
        %v1020 = vld [vmem:[#allocation6 + $0x28] sm:$0xf]
        %v1021 = vld [vmem:[#allocation6 + $0x2c] sm:$0xf]
        %v1022 = vld [vmem:[#allocation7] sm:$0x1]
        %v1024 = vlaneseq
        %v1025 = vshrl.u32 %v1024, 7
        %v1026 = vsub.s32 0, %v1025
        %v1027 = vrot.slane %v1022, %v1026
        %v1041 = vunpack.c.l.b16 %v1010
        %v1042 = vunpack.c.l.b16 %v1011
        %v1043 = vunpack.c.l.b16 %v1012
        %v1044 = vunpack.c.l.b16 %v1013
        %v1045 = vunpack.c.l.b16 %v1014
        %v1046 = vunpack.c.l.b16 %v1015
        %v1047 = vunpack.c.l.b16 %v1016
        %v1048 = vunpack.c.l.b16 %v1017
        %v1049 = vunpack.c.l.b16 %v1018
        %v1050 = vunpack.c.l.b16 %v1019
        %v1051 = vunpack.c.l.b16 %v1020
        %v1052 = vunpack.c.l.b16 %v1021
        %v1053 = vpack.c.b16 %v1042, %v1041
        %v1054 = vpack.c.b16 %v1044, %v1043
        %v1055 = vpack.c.b16 %v1046, %v1045
        %v1056 = vpack.c.b16 %v1048, %v1047
        %v1057 = vpack.c.b16 %v1050, %v1049
        %v1058 = vpack.c.b16 %v1052, %v1051
        %vm1065 = vcmask 785408
        %v1067 = vsel %vm1065, %v994, 0
        %v1070 = vsel %vm1065, %v995, 0
        %v1073 = vsel %vm1065, %v996, 0
        %v1076 = vsel %vm1065, %v997, 0
        %v1079 = vsel %vm1065, %v998, 0
        %v1082 = vsel %vm1065, %v999, 0
        %v1085 = vsel %vm1065, %v1000, 0
        %v1088 = vsel %vm1065, %v1001, 0
        %v1091 = vsel %vm1065, %v1002, 0
        %v1094 = vsel %vm1065, %v1003, 0
        %v1097 = vsel %vm1065, %v1004, 0
        %v1100 = vsel %vm1065, %v1005, 0
        %v1103 = vsel %vm1065, %v1006, 0
        %v1106 = vsel %vm1065, %v1007, 0
        %v1109 = vsel %vm1065, %v1008, 0
        %v1112 = vsel %vm1065, %v1009, 0
        %1114 = vmatprep.subr.bf16.mxu0 0
        %1115 = vmatpush1.bf16.msra.mxu0 %v1053
        %1116 = vmatprep.subr.bf16.mxu0 0
        %1117 = vmatpush1.bf16.msra.mxu0 %v1054
        %1118 = vmatprep.subr.bf16.mxu0 0
        %1119 = vmatpush1.bf16.msra.mxu0 %v1055
        %1120 = vmatprep.subr.bf16.mxu0 0
        %1121 = vmatpush1.bf16.msra.mxu0 %v1056
        %1122 = vmatprep.subr.bf16.mxu0 0
        %1123 = vmatpush1.bf16.msra.mxu0 %v1057
        %1124 = vmatprep.subr.bf16.mxu0 0
        %1125 = vmatpush1.bf16.msra.mxu0 %v1058
        %1126 = vmatprep.subr.bf16.mxu0 0
        %1127 = vmatpush1.bf16.msra.mxu0 0
        %1128 = vmatprep.subr.bf16.mxu0 0
        %1129 = vmatpush1.bf16.msra.mxu0 0
        %1130 = vmatprep.subr.bf16.mxu0 0
        %1131 = vmatpush1.bf16.msra.mxu0 0
        %1132 = vmatprep.subr.bf16.mxu0 0
        %1133 = vmatpush1.bf16.msra.mxu0 0
        %1134 = vmatprep.subr.bf16.mxu0 0
        %1135 = vmatpush1.bf16.msra.mxu0 0
        %1136 = vmatprep.subr.bf16.mxu0 0
        %1137 = vmatpush1.bf16.msra.mxu0 0
        %1138 = vmatprep.subr.bf16.mxu0 0
        %1139 = vmatpush1.bf16.msra.mxu0 0
        %1140 = vmatprep.subr.bf16.mxu0 0
        %1141 = vmatpush1.bf16.msra.mxu0 0
        %1142 = vmatprep.subr.bf16.mxu0 0
        %1143 = vmatpush1.bf16.msra.mxu0 0
        %1144 = vmatprep.subr.bf16.mxu0 0
        %1145 = vmatpush1.bf16.msra.mxu0 0
        %1146 = vmatprep.mubr.bf16.mxu0 0
        %1147 = vmatmul.mubr.bf16.gmra.mrb[0].mxu0 %v1067
        %v1148 = vpop.f32.mrb[0].mxu0
        %v1149 = vadd.f32 %v1027, %v1148
        %v1150 = vpop.f32.mrb[0].mxu0
        %v1151 = vpop.f32.mrb[0].mxu0
        %v1152 = vadd.f32 %v1027, %v1151
        %v1153 = vpop.f32.mrb[0].mxu0
        %1154 = vmatprep.mubr.bf16.mxu0 0
        %1155 = vmatmul.mubr.bf16.gmra.mrb[0].mxu0 %v1070
        %v1156 = vpop.f32.mrb[0].mxu0
        %v1157 = vadd.f32 %v1027, %v1156
        %v1158 = vpop.f32.mrb[0].mxu0
        %v1159 = vpop.f32.mrb[0].mxu0
        %v1160 = vadd.f32 %v1027, %v1159
        %v1161 = vpop.f32.mrb[0].mxu0
        %1162 = vmatprep.mubr.bf16.mxu0 0
        %1163 = vmatmul.mubr.bf16.gmra.mrb[0].mxu0 %v1073
        %v1164 = vpop.f32.mrb[0].mxu0
        %v1165 = vadd.f32 %v1027, %v1164
        %v1166 = vpop.f32.mrb[0].mxu0
        %v1167 = vpop.f32.mrb[0].mxu0
        %v1168 = vadd.f32 %v1027, %v1167
        %v1169 = vpop.f32.mrb[0].mxu0
        %1170 = vmatprep.mubr.bf16.mxu0 0
        %1171 = vmatmul.mubr.bf16.gmra.mrb[0].mxu0 %v1076
        %v1172 = vpop.f32.mrb[0].mxu0
        %v1173 = vadd.f32 %v1027, %v1172
        %v1174 = vpop.f32.mrb[0].mxu0
        %v1175 = vpop.f32.mrb[0].mxu0
        %v1176 = vadd.f32 %v1027, %v1175
        %v1177 = vpop.f32.mrb[0].mxu0
        %1178 = vmatprep.mubr.bf16.mxu0 0
        %1179 = vmatmul.mubr.bf16.gmra.mrb[0].mxu0 %v1079
        %v1180 = vpop.f32.mrb[0].mxu0
        %v1181 = vadd.f32 %v1027, %v1180
        %v1182 = vpop.f32.mrb[0].mxu0
        %v1183 = vpop.f32.mrb[0].mxu0
        %v1184 = vadd.f32 %v1027, %v1183
        %v1185 = vpop.f32.mrb[0].mxu0
        %1186 = vmatprep.mubr.bf16.mxu0 0
        %1187 = vmatmul.mubr.bf16.gmra.mrb[0].mxu0 %v1082
        %v1188 = vpop.f32.mrb[0].mxu0
        %v1189 = vadd.f32 %v1027, %v1188
        %v1190 = vpop.f32.mrb[0].mxu0
        %v1191 = vpop.f32.mrb[0].mxu0
        %v1192 = vadd.f32 %v1027, %v1191
        %v1193 = vpop.f32.mrb[0].mxu0
        %1194 = vmatprep.mubr.bf16.mxu0 0
        %1195 = vmatmul.mubr.bf16.gmra.mrb[0].mxu0 %v1085
        %v1196 = vpop.f32.mrb[0].mxu0
        %v1197 = vadd.f32 %v1027, %v1196
        %v1198 = vpop.f32.mrb[0].mxu0
        %v1199 = vpop.f32.mrb[0].mxu0
        %v1200 = vadd.f32 %v1027, %v1199
        %v1201 = vpop.f32.mrb[0].mxu0
        %1202 = vmatprep.mubr.bf16.mxu0 0
        %1203 = vmatmul.mubr.bf16.gmra.mrb[0].mxu0 %v1088
        %v1204 = vpop.f32.mrb[0].mxu0
        %v1205 = vadd.f32 %v1027, %v1204
        %v1206 = vpop.f32.mrb[0].mxu0
        %v1207 = vpop.f32.mrb[0].mxu0
        %v1208 = vadd.f32 %v1027, %v1207
        %v1209 = vpop.f32.mrb[0].mxu0
        %1210 = vmatprep.mubr.bf16.mxu0 0
        %1211 = vmatmul.mubr.bf16.gmra.mrb[0].mxu0 %v1091
        %v1212 = vpop.f32.mrb[0].mxu0
        %v1213 = vadd.f32 %v1027, %v1212
        %v1214 = vpop.f32.mrb[0].mxu0
        %v1215 = vpop.f32.mrb[0].mxu0
        %v1216 = vadd.f32 %v1027, %v1215
        %v1217 = vpop.f32.mrb[0].mxu0
        %1218 = vmatprep.mubr.bf16.mxu0 0
        %1219 = vmatmul.mubr.bf16.gmra.mrb[0].mxu0 %v1094
        %v1220 = vpop.f32.mrb[0].mxu0
        %v1221 = vadd.f32 %v1027, %v1220
        %v1222 = vpop.f32.mrb[0].mxu0
        %v1223 = vpop.f32.mrb[0].mxu0
        %v1224 = vadd.f32 %v1027, %v1223
        %v1225 = vpop.f32.mrb[0].mxu0
        %1226 = vmatprep.mubr.bf16.mxu0 0
        %1227 = vmatmul.mubr.bf16.gmra.mrb[0].mxu0 %v1097
        %v1228 = vpop.f32.mrb[0].mxu0
        %v1229 = vadd.f32 %v1027, %v1228
        %v1230 = vpop.f32.mrb[0].mxu0
        %v1231 = vpop.f32.mrb[0].mxu0
        %v1232 = vadd.f32 %v1027, %v1231
        %v1233 = vpop.f32.mrb[0].mxu0
        %1234 = vmatprep.mubr.bf16.mxu0 0
        %1235 = vmatmul.mubr.bf16.gmra.mrb[0].mxu0 %v1100
        %v1236 = vpop.f32.mrb[0].mxu0
        %v1237 = vadd.f32 %v1027, %v1236
        %v1238 = vpop.f32.mrb[0].mxu0
        %v1239 = vpop.f32.mrb[0].mxu0
        %v1240 = vadd.f32 %v1027, %v1239
        %v1241 = vpop.f32.mrb[0].mxu0
        %1242 = vmatprep.mubr.bf16.mxu0 0
        %1243 = vmatmul.mubr.bf16.gmra.mrb[0].mxu0 %v1103
        %v1244 = vpop.f32.mrb[0].mxu0
        %v1245 = vadd.f32 %v1027, %v1244
        %v1246 = vpop.f32.mrb[0].mxu0
        %v1247 = vpop.f32.mrb[0].mxu0
        %v1248 = vadd.f32 %v1027, %v1247
        %v1249 = vpop.f32.mrb[0].mxu0
        %1250 = vmatprep.mubr.bf16.mxu0 0
        %1251 = vmatmul.mubr.bf16.gmra.mrb[0].mxu0 %v1106
        %v1252 = vpop.f32.mrb[0].mxu0
        %v1253 = vadd.f32 %v1027, %v1252
        %v1254 = vpop.f32.mrb[0].mxu0
        %v1255 = vpop.f32.mrb[0].mxu0
        %v1256 = vadd.f32 %v1027, %v1255
        %v1257 = vpop.f32.mrb[0].mxu0
        %1258 = vmatprep.mubr.bf16.mxu0 0
        %1259 = vmatmul.mubr.bf16.gmra.mrb[0].mxu0 %v1109
        %v1260 = vpop.f32.mrb[0].mxu0
        %v1261 = vadd.f32 %v1027, %v1260
        %v1262 = vpop.f32.mrb[0].mxu0
        %v1263 = vpop.f32.mrb[0].mxu0
        %v1264 = vadd.f32 %v1027, %v1263
        %v1265 = vpop.f32.mrb[0].mxu0
        %1266 = vmatprep.mubr.bf16.mxu0 0
        %1267 = vmatmul.mubr.bf16.gmra.mrb[0].mxu0 %v1112
        %v1268 = vpop.f32.mrb[0].mxu0
        %v1269 = vadd.f32 %v1027, %v1268
        %v1270 = vpop.f32.mrb[0].mxu0
        %v1271 = vpop.f32.mrb[0].mxu0
        %v1272 = vadd.f32 %v1027, %v1271
        %v1273 = vpop.f32.mrb[0].mxu0
        %1274 = vdwg.mxu0
        %vm1275 = vcmask 64512
        %1276 = vst.msk [vmem:[%s376] sm:$0xff] %vm1275, %v1149
        %1277 = vst.msk [vmem:[%s376 + $0x8] sm:$0xff] %vm1275, %v1152
        %1278 = vst.msk [vmem:[%s376 + $0x10] sm:$0xff] %vm1275, %v1157
        %1279 = vst.msk [vmem:[%s376 + $0x18] sm:$0xff] %vm1275, %v1160
        %1280 = vst.msk [vmem:[%s376 + $0x20] sm:$0xff] %vm1275, %v1165
        %1281 = vst.msk [vmem:[%s376 + $0x28] sm:$0xff] %vm1275, %v1168
        %1282 = vst.msk [vmem:[%s376 + $0x30] sm:$0xff] %vm1275, %v1173
        %1283 = vst.msk [vmem:[%s376 + $0x38] sm:$0xff] %vm1275, %v1176
        %1284 = vst.msk [vmem:[%s376 + $0x40] sm:$0xff] %vm1275, %v1181
        %1285 = vst.msk [vmem:[%s376 + $0x48] sm:$0xff] %vm1275, %v1184
        %1286 = vst.msk [vmem:[%s376 + $0x50] sm:$0xff] %vm1275, %v1189
        %1287 = vst.msk [vmem:[%s376 + $0x58] sm:$0xff] %vm1275, %v1192
        %1288 = vst.msk [vmem:[%s376 + $0x60] sm:$0xff] %vm1275, %v1197
        %1289 = vst.msk [vmem:[%s376 + $0x68] sm:$0xff] %vm1275, %v1200
        %1290 = vst.msk [vmem:[%s376 + $0x70] sm:$0xff] %vm1275, %v1205
        %1291 = vst.msk [vmem:[%s376 + $0x78] sm:$0xff] %vm1275, %v1208
        %1292 = vst.msk [vmem:[%s376 + $0x80] sm:$0xff] %vm1275, %v1213
        %1293 = vst.msk [vmem:[%s376 + $0x88] sm:$0xff] %vm1275, %v1216
        %1294 = vst.msk [vmem:[%s376 + $0x90] sm:$0xff] %vm1275, %v1221
        %1295 = vst.msk [vmem:[%s376 + $0x98] sm:$0xff] %vm1275, %v1224
        %1296 = vst.msk [vmem:[%s376 + $0xa0] sm:$0xff] %vm1275, %v1229
        %1297 = vst.msk [vmem:[%s376 + $0xa8] sm:$0xff] %vm1275, %v1232
        %1298 = vst.msk [vmem:[%s376 + $0xb0] sm:$0xff] %vm1275, %v1237
        %1299 = vst.msk [vmem:[%s376 + $0xb8] sm:$0xff] %vm1275, %v1240
        %1300 = vst.msk [vmem:[%s376 + $0xc0] sm:$0xff] %vm1275, %v1245
        %1301 = vst.msk [vmem:[%s376 + $0xc8] sm:$0xff] %vm1275, %v1248
        %1302 = vst.msk [vmem:[%s376 + $0xd0] sm:$0xff] %vm1275, %v1253
        %1303 = vst.msk [vmem:[%s376 + $0xd8] sm:$0xff] %vm1275, %v1256
        %1304 = vst.msk [vmem:[%s376 + $0xe0] sm:$0xff] %vm1275, %v1261
        %1305 = vst.msk [vmem:[%s376 + $0xe8] sm:$0xff] %vm1275, %v1264
        %1306 = vst.msk [vmem:[%s376 + $0xf0] sm:$0xff] %vm1275, %v1269
        %1307 = vst.msk [vmem:[%s376 + $0xf8] sm:$0xff] %vm1275, %v1272
        %s1308 = smul.u32 32, %s23
        %p1309 = scmp.lt.s32.totalorder %s1308, 63
        %s1310 = scalar_select %p1309, %s1308, 63
        %s1311 = smul.addr %s1310, 8
        %s1312 = scalar_lea.vmem %s7, %s1311
        %s1313 = smul.u32 32, %s23
        %p1314 = scmp.lt.s32.totalorder %s1313, 63
        %s1315 = scalar_select %p1314, %s1313, 63
        %s1316 = smul.addr %s1315, 8
        %s1317 = scalar_lea.vmem %s8, %s1316
        // Predicated region
        $region65: #{forward.4} parent=47 // pred_check
          %p1318 = pneg %p193
        $region66: #{forward.4} parent=47 // pred_check_branch
          %1320 = sbr.rel (%p1318) target = $region68
        $region67: #{forward.4} parent=47 // pred_region
          %s1321 = smul.u32 32, %s23
        $region68: #{forward.4} parent=47 // pred_fallthru
          _
        // Predicated region
        $region69: #{forward.4} parent=47 // pred_check
          %p1322 = pneg %p219
        $region70: #{forward.4} parent=47 // pred_check_branch
          %1324 = sbr.rel (%p1322) target = $region72
        $region71: #{forward.4} parent=47 // pred_region
          %s1325 = smul.u32 32, %s23
        $region72: #{forward.4} parent=47 // pred_fallthru
          _
      $region48: #{forward.4} parent=5 // pred_fallthru
        _
      %p1326 = scmp.le.s32.totalorder 2, %s18
      // Predicated region
      $region73: #{forward.4} parent=5 // pred_check
        %p1327 = pneg %p1326
      $region74: #{forward.4} parent=5 // pred_check_branch
        %1329 = sbr.rel (%p1327) target = $region76
      $region75: #{forward.4} parent=5 // pred_region
        %s1330 = ssub.s32 %s18, 2
        // Predicated region
        $region77: #{forward.4} parent=75 // pred_check
          %p1331 = pneg %p199
        $region78: #{forward.4} parent=75 // pred_check_branch
          %1333 = sbr.rel (%p1331) target = $region80
        $region79: #{forward.4} parent=75 // pred_region
          %s1334 = smul.u32 32, %s24
          %p1335 = scmp.lt.s32.totalorder %s1334, 63
          %s1336 = scalar_select %p1335, %s1334, 63
          %s1337 = smul.addr %s1336, 8
          %s1338 = scalar_lea.vmem %s7, %s1337
        $region80: #{forward.4} parent=75 // pred_fallthru
          _
        // Predicated region
        $region81: #{forward.4} parent=75 // pred_check
          %p1339 = pneg %p225
        $region82: #{forward.4} parent=75 // pred_check_branch
          %1341 = sbr.rel (%p1339) target = $region84
        $region83: #{forward.4} parent=75 // pred_region
          %s1342 = smul.u32 32, %s24
          %p1343 = scmp.lt.s32.totalorder %s1342, 63
          %s1344 = scalar_select %p1343, %s1342, 63
          %s1345 = smul.addr %s1344, 8
          %s1346 = scalar_lea.vmem %s8, %s1345
        $region84: #{forward.4} parent=75 // pred_fallthru
          _
      $region76: #{forward.4} parent=5 // pred_fallthru
        _
    $region6: #{forward.4} parent=1 // loop_footer
      %s22 = sadd.s32 1, %s18
    $region7: #{forward.4} parent=1 // loop_footer_branch
      %17 = sbr.rel target = $region3
    $region8: #{forward.4} parent=1 // loop_exit
      _
    %1347 = vsyncpa [#allocation3], 1
    %s1348 = scalar_lea.sflag [#allocation3], 1
    %1349 = vsyncpa %s1348, 1
    %1350 = vsyncpa [#allocation5], 1
    %1351 = vsyncpa [#allocation8], 1

// kernel: squeeze.30
$region0: #{squeeze.30}
  %s0 = inlined_call_operand.vmem [shape: f32[576,32], index: 0, kind: input, shape index: {}]
  %s1 = inlined_call_operand.vmem [shape: f32[64,3,3,32], index: 1, kind: output, shape index: {}]
  $region1: #{squeeze.30} parent=0
    #allocation0 [shape = 'u8[786432]{0}', space=vmem, size = 0xc0000, scoped, tag = 'scoped mem for output reshape']
    %v2 = vld [vmem:[%s0] sm:$0xff]
    %vm3 = vcmask 261120
    %4 = vst.msk [vmem:[#allocation0] sm:$0x7] %vm3, %v2
    %s5 = scalar_lea.vmem [#allocation0], 5
    %6 = vst.msk [vmem:[%s5] sm:$0x38] %vm3, %v2
    %s7 = scalar_lea.vmem [#allocation0], 10
    %8 = vst.msk [vmem:[%s7] sm:$0xc0] %vm3, %v2
    %s9 = scalar_lea.vmem %s0, 8
    %v10 = vld [vmem:[%s9] sm:$0xff]
    %vm11 = vcmask 261120
    %s12 = scalar_lea.vmem [#allocation0], 18
    %13 = vst.msk [vmem:[%s12] ss:$6 sm:$0x3] %vm11, %v10
    %s14 = scalar_lea.vmem [#allocation0], 23
    %15 = vst.msk [vmem:[%s14] sm:$0xc] %vm11, %v10
    %s16 = scalar_lea.vmem [#allocation0], 28
    %17 = vst.msk [vmem:[%s16] sm:$0x70] %vm11, %v10
    %s18 = scalar_lea.vmem [#allocation0], 33
    %19 = vst.msk [vmem:[%s18] sm:$0x80] %vm11, %v10
    %s20 = scalar_lea.vmem %s0, 16
    %v21 = vld [vmem:[%s20] sm:$0xff]
    %vm22 = vcmask 261120
    %s23 = scalar_lea.vmem [#allocation0], 41
    %24 = vst.msk [vmem:[%s23] sm:$0x3] %vm22, %v21
    %s25 = scalar_lea.vmem [#allocation0], 46
    %26 = vst.msk [vmem:[%s25] sm:$0x1c] %vm22, %v21
    %s27 = scalar_lea.vmem [#allocation0], 51
    %28 = vst.msk [vmem:[%s27] sm:$0xe0] %vm22, %v21
    %s29 = scalar_lea.vmem %s0, 24
    %v30 = vld [vmem:[%s29] sm:$0xff]
    %vm31 = vcmask 261120
    %s32 = scalar_lea.vmem [#allocation0], 64
    %33 = vst.msk [vmem:[%s32] sm:$0x7] %vm31, %v30
    %s34 = scalar_lea.vmem [#allocation0], 69
    %35 = vst.msk [vmem:[%s34] sm:$0x38] %vm31, %v30
    %s36 = scalar_lea.vmem [#allocation0], 74
    %37 = vst.msk [vmem:[%s36] sm:$0xc0] %vm31, %v30
    %s38 = scalar_lea.vmem %s0, 32
    %v39 = vld [vmem:[%s38] sm:$0xff]
    %vm40 = vcmask 261120
    %s41 = scalar_lea.vmem [#allocation0], 82
    %42 = vst.msk [vmem:[%s41] ss:$6 sm:$0x3] %vm40, %v39
    %s43 = scalar_lea.vmem [#allocation0], 87
    %44 = vst.msk [vmem:[%s43] sm:$0xc] %vm40, %v39
    %s45 = scalar_lea.vmem [#allocation0], 92
    %46 = vst.msk [vmem:[%s45] sm:$0x70] %vm40, %v39
    %s47 = scalar_lea.vmem [#allocation0], 97
    %48 = vst.msk [vmem:[%s47] sm:$0x80] %vm40, %v39
    %s49 = scalar_lea.vmem %s0, 40
    %v50 = vld [vmem:[%s49] sm:$0xff]
    %vm51 = vcmask 261120
    %s52 = scalar_lea.vmem [#allocation0], 105
    %53 = vst.msk [vmem:[%s52] sm:$0x3] %vm51, %v50
    %s54 = scalar_lea.vmem [#allocation0], 110
    %55 = vst.msk [vmem:[%s54] sm:$0x1c] %vm51, %v50
    %s56 = scalar_lea.vmem [#allocation0], 115
    %57 = vst.msk [vmem:[%s56] sm:$0xe0] %vm51, %v50
    %s58 = scalar_lea.vmem %s0, 48
    %v59 = vld [vmem:[%s58] sm:$0xff]
    %vm60 = vcmask 261120
    %s61 = scalar_lea.vmem [#allocation0], 128
    %62 = vst.msk [vmem:[%s61] sm:$0x7] %vm60, %v59
    %s63 = scalar_lea.vmem [#allocation0], 133
    %64 = vst.msk [vmem:[%s63] sm:$0x38] %vm60, %v59
    %s65 = scalar_lea.vmem [#allocation0], 138
    %66 = vst.msk [vmem:[%s65] sm:$0xc0] %vm60, %v59
    %s67 = scalar_lea.vmem %s0, 56
    %v68 = vld [vmem:[%s67] sm:$0xff]
    %vm69 = vcmask 261120
    %s70 = scalar_lea.vmem [#allocation0], 146
    %71 = vst.msk [vmem:[%s70] ss:$6 sm:$0x3] %vm69, %v68
    %s72 = scalar_lea.vmem [#allocation0], 151
    %73 = vst.msk [vmem:[%s72] sm:$0xc] %vm69, %v68
    %s74 = scalar_lea.vmem [#allocation0], 156
    %75 = vst.msk [vmem:[%s74] sm:$0x70] %vm69, %v68
    %s76 = scalar_lea.vmem [#allocation0], 161
    %77 = vst.msk [vmem:[%s76] sm:$0x80] %vm69, %v68
    %s78 = scalar_lea.vmem %s0, 64
    %v79 = vld [vmem:[%s78] sm:$0xff]
    %vm80 = vcmask 261120
    %s81 = scalar_lea.vmem [#allocation0], 169
    %82 = vst.msk [vmem:[%s81] sm:$0x3] %vm80, %v79
    %s83 = scalar_lea.vmem [#allocation0], 174
    %84 = vst.msk [vmem:[%s83] sm:$0x1c] %vm80, %v79
    %s85 = scalar_lea.vmem [#allocation0], 179
    %86 = vst.msk [vmem:[%s85] sm:$0xe0] %vm80, %v79
    %s87 = scalar_lea.vmem %s0, 72
    %v88 = vld [vmem:[%s87] sm:$0xff]
    %vm89 = vcmask 261120
    %s90 = scalar_lea.vmem [#allocation0], 192
    %91 = vst.msk [vmem:[%s90] sm:$0x7] %vm89, %v88
    %s92 = scalar_lea.vmem [#allocation0], 197
    %93 = vst.msk [vmem:[%s92] sm:$0x38] %vm89, %v88
    %s94 = scalar_lea.vmem [#allocation0], 202
    %95 = vst.msk [vmem:[%s94] sm:$0xc0] %vm89, %v88
    %s96 = scalar_lea.vmem %s0, 80
    %v97 = vld [vmem:[%s96] sm:$0xff]
    %vm98 = vcmask 261120
    %s99 = scalar_lea.vmem [#allocation0], 210
    %100 = vst.msk [vmem:[%s99] ss:$6 sm:$0x3] %vm98, %v97
    %s101 = scalar_lea.vmem [#allocation0], 215
    %102 = vst.msk [vmem:[%s101] sm:$0xc] %vm98, %v97
    %s103 = scalar_lea.vmem [#allocation0], 220
    %104 = vst.msk [vmem:[%s103] sm:$0x70] %vm98, %v97
    %s105 = scalar_lea.vmem [#allocation0], 225
    %106 = vst.msk [vmem:[%s105] sm:$0x80] %vm98, %v97
    %s107 = scalar_lea.vmem %s0, 88
    %v108 = vld [vmem:[%s107] sm:$0xff]
    %vm109 = vcmask 261120
    %s110 = scalar_lea.vmem [#allocation0], 233
    %111 = vst.msk [vmem:[%s110] sm:$0x3] %vm109, %v108
    %s112 = scalar_lea.vmem [#allocation0], 238
    %113 = vst.msk [vmem:[%s112] sm:$0x1c] %vm109, %v108
    %s114 = scalar_lea.vmem [#allocation0], 243
    %115 = vst.msk [vmem:[%s114] sm:$0xe0] %vm109, %v108
    %s116 = scalar_lea.vmem %s0, 96
    %v117 = vld [vmem:[%s116] sm:$0xff]
    %vm118 = vcmask 261120
    %s119 = scalar_lea.vmem [#allocation0], 256
    %120 = vst.msk [vmem:[%s119] sm:$0x7] %vm118, %v117
    %s121 = scalar_lea.vmem [#allocation0], 261
    %122 = vst.msk [vmem:[%s121] sm:$0x38] %vm118, %v117
    %s123 = scalar_lea.vmem [#allocation0], 266
    %124 = vst.msk [vmem:[%s123] sm:$0xc0] %vm118, %v117
    %s125 = scalar_lea.vmem %s0, 104
    %v126 = vld [vmem:[%s125] sm:$0xff]
    %vm127 = vcmask 261120
    %s128 = scalar_lea.vmem [#allocation0], 274
    %129 = vst.msk [vmem:[%s128] ss:$6 sm:$0x3] %vm127, %v126
    %s130 = scalar_lea.vmem [#allocation0], 279
    %131 = vst.msk [vmem:[%s130] sm:$0xc] %vm127, %v126
    %s132 = scalar_lea.vmem [#allocation0], 284
    %133 = vst.msk [vmem:[%s132] sm:$0x70] %vm127, %v126
    %s134 = scalar_lea.vmem [#allocation0], 289
    %135 = vst.msk [vmem:[%s134] sm:$0x80] %vm127, %v126
    %s136 = scalar_lea.vmem %s0, 112
    %v137 = vld [vmem:[%s136] sm:$0xff]
    %vm138 = vcmask 261120
    %s139 = scalar_lea.vmem [#allocation0], 297
    %140 = vst.msk [vmem:[%s139] sm:$0x3] %vm138, %v137
    %s141 = scalar_lea.vmem [#allocation0], 302
    %142 = vst.msk [vmem:[%s141] sm:$0x1c] %vm138, %v137
    %s143 = scalar_lea.vmem [#allocation0], 307
    %144 = vst.msk [vmem:[%s143] sm:$0xe0] %vm138, %v137
    %s145 = scalar_lea.vmem %s0, 120
    %v146 = vld [vmem:[%s145] sm:$0xff]
    %vm147 = vcmask 261120
    %s148 = scalar_lea.vmem [#allocation0], 320
    %149 = vst.msk [vmem:[%s148] sm:$0x7] %vm147, %v146
    %s150 = scalar_lea.vmem [#allocation0], 325
    %151 = vst.msk [vmem:[%s150] sm:$0x38] %vm147, %v146
    %s152 = scalar_lea.vmem [#allocation0], 330
    %153 = vst.msk [vmem:[%s152] sm:$0xc0] %vm147, %v146
    %s154 = scalar_lea.vmem %s0, 128
    %v155 = vld [vmem:[%s154] sm:$0xff]
    %vm156 = vcmask 261120
    %s157 = scalar_lea.vmem [#allocation0], 338
    %158 = vst.msk [vmem:[%s157] ss:$6 sm:$0x3] %vm156, %v155
    %s159 = scalar_lea.vmem [#allocation0], 343
    %160 = vst.msk [vmem:[%s159] sm:$0xc] %vm156, %v155
    %s161 = scalar_lea.vmem [#allocation0], 348
    %162 = vst.msk [vmem:[%s161] sm:$0x70] %vm156, %v155
    %s163 = scalar_lea.vmem [#allocation0], 353
    %164 = vst.msk [vmem:[%s163] sm:$0x80] %vm156, %v155
    %s165 = scalar_lea.vmem %s0, 136
    %v166 = vld [vmem:[%s165] sm:$0xff]
    %vm167 = vcmask 261120
    %s168 = scalar_lea.vmem [#allocation0], 361
    %169 = vst.msk [vmem:[%s168] sm:$0x3] %vm167, %v166
    %s170 = scalar_lea.vmem [#allocation0], 366
    %171 = vst.msk [vmem:[%s170] sm:$0x1c] %vm167, %v166
    %s172 = scalar_lea.vmem [#allocation0], 371
    %173 = vst.msk [vmem:[%s172] sm:$0xe0] %vm167, %v166
    %s174 = scalar_lea.vmem %s0, 144
    %v175 = vld [vmem:[%s174] sm:$0xff]
    %vm176 = vcmask 261120
    %s177 = scalar_lea.vmem [#allocation0], 384
    %178 = vst.msk [vmem:[%s177] sm:$0x7] %vm176, %v175
    %s179 = scalar_lea.vmem [#allocation0], 389
    %180 = vst.msk [vmem:[%s179] sm:$0x38] %vm176, %v175
    %s181 = scalar_lea.vmem [#allocation0], 394
    %182 = vst.msk [vmem:[%s181] sm:$0xc0] %vm176, %v175
    %s183 = scalar_lea.vmem %s0, 152
    %v184 = vld [vmem:[%s183] sm:$0xff]
    %vm185 = vcmask 261120
    %s186 = scalar_lea.vmem [#allocation0], 402
    %187 = vst.msk [vmem:[%s186] ss:$6 sm:$0x3] %vm185, %v184
    %s188 = scalar_lea.vmem [#allocation0], 407
    %189 = vst.msk [vmem:[%s188] sm:$0xc] %vm185, %v184
    %s190 = scalar_lea.vmem [#allocation0], 412
    %191 = vst.msk [vmem:[%s190] sm:$0x70] %vm185, %v184
    %s192 = scalar_lea.vmem [#allocation0], 417
    %193 = vst.msk [vmem:[%s192] sm:$0x80] %vm185, %v184
    %s194 = scalar_lea.vmem %s0, 160
    %v195 = vld [vmem:[%s194] sm:$0xff]
    %vm196 = vcmask 261120
    %s197 = scalar_lea.vmem [#allocation0], 425
    %198 = vst.msk [vmem:[%s197] sm:$0x3] %vm196, %v195
    %s199 = scalar_lea.vmem [#allocation0], 430
    %200 = vst.msk [vmem:[%s199] sm:$0x1c] %vm196, %v195
    %s201 = scalar_lea.vmem [#allocation0], 435
    %202 = vst.msk [vmem:[%s201] sm:$0xe0] %vm196, %v195
    %s203 = scalar_lea.vmem %s0, 168
    %v204 = vld [vmem:[%s203] sm:$0xff]
    %vm205 = vcmask 261120
    %s206 = scalar_lea.vmem [#allocation0], 448
    %207 = vst.msk [vmem:[%s206] sm:$0x7] %vm205, %v204
    %s208 = scalar_lea.vmem [#allocation0], 453
    %209 = vst.msk [vmem:[%s208] sm:$0x38] %vm205, %v204
    %s210 = scalar_lea.vmem [#allocation0], 458
    %211 = vst.msk [vmem:[%s210] sm:$0xc0] %vm205, %v204
    %s212 = scalar_lea.vmem %s0, 176
    %v213 = vld [vmem:[%s212] sm:$0xff]
    %vm214 = vcmask 261120
    %s215 = scalar_lea.vmem [#allocation0], 466
    %216 = vst.msk [vmem:[%s215] ss:$6 sm:$0x3] %vm214, %v213
    %s217 = scalar_lea.vmem [#allocation0], 471
    %218 = vst.msk [vmem:[%s217] sm:$0xc] %vm214, %v213
    %s219 = scalar_lea.vmem [#allocation0], 476
    %220 = vst.msk [vmem:[%s219] sm:$0x70] %vm214, %v213
    %s221 = scalar_lea.vmem [#allocation0], 481
    %222 = vst.msk [vmem:[%s221] sm:$0x80] %vm214, %v213
    %s223 = scalar_lea.vmem %s0, 184
    %v224 = vld [vmem:[%s223] sm:$0xff]
    %vm225 = vcmask 261120
    %s226 = scalar_lea.vmem [#allocation0], 489
    %227 = vst.msk [vmem:[%s226] sm:$0x3] %vm225, %v224
    %s228 = scalar_lea.vmem [#allocation0], 494
    %229 = vst.msk [vmem:[%s228] sm:$0x1c] %vm225, %v224
    %s230 = scalar_lea.vmem [#allocation0], 499
    %231 = vst.msk [vmem:[%s230] sm:$0xe0] %vm225, %v224
    %s232 = scalar_lea.vmem %s0, 192
    %v233 = vld [vmem:[%s232] sm:$0xff]
    %vm234 = vcmask 261120
    %s235 = scalar_lea.vmem [#allocation0], 512
    %236 = vst.msk [vmem:[%s235] sm:$0x7] %vm234, %v233
    %s237 = scalar_lea.vmem [#allocation0], 517
    %238 = vst.msk [vmem:[%s237] sm:$0x38] %vm234, %v233
    %s239 = scalar_lea.vmem [#allocation0], 522
    %240 = vst.msk [vmem:[%s239] sm:$0xc0] %vm234, %v233
    %s241 = scalar_lea.vmem %s0, 200
    %v242 = vld [vmem:[%s241] sm:$0xff]
    %vm243 = vcmask 261120
    %s244 = scalar_lea.vmem [#allocation0], 530
    %245 = vst.msk [vmem:[%s244] ss:$6 sm:$0x3] %vm243, %v242
    %s246 = scalar_lea.vmem [#allocation0], 535
    %247 = vst.msk [vmem:[%s246] sm:$0xc] %vm243, %v242
    %s248 = scalar_lea.vmem [#allocation0], 540
    %249 = vst.msk [vmem:[%s248] sm:$0x70] %vm243, %v242
    %s250 = scalar_lea.vmem [#allocation0], 545
    %251 = vst.msk [vmem:[%s250] sm:$0x80] %vm243, %v242
    %s252 = scalar_lea.vmem %s0, 208
    %v253 = vld [vmem:[%s252] sm:$0xff]
    %vm254 = vcmask 261120
    %s255 = scalar_lea.vmem [#allocation0], 553
    %256 = vst.msk [vmem:[%s255] sm:$0x3] %vm254, %v253
    %s257 = scalar_lea.vmem [#allocation0], 558
    %258 = vst.msk [vmem:[%s257] sm:$0x1c] %vm254, %v253
    %s259 = scalar_lea.vmem [#allocation0], 563
    %260 = vst.msk [vmem:[%s259] sm:$0xe0] %vm254, %v253
    %s261 = scalar_lea.vmem %s0, 216
    %v262 = vld [vmem:[%s261] sm:$0xff]
    %vm263 = vcmask 261120
    %s264 = scalar_lea.vmem [#allocation0], 576
    %265 = vst.msk [vmem:[%s264] sm:$0x7] %vm263, %v262
    %s266 = scalar_lea.vmem [#allocation0], 581
    %267 = vst.msk [vmem:[%s266] sm:$0x38] %vm263, %v262
    %s268 = scalar_lea.vmem [#allocation0], 586
    %269 = vst.msk [vmem:[%s268] sm:$0xc0] %vm263, %v262
    %s270 = scalar_lea.vmem %s0, 224
    %v271 = vld [vmem:[%s270] sm:$0xff]
    %vm272 = vcmask 261120
    %s273 = scalar_lea.vmem [#allocation0], 594
    %274 = vst.msk [vmem:[%s273] ss:$6 sm:$0x3] %vm272, %v271
    %s275 = scalar_lea.vmem [#allocation0], 599
    %276 = vst.msk [vmem:[%s275] sm:$0xc] %vm272, %v271
    %s277 = scalar_lea.vmem [#allocation0], 604
    %278 = vst.msk [vmem:[%s277] sm:$0x70] %vm272, %v271
    %s279 = scalar_lea.vmem [#allocation0], 609
    %280 = vst.msk [vmem:[%s279] sm:$0x80] %vm272, %v271
    %s281 = scalar_lea.vmem %s0, 232
    %v282 = vld [vmem:[%s281] sm:$0xff]
    %vm283 = vcmask 261120
    %s284 = scalar_lea.vmem [#allocation0], 617
    %285 = vst.msk [vmem:[%s284] sm:$0x3] %vm283, %v282
    %s286 = scalar_lea.vmem [#allocation0], 622
    %287 = vst.msk [vmem:[%s286] sm:$0x1c] %vm283, %v282
    %s288 = scalar_lea.vmem [#allocation0], 627
    %289 = vst.msk [vmem:[%s288] sm:$0xe0] %vm283, %v282
    %s290 = scalar_lea.vmem %s0, 240
    %v291 = vld [vmem:[%s290] sm:$0xff]
    %vm292 = vcmask 261120
    %s293 = scalar_lea.vmem [#allocation0], 640
    %294 = vst.msk [vmem:[%s293] sm:$0x7] %vm292, %v291
    %s295 = scalar_lea.vmem [#allocation0], 645
    %296 = vst.msk [vmem:[%s295] sm:$0x38] %vm292, %v291
    %s297 = scalar_lea.vmem [#allocation0], 650
    %298 = vst.msk [vmem:[%s297] sm:$0xc0] %vm292, %v291
    %s299 = scalar_lea.vmem %s0, 248
    %v300 = vld [vmem:[%s299] sm:$0xff]
    %vm301 = vcmask 261120
    %s302 = scalar_lea.vmem [#allocation0], 658
    %303 = vst.msk [vmem:[%s302] ss:$6 sm:$0x3] %vm301, %v300
    %s304 = scalar_lea.vmem [#allocation0], 663
    %305 = vst.msk [vmem:[%s304] sm:$0xc] %vm301, %v300
    %s306 = scalar_lea.vmem [#allocation0], 668
    %307 = vst.msk [vmem:[%s306] sm:$0x70] %vm301, %v300
    %s308 = scalar_lea.vmem [#allocation0], 673
    %309 = vst.msk [vmem:[%s308] sm:$0x80] %vm301, %v300
    %s310 = scalar_lea.vmem %s0, 256
    %v311 = vld [vmem:[%s310] sm:$0xff]
    %vm312 = vcmask 261120
    %s313 = scalar_lea.vmem [#allocation0], 681
    %314 = vst.msk [vmem:[%s313] sm:$0x3] %vm312, %v311
    %s315 = scalar_lea.vmem [#allocation0], 686
    %316 = vst.msk [vmem:[%s315] sm:$0x1c] %vm312, %v311
    %s317 = scalar_lea.vmem [#allocation0], 691
    %318 = vst.msk [vmem:[%s317] sm:$0xe0] %vm312, %v311
    %s319 = scalar_lea.vmem %s0, 264
    %v320 = vld [vmem:[%s319] sm:$0xff]
    %vm321 = vcmask 261120
    %s322 = scalar_lea.vmem [#allocation0], 704
    %323 = vst.msk [vmem:[%s322] sm:$0x7] %vm321, %v320
    %s324 = scalar_lea.vmem [#allocation0], 709
    %325 = vst.msk [vmem:[%s324] sm:$0x38] %vm321, %v320
    %s326 = scalar_lea.vmem [#allocation0], 714
    %327 = vst.msk [vmem:[%s326] sm:$0xc0] %vm321, %v320
    %s328 = scalar_lea.vmem %s0, 272
    %v329 = vld [vmem:[%s328] sm:$0xff]
    %vm330 = vcmask 261120
    %s331 = scalar_lea.vmem [#allocation0], 722
    %332 = vst.msk [vmem:[%s331] ss:$6 sm:$0x3] %vm330, %v329
    %s333 = scalar_lea.vmem [#allocation0], 727
    %334 = vst.msk [vmem:[%s333] sm:$0xc] %vm330, %v329
    %s335 = scalar_lea.vmem [#allocation0], 732
    %336 = vst.msk [vmem:[%s335] sm:$0x70] %vm330, %v329
    %s337 = scalar_lea.vmem [#allocation0], 737
    %338 = vst.msk [vmem:[%s337] sm:$0x80] %vm330, %v329
    %s339 = scalar_lea.vmem %s0, 280
    %v340 = vld [vmem:[%s339] sm:$0xff]
    %vm341 = vcmask 261120
    %s342 = scalar_lea.vmem [#allocation0], 745
    %343 = vst.msk [vmem:[%s342] sm:$0x3] %vm341, %v340
    %s344 = scalar_lea.vmem [#allocation0], 750
    %345 = vst.msk [vmem:[%s344] sm:$0x1c] %vm341, %v340
    %s346 = scalar_lea.vmem [#allocation0], 755
    %347 = vst.msk [vmem:[%s346] sm:$0xe0] %vm341, %v340
    %s348 = scalar_lea.vmem %s0, 288
    %v349 = vld [vmem:[%s348] sm:$0xff]
    %vm350 = vcmask 261120
    %s351 = scalar_lea.vmem [#allocation0], 768
    %352 = vst.msk [vmem:[%s351] sm:$0x7] %vm350, %v349
    %s353 = scalar_lea.vmem [#allocation0], 773
    %354 = vst.msk [vmem:[%s353] sm:$0x38] %vm350, %v349
    %s355 = scalar_lea.vmem [#allocation0], 778
    %356 = vst.msk [vmem:[%s355] sm:$0xc0] %vm350, %v349
    %s357 = scalar_lea.vmem %s0, 296
    %v358 = vld [vmem:[%s357] sm:$0xff]
    %vm359 = vcmask 261120
    %s360 = scalar_lea.vmem [#allocation0], 786
    %361 = vst.msk [vmem:[%s360] ss:$6 sm:$0x3] %vm359, %v358
    %s362 = scalar_lea.vmem [#allocation0], 791
    %363 = vst.msk [vmem:[%s362] sm:$0xc] %vm359, %v358
    %s364 = scalar_lea.vmem [#allocation0], 796
    %365 = vst.msk [vmem:[%s364] sm:$0x70] %vm359, %v358
    %s366 = scalar_lea.vmem [#allocation0], 801
    %367 = vst.msk [vmem:[%s366] sm:$0x80] %vm359, %v358
    %s368 = scalar_lea.vmem %s0, 304
    %v369 = vld [vmem:[%s368] sm:$0xff]
    %vm370 = vcmask 261120
    %s371 = scalar_lea.vmem [#allocation0], 809
    %372 = vst.msk [vmem:[%s371] sm:$0x3] %vm370, %v369
    %s373 = scalar_lea.vmem [#allocation0], 814
    %374 = vst.msk [vmem:[%s373] sm:$0x1c] %vm370, %v369
    %s375 = scalar_lea.vmem [#allocation0], 819
    %376 = vst.msk [vmem:[%s375] sm:$0xe0] %vm370, %v369
    %s377 = scalar_lea.vmem %s0, 312
    %v378 = vld [vmem:[%s377] sm:$0xff]
    %vm379 = vcmask 261120
    %s380 = scalar_lea.vmem [#allocation0], 832
    %381 = vst.msk [vmem:[%s380] sm:$0x7] %vm379, %v378
    %s382 = scalar_lea.vmem [#allocation0], 837
    %383 = vst.msk [vmem:[%s382] sm:$0x38] %vm379, %v378
    %s384 = scalar_lea.vmem [#allocation0], 842
    %385 = vst.msk [vmem:[%s384] sm:$0xc0] %vm379, %v378
    %s386 = scalar_lea.vmem %s0, 320
    %v387 = vld [vmem:[%s386] sm:$0xff]
    %vm388 = vcmask 261120
    %s389 = scalar_lea.vmem [#allocation0], 850
    %390 = vst.msk [vmem:[%s389] ss:$6 sm:$0x3] %vm388, %v387
    %s391 = scalar_lea.vmem [#allocation0], 855
    %392 = vst.msk [vmem:[%s391] sm:$0xc] %vm388, %v387
    %s393 = scalar_lea.vmem [#allocation0], 860
    %394 = vst.msk [vmem:[%s393] sm:$0x70] %vm388, %v387
    %s395 = scalar_lea.vmem [#allocation0], 865
    %396 = vst.msk [vmem:[%s395] sm:$0x80] %vm388, %v387
    %s397 = scalar_lea.vmem %s0, 328
    %v398 = vld [vmem:[%s397] sm:$0xff]
    %vm399 = vcmask 261120
    %s400 = scalar_lea.vmem [#allocation0], 873
    %401 = vst.msk [vmem:[%s400] sm:$0x3] %vm399, %v398
    %s402 = scalar_lea.vmem [#allocation0], 878
    %403 = vst.msk [vmem:[%s402] sm:$0x1c] %vm399, %v398
    %s404 = scalar_lea.vmem [#allocation0], 883
    %405 = vst.msk [vmem:[%s404] sm:$0xe0] %vm399, %v398
    %s406 = scalar_lea.vmem %s0, 336
    %v407 = vld [vmem:[%s406] sm:$0xff]
    %vm408 = vcmask 261120
    %s409 = scalar_lea.vmem [#allocation0], 896
    %410 = vst.msk [vmem:[%s409] sm:$0x7] %vm408, %v407
    %s411 = scalar_lea.vmem [#allocation0], 901
    %412 = vst.msk [vmem:[%s411] sm:$0x38] %vm408, %v407
    %s413 = scalar_lea.vmem [#allocation0], 906
    %414 = vst.msk [vmem:[%s413] sm:$0xc0] %vm408, %v407
    %s415 = scalar_lea.vmem %s0, 344
    %v416 = vld [vmem:[%s415] sm:$0xff]
    %vm417 = vcmask 261120
    %s418 = scalar_lea.vmem [#allocation0], 914
    %419 = vst.msk [vmem:[%s418] ss:$6 sm:$0x3] %vm417, %v416
    %s420 = scalar_lea.vmem [#allocation0], 919
    %421 = vst.msk [vmem:[%s420] sm:$0xc] %vm417, %v416
    %s422 = scalar_lea.vmem [#allocation0], 924
    %423 = vst.msk [vmem:[%s422] sm:$0x70] %vm417, %v416
    %s424 = scalar_lea.vmem [#allocation0], 929
    %425 = vst.msk [vmem:[%s424] sm:$0x80] %vm417, %v416
    %s426 = scalar_lea.vmem %s0, 352
    %v427 = vld [vmem:[%s426] sm:$0xff]
    %vm428 = vcmask 261120
    %s429 = scalar_lea.vmem [#allocation0], 937
    %430 = vst.msk [vmem:[%s429] sm:$0x3] %vm428, %v427
    %s431 = scalar_lea.vmem [#allocation0], 942
    %432 = vst.msk [vmem:[%s431] sm:$0x1c] %vm428, %v427
    %s433 = scalar_lea.vmem [#allocation0], 947
    %434 = vst.msk [vmem:[%s433] sm:$0xe0] %vm428, %v427
    %s435 = scalar_lea.vmem %s0, 360
    %v436 = vld [vmem:[%s435] sm:$0xff]
    %vm437 = vcmask 261120
    %s438 = scalar_lea.vmem [#allocation0], 960
    %439 = vst.msk [vmem:[%s438] sm:$0x7] %vm437, %v436
    %s440 = scalar_lea.vmem [#allocation0], 965
    %441 = vst.msk [vmem:[%s440] sm:$0x38] %vm437, %v436
    %s442 = scalar_lea.vmem [#allocation0], 970
    %443 = vst.msk [vmem:[%s442] sm:$0xc0] %vm437, %v436
    %s444 = scalar_lea.vmem %s0, 368
    %v445 = vld [vmem:[%s444] sm:$0xff]
    %vm446 = vcmask 261120
    %s447 = scalar_lea.vmem [#allocation0], 978
    %448 = vst.msk [vmem:[%s447] ss:$6 sm:$0x3] %vm446, %v445
    %s449 = scalar_lea.vmem [#allocation0], 983
    %450 = vst.msk [vmem:[%s449] sm:$0xc] %vm446, %v445
    %s451 = scalar_lea.vmem [#allocation0], 988
    %452 = vst.msk [vmem:[%s451] sm:$0x70] %vm446, %v445
    %s453 = scalar_lea.vmem [#allocation0], 993
    %454 = vst.msk [vmem:[%s453] sm:$0x80] %vm446, %v445
    %s455 = scalar_lea.vmem %s0, 376
    %v456 = vld [vmem:[%s455] sm:$0xff]
    %vm457 = vcmask 261120
    %s458 = scalar_lea.vmem [#allocation0], 1001
    %459 = vst.msk [vmem:[%s458] sm:$0x3] %vm457, %v456
    %s460 = scalar_lea.vmem [#allocation0], 1006
    %461 = vst.msk [vmem:[%s460] sm:$0x1c] %vm457, %v456
    %s462 = scalar_lea.vmem [#allocation0], 1011
    %463 = vst.msk [vmem:[%s462] sm:$0xe0] %vm457, %v456
    %s464 = scalar_lea.vmem %s0, 384
    %v465 = vld [vmem:[%s464] sm:$0xff]
    %vm466 = vcmask 261120
    %s467 = scalar_lea.vmem [#allocation0], 1024
    %468 = vst.msk [vmem:[%s467] sm:$0x7] %vm466, %v465
    %s469 = scalar_lea.vmem [#allocation0], 1029
    %470 = vst.msk [vmem:[%s469] sm:$0x38] %vm466, %v465
    %s471 = scalar_lea.vmem [#allocation0], 1034
    %472 = vst.msk [vmem:[%s471] sm:$0xc0] %vm466, %v465
    %s473 = scalar_lea.vmem %s0, 392
    %v474 = vld [vmem:[%s473] sm:$0xff]
    %vm475 = vcmask 261120
    %s476 = scalar_lea.vmem [#allocation0], 1042
    %477 = vst.msk [vmem:[%s476] ss:$6 sm:$0x3] %vm475, %v474
    %s478 = scalar_lea.vmem [#allocation0], 1047
    %479 = vst.msk [vmem:[%s478] sm:$0xc] %vm475, %v474
    %s480 = scalar_lea.vmem [#allocation0], 1052
    %481 = vst.msk [vmem:[%s480] sm:$0x70] %vm475, %v474
    %s482 = scalar_lea.vmem [#allocation0], 1057
    %483 = vst.msk [vmem:[%s482] sm:$0x80] %vm475, %v474
    %s484 = scalar_lea.vmem %s0, 400
    %v485 = vld [vmem:[%s484] sm:$0xff]
    %vm486 = vcmask 261120
    %s487 = scalar_lea.vmem [#allocation0], 1065
    %488 = vst.msk [vmem:[%s487] sm:$0x3] %vm486, %v485
    %s489 = scalar_lea.vmem [#allocation0], 1070
    %490 = vst.msk [vmem:[%s489] sm:$0x1c] %vm486, %v485
    %s491 = scalar_lea.vmem [#allocation0], 1075
    %492 = vst.msk [vmem:[%s491] sm:$0xe0] %vm486, %v485
    %s493 = scalar_lea.vmem %s0, 408
    %v494 = vld [vmem:[%s493] sm:$0xff]
    %vm495 = vcmask 261120
    %s496 = scalar_lea.vmem [#allocation0], 1088
    %497 = vst.msk [vmem:[%s496] sm:$0x7] %vm495, %v494
    %s498 = scalar_lea.vmem [#allocation0], 1093
    %499 = vst.msk [vmem:[%s498] sm:$0x38] %vm495, %v494
    %s500 = scalar_lea.vmem [#allocation0], 1098
    %501 = vst.msk [vmem:[%s500] sm:$0xc0] %vm495, %v494
    %s502 = scalar_lea.vmem %s0, 416
    %v503 = vld [vmem:[%s502] sm:$0xff]
    %vm504 = vcmask 261120
    %s505 = scalar_lea.vmem [#allocation0], 1106
    %506 = vst.msk [vmem:[%s505] ss:$6 sm:$0x3] %vm504, %v503
    %s507 = scalar_lea.vmem [#allocation0], 1111
    %508 = vst.msk [vmem:[%s507] sm:$0xc] %vm504, %v503
    %s509 = scalar_lea.vmem [#allocation0], 1116
    %510 = vst.msk [vmem:[%s509] sm:$0x70] %vm504, %v503
    %s511 = scalar_lea.vmem [#allocation0], 1121
    %512 = vst.msk [vmem:[%s511] sm:$0x80] %vm504, %v503
    %s513 = scalar_lea.vmem %s0, 424
    %v514 = vld [vmem:[%s513] sm:$0xff]
    %vm515 = vcmask 261120
    %s516 = scalar_lea.vmem [#allocation0], 1129
    %517 = vst.msk [vmem:[%s516] sm:$0x3] %vm515, %v514
    %s518 = scalar_lea.vmem [#allocation0], 1134
    %519 = vst.msk [vmem:[%s518] sm:$0x1c] %vm515, %v514
    %s520 = scalar_lea.vmem [#allocation0], 1139
    %521 = vst.msk [vmem:[%s520] sm:$0xe0] %vm515, %v514
    %s522 = scalar_lea.vmem %s0, 432
    %v523 = vld [vmem:[%s522] sm:$0xff]
    %vm524 = vcmask 261120
    %s525 = scalar_lea.vmem [#allocation0], 1152
    %526 = vst.msk [vmem:[%s525] sm:$0x7] %vm524, %v523
    %s527 = scalar_lea.vmem [#allocation0], 1157
    %528 = vst.msk [vmem:[%s527] sm:$0x38] %vm524, %v523
    %s529 = scalar_lea.vmem [#allocation0], 1162
    %530 = vst.msk [vmem:[%s529] sm:$0xc0] %vm524, %v523
    %s531 = scalar_lea.vmem %s0, 440
    %v532 = vld [vmem:[%s531] sm:$0xff]
    %vm533 = vcmask 261120
    %s534 = scalar_lea.vmem [#allocation0], 1170
    %535 = vst.msk [vmem:[%s534] ss:$6 sm:$0x3] %vm533, %v532
    %s536 = scalar_lea.vmem [#allocation0], 1175
    %537 = vst.msk [vmem:[%s536] sm:$0xc] %vm533, %v532
    %s538 = scalar_lea.vmem [#allocation0], 1180
    %539 = vst.msk [vmem:[%s538] sm:$0x70] %vm533, %v532
    %s540 = scalar_lea.vmem [#allocation0], 1185
    %541 = vst.msk [vmem:[%s540] sm:$0x80] %vm533, %v532
    %s542 = scalar_lea.vmem %s0, 448
    %v543 = vld [vmem:[%s542] sm:$0xff]
    %vm544 = vcmask 261120
    %s545 = scalar_lea.vmem [#allocation0], 1193
    %546 = vst.msk [vmem:[%s545] sm:$0x3] %vm544, %v543
    %s547 = scalar_lea.vmem [#allocation0], 1198
    %548 = vst.msk [vmem:[%s547] sm:$0x1c] %vm544, %v543
    %s549 = scalar_lea.vmem [#allocation0], 1203
    %550 = vst.msk [vmem:[%s549] sm:$0xe0] %vm544, %v543
    %s551 = scalar_lea.vmem %s0, 456
    %v552 = vld [vmem:[%s551] sm:$0xff]
    %vm553 = vcmask 261120
    %s554 = scalar_lea.vmem [#allocation0], 1216
    %555 = vst.msk [vmem:[%s554] sm:$0x7] %vm553, %v552
    %s556 = scalar_lea.vmem [#allocation0], 1221
    %557 = vst.msk [vmem:[%s556] sm:$0x38] %vm553, %v552
    %s558 = scalar_lea.vmem [#allocation0], 1226
    %559 = vst.msk [vmem:[%s558] sm:$0xc0] %vm553, %v552
    %s560 = scalar_lea.vmem %s0, 464
    %v561 = vld [vmem:[%s560] sm:$0xff]
    %vm562 = vcmask 261120
    %s563 = scalar_lea.vmem [#allocation0], 1234
    %564 = vst.msk [vmem:[%s563] ss:$6 sm:$0x3] %vm562, %v561
    %s565 = scalar_lea.vmem [#allocation0], 1239
    %566 = vst.msk [vmem:[%s565] sm:$0xc] %vm562, %v561
    %s567 = scalar_lea.vmem [#allocation0], 1244
    %568 = vst.msk [vmem:[%s567] sm:$0x70] %vm562, %v561
    %s569 = scalar_lea.vmem [#allocation0], 1249
    %570 = vst.msk [vmem:[%s569] sm:$0x80] %vm562, %v561
    %s571 = scalar_lea.vmem %s0, 472
    %v572 = vld [vmem:[%s571] sm:$0xff]
    %vm573 = vcmask 261120
    %s574 = scalar_lea.vmem [#allocation0], 1257
    %575 = vst.msk [vmem:[%s574] sm:$0x3] %vm573, %v572
    %s576 = scalar_lea.vmem [#allocation0], 1262
    %577 = vst.msk [vmem:[%s576] sm:$0x1c] %vm573, %v572
    %s578 = scalar_lea.vmem [#allocation0], 1267
    %579 = vst.msk [vmem:[%s578] sm:$0xe0] %vm573, %v572
    %s580 = scalar_lea.vmem %s0, 480
    %v581 = vld [vmem:[%s580] sm:$0xff]
    %vm582 = vcmask 261120
    %s583 = scalar_lea.vmem [#allocation0], 1280
    %584 = vst.msk [vmem:[%s583] sm:$0x7] %vm582, %v581
    %s585 = scalar_lea.vmem [#allocation0], 1285
    %586 = vst.msk [vmem:[%s585] sm:$0x38] %vm582, %v581
    %s587 = scalar_lea.vmem [#allocation0], 1290
    %588 = vst.msk [vmem:[%s587] sm:$0xc0] %vm582, %v581
    %s589 = scalar_lea.vmem %s0, 488
    %v590 = vld [vmem:[%s589] sm:$0xff]
    %vm591 = vcmask 261120
    %s592 = scalar_lea.vmem [#allocation0], 1298
    %593 = vst.msk [vmem:[%s592] ss:$6 sm:$0x3] %vm591, %v590
    %s594 = scalar_lea.vmem [#allocation0], 1303
    %595 = vst.msk [vmem:[%s594] sm:$0xc] %vm591, %v590
    %s596 = scalar_lea.vmem [#allocation0], 1308
    %597 = vst.msk [vmem:[%s596] sm:$0x70] %vm591, %v590
    %s598 = scalar_lea.vmem [#allocation0], 1313
    %599 = vst.msk [vmem:[%s598] sm:$0x80] %vm591, %v590
    %s600 = scalar_lea.vmem %s0, 496
    %v601 = vld [vmem:[%s600] sm:$0xff]
    %vm602 = vcmask 261120
    %s603 = scalar_lea.vmem [#allocation0], 1321
    %604 = vst.msk [vmem:[%s603] sm:$0x3] %vm602, %v601
    %s605 = scalar_lea.vmem [#allocation0], 1326
    %606 = vst.msk [vmem:[%s605] sm:$0x1c] %vm602, %v601
    %s607 = scalar_lea.vmem [#allocation0], 1331
    %608 = vst.msk [vmem:[%s607] sm:$0xe0] %vm602, %v601
    %s609 = scalar_lea.vmem %s0, 504
    %v610 = vld [vmem:[%s609] sm:$0xff]
    %vm611 = vcmask 261120
    %s612 = scalar_lea.vmem [#allocation0], 1344
    %613 = vst.msk [vmem:[%s612] sm:$0x7] %vm611, %v610
    %s614 = scalar_lea.vmem [#allocation0], 1349
    %615 = vst.msk [vmem:[%s614] sm:$0x38] %vm611, %v610
    %s616 = scalar_lea.vmem [#allocation0], 1354
    %617 = vst.msk [vmem:[%s616] sm:$0xc0] %vm611, %v610
    %s618 = scalar_lea.vmem %s0, 512
    %v619 = vld [vmem:[%s618] sm:$0xff]
    %vm620 = vcmask 261120
    %s621 = scalar_lea.vmem [#allocation0], 1362
    %622 = vst.msk [vmem:[%s621] ss:$6 sm:$0x3] %vm620, %v619
    %s623 = scalar_lea.vmem [#allocation0], 1367
    %624 = vst.msk [vmem:[%s623] sm:$0xc] %vm620, %v619
    %s625 = scalar_lea.vmem [#allocation0], 1372
    %626 = vst.msk [vmem:[%s625] sm:$0x70] %vm620, %v619
    %s627 = scalar_lea.vmem [#allocation0], 1377
    %628 = vst.msk [vmem:[%s627] sm:$0x80] %vm620, %v619
    %s629 = scalar_lea.vmem %s0, 520
    %v630 = vld [vmem:[%s629] sm:$0xff]
    %vm631 = vcmask 261120
    %s632 = scalar_lea.vmem [#allocation0], 1385
    %633 = vst.msk [vmem:[%s632] sm:$0x3] %vm631, %v630
    %s634 = scalar_lea.vmem [#allocation0], 1390
    %635 = vst.msk [vmem:[%s634] sm:$0x1c] %vm631, %v630
    %s636 = scalar_lea.vmem [#allocation0], 1395
    %637 = vst.msk [vmem:[%s636] sm:$0xe0] %vm631, %v630
    %s638 = scalar_lea.vmem %s0, 528
    %v639 = vld [vmem:[%s638] sm:$0xff]
    %vm640 = vcmask 261120
    %s641 = scalar_lea.vmem [#allocation0], 1408
    %642 = vst.msk [vmem:[%s641] sm:$0x7] %vm640, %v639
    %s643 = scalar_lea.vmem [#allocation0], 1413
    %644 = vst.msk [vmem:[%s643] sm:$0x38] %vm640, %v639
    %s645 = scalar_lea.vmem [#allocation0], 1418
    %646 = vst.msk [vmem:[%s645] sm:$0xc0] %vm640, %v639
    %s647 = scalar_lea.vmem %s0, 536
    %v648 = vld [vmem:[%s647] sm:$0xff]
    %vm649 = vcmask 261120
    %s650 = scalar_lea.vmem [#allocation0], 1426
    %651 = vst.msk [vmem:[%s650] ss:$6 sm:$0x3] %vm649, %v648
    %s652 = scalar_lea.vmem [#allocation0], 1431
    %653 = vst.msk [vmem:[%s652] sm:$0xc] %vm649, %v648
    %s654 = scalar_lea.vmem [#allocation0], 1436
    %655 = vst.msk [vmem:[%s654] sm:$0x70] %vm649, %v648
    %s656 = scalar_lea.vmem [#allocation0], 1441
    %657 = vst.msk [vmem:[%s656] sm:$0x80] %vm649, %v648
    %s658 = scalar_lea.vmem %s0, 544
    %v659 = vld [vmem:[%s658] sm:$0xff]
    %vm660 = vcmask 261120
    %s661 = scalar_lea.vmem [#allocation0], 1449
    %662 = vst.msk [vmem:[%s661] sm:$0x3] %vm660, %v659
    %s663 = scalar_lea.vmem [#allocation0], 1454
    %664 = vst.msk [vmem:[%s663] sm:$0x1c] %vm660, %v659
    %s665 = scalar_lea.vmem [#allocation0], 1459
    %666 = vst.msk [vmem:[%s665] sm:$0xe0] %vm660, %v659
    %s667 = scalar_lea.vmem %s0, 552
    %v668 = vld [vmem:[%s667] sm:$0xff]
    %vm669 = vcmask 261120
    %s670 = scalar_lea.vmem [#allocation0], 1472
    %671 = vst.msk [vmem:[%s670] sm:$0x7] %vm669, %v668
    %s672 = scalar_lea.vmem [#allocation0], 1477
    %673 = vst.msk [vmem:[%s672] sm:$0x38] %vm669, %v668
    %s674 = scalar_lea.vmem [#allocation0], 1482
    %675 = vst.msk [vmem:[%s674] sm:$0xc0] %vm669, %v668
    %s676 = scalar_lea.vmem %s0, 560
    %v677 = vld [vmem:[%s676] sm:$0xff]
    %vm678 = vcmask 261120
    %s679 = scalar_lea.vmem [#allocation0], 1490
    %680 = vst.msk [vmem:[%s679] ss:$6 sm:$0x3] %vm678, %v677
    %s681 = scalar_lea.vmem [#allocation0], 1495
    %682 = vst.msk [vmem:[%s681] sm:$0xc] %vm678, %v677
    %s683 = scalar_lea.vmem [#allocation0], 1500
    %684 = vst.msk [vmem:[%s683] sm:$0x70] %vm678, %v677
    %s685 = scalar_lea.vmem [#allocation0], 1505
    %686 = vst.msk [vmem:[%s685] sm:$0x80] %vm678, %v677
    %s687 = scalar_lea.vmem %s0, 568
    %v688 = vld [vmem:[%s687] sm:$0xff]
    %vm689 = vcmask 261120
    %s690 = scalar_lea.vmem [#allocation0], 1513
    %691 = vst.msk [vmem:[%s690] sm:$0x3] %vm689, %v688
    %s692 = scalar_lea.vmem [#allocation0], 1518
    %693 = vst.msk [vmem:[%s692] sm:$0x1c] %vm689, %v688
    %s694 = scalar_lea.vmem [#allocation0], 1523
    %695 = vst.msk [vmem:[%s694] sm:$0xe0] %vm689, %v688
    %s697 = sshllo.u32 0, 4
    %v699 = vld [vmem:[#allocation0] sm:%s697]
    %s700 = sshllo.u32 0, 4
    %701 = vst [vmem:[%s1] sm:%s700] %v699
    %s702 = scalar_lea.vmem [#allocation0], 8
    %v703 = vld [vmem:[%s702] sm:%s697]
    %s704 = sshllo.u32 0, 4
    %s705 = scalar_lea.vmem %s1, 4
    %706 = vst [vmem:[%s705] sm:%s704] %v703
    %s707 = scalar_lea.vmem [#allocation0], 16
    %v708 = vld [vmem:[%s707] sm:%s697]
    %s709 = sshllo.u32 0, 4
    %s710 = smul.addr 4, 2
    %s711 = scalar_lea.vmem %s1, %s710
    %712 = vst [vmem:[%s711] sm:%s709] %v708
    %s713 = scalar_lea.vmem [#allocation0], 24
    %v714 = vld [vmem:[%s713] sm:%s697]
    %s715 = sshllo.u32 0, 4
    %s716 = smul.addr 4, 3
    %s717 = scalar_lea.vmem %s1, %s716
    %718 = vst [vmem:[%s717] sm:%s715] %v714
    %s719 = scalar_lea.vmem [#allocation0], 32
    %v720 = vld [vmem:[%s719] sm:%s697]
    %s721 = sshllo.u32 0, 4
    %s722 = smul.addr 4, 4
    %s723 = scalar_lea.vmem %s1, %s722
    %724 = vst [vmem:[%s723] sm:%s721] %v720
    %s725 = scalar_lea.vmem [#allocation0], 40
    %v726 = vld [vmem:[%s725] sm:%s697]
    %s727 = sshllo.u32 0, 4
    %s728 = smul.addr 4, 5
    %s729 = scalar_lea.vmem %s1, %s728
    %730 = vst [vmem:[%s729] sm:%s727] %v726
    %s731 = scalar_lea.vmem [#allocation0], 48
    %v732 = vld [vmem:[%s731] sm:%s697]
    %s733 = sshllo.u32 0, 4
    %s734 = smul.addr 4, 6
    %s735 = scalar_lea.vmem %s1, %s734
    %736 = vst [vmem:[%s735] sm:%s733] %v732
    %s737 = scalar_lea.vmem [#allocation0], 56
    %v738 = vld [vmem:[%s737] sm:%s697]
    %s739 = sshllo.u32 0, 4
    %s740 = smul.addr 4, 7
    %s741 = scalar_lea.vmem %s1, %s740
    %742 = vst [vmem:[%s741] sm:%s739] %v738
    %s743 = scalar_lea.vmem [#allocation0], 64
    %v744 = vld [vmem:[%s743] sm:%s697]
    %s745 = sshllo.u32 0, 4
    %s746 = smul.addr 4, 8
    %s747 = scalar_lea.vmem %s1, %s746
    %748 = vst [vmem:[%s747] sm:%s745] %v744
    %s749 = scalar_lea.vmem [#allocation0], 72
    %v750 = vld [vmem:[%s749] sm:%s697]
    %s751 = sshllo.u32 0, 4
    %s752 = smul.addr 4, 9
    %s753 = scalar_lea.vmem %s1, %s752
    %754 = vst [vmem:[%s753] sm:%s751] %v750
    %s755 = scalar_lea.vmem [#allocation0], 80
    %v756 = vld [vmem:[%s755] sm:%s697]
    %s757 = sshllo.u32 0, 4
    %s758 = smul.addr 4, 10
    %s759 = scalar_lea.vmem %s1, %s758
    %760 = vst [vmem:[%s759] sm:%s757] %v756
    %s761 = scalar_lea.vmem [#allocation0], 88
    %v762 = vld [vmem:[%s761] sm:%s697]
    %s763 = sshllo.u32 0, 4
    %s764 = smul.addr 4, 11
    %s765 = scalar_lea.vmem %s1, %s764
    %766 = vst [vmem:[%s765] sm:%s763] %v762
    %s767 = scalar_lea.vmem [#allocation0], 96
    %v768 = vld [vmem:[%s767] sm:%s697]
    %s769 = sshllo.u32 0, 4
    %s770 = smul.addr 4, 12
    %s771 = scalar_lea.vmem %s1, %s770
    %772 = vst [vmem:[%s771] sm:%s769] %v768
    %s773 = scalar_lea.vmem [#allocation0], 104
    %v774 = vld [vmem:[%s773] sm:%s697]
    %s775 = sshllo.u32 0, 4
    %s776 = smul.addr 4, 13
    %s777 = scalar_lea.vmem %s1, %s776
    %778 = vst [vmem:[%s777] sm:%s775] %v774
    %s779 = scalar_lea.vmem [#allocation0], 112
    %v780 = vld [vmem:[%s779] sm:%s697]
    %s781 = sshllo.u32 0, 4
    %s782 = smul.addr 4, 14
    %s783 = scalar_lea.vmem %s1, %s782
    %784 = vst [vmem:[%s783] sm:%s781] %v780
    %s785 = scalar_lea.vmem [#allocation0], 120
    %v786 = vld [vmem:[%s785] sm:%s697]
    %s787 = sshllo.u32 0, 4
    %s788 = smul.addr 4, 15
    %s789 = scalar_lea.vmem %s1, %s788
    %790 = vst [vmem:[%s789] sm:%s787] %v786
    %s791 = scalar_lea.vmem [#allocation0], 128
    %v792 = vld [vmem:[%s791] sm:%s697]
    %s793 = sshllo.u32 0, 4
    %s794 = smul.addr 4, 16
    %s795 = scalar_lea.vmem %s1, %s794
    %796 = vst [vmem:[%s795] sm:%s793] %v792
    %s797 = scalar_lea.vmem [#allocation0], 136
    %v798 = vld [vmem:[%s797] sm:%s697]
    %s799 = sshllo.u32 0, 4
    %s800 = smul.addr 4, 17
    %s801 = scalar_lea.vmem %s1, %s800
    %802 = vst [vmem:[%s801] sm:%s799] %v798
    %s803 = scalar_lea.vmem [#allocation0], 144
    %v804 = vld [vmem:[%s803] sm:%s697]
    %s805 = sshllo.u32 0, 4
    %s806 = smul.addr 4, 18
    %s807 = scalar_lea.vmem %s1, %s806
    %808 = vst [vmem:[%s807] sm:%s805] %v804
    %s809 = scalar_lea.vmem [#allocation0], 152
    %v810 = vld [vmem:[%s809] sm:%s697]
    %s811 = sshllo.u32 0, 4
    %s812 = smul.addr 4, 19
    %s813 = scalar_lea.vmem %s1, %s812
    %814 = vst [vmem:[%s813] sm:%s811] %v810
    %s815 = scalar_lea.vmem [#allocation0], 160
    %v816 = vld [vmem:[%s815] sm:%s697]
    %s817 = sshllo.u32 0, 4
    %s818 = smul.addr 4, 20
    %s819 = scalar_lea.vmem %s1, %s818
    %820 = vst [vmem:[%s819] sm:%s817] %v816
    %s821 = scalar_lea.vmem [#allocation0], 168
    %v822 = vld [vmem:[%s821] sm:%s697]
    %s823 = sshllo.u32 0, 4
    %s824 = smul.addr 4, 21
    %s825 = scalar_lea.vmem %s1, %s824
    %826 = vst [vmem:[%s825] sm:%s823] %v822
    %s827 = scalar_lea.vmem [#allocation0], 176
    %v828 = vld [vmem:[%s827] sm:%s697]
    %s829 = sshllo.u32 0, 4
    %s830 = smul.addr 4, 22
    %s831 = scalar_lea.vmem %s1, %s830
    %832 = vst [vmem:[%s831] sm:%s829] %v828
    %s833 = scalar_lea.vmem [#allocation0], 184
    %v834 = vld [vmem:[%s833] sm:%s697]
    %s835 = sshllo.u32 0, 4
    %s836 = smul.addr 4, 23
    %s837 = scalar_lea.vmem %s1, %s836
    %838 = vst [vmem:[%s837] sm:%s835] %v834
    %s839 = scalar_lea.vmem [#allocation0], 192
    %v840 = vld [vmem:[%s839] sm:%s697]
    %s841 = sshllo.u32 0, 4
    %s842 = smul.addr 4, 24
    %s843 = scalar_lea.vmem %s1, %s842
    %844 = vst [vmem:[%s843] sm:%s841] %v840
    %s845 = scalar_lea.vmem [#allocation0], 200
    %v846 = vld [vmem:[%s845] sm:%s697]
    %s847 = sshllo.u32 0, 4
    %s848 = smul.addr 4, 25
    %s849 = scalar_lea.vmem %s1, %s848
    %850 = vst [vmem:[%s849] sm:%s847] %v846
    %s851 = scalar_lea.vmem [#allocation0], 208
    %v852 = vld [vmem:[%s851] sm:%s697]
    %s853 = sshllo.u32 0, 4
    %s854 = smul.addr 4, 26
    %s855 = scalar_lea.vmem %s1, %s854
    %856 = vst [vmem:[%s855] sm:%s853] %v852
    %s857 = scalar_lea.vmem [#allocation0], 216
    %v858 = vld [vmem:[%s857] sm:%s697]
    %s859 = sshllo.u32 0, 4
    %s860 = smul.addr 4, 27
    %s861 = scalar_lea.vmem %s1, %s860
    %862 = vst [vmem:[%s861] sm:%s859] %v858
    %s863 = scalar_lea.vmem [#allocation0], 224
    %v864 = vld [vmem:[%s863] sm:%s697]
    %s865 = sshllo.u32 0, 4
    %s866 = smul.addr 4, 28
    %s867 = scalar_lea.vmem %s1, %s866
    %868 = vst [vmem:[%s867] sm:%s865] %v864
    %s869 = scalar_lea.vmem [#allocation0], 232
    %v870 = vld [vmem:[%s869] sm:%s697]
    %s871 = sshllo.u32 0, 4
    %s872 = smul.addr 4, 29
    %s873 = scalar_lea.vmem %s1, %s872
    %874 = vst [vmem:[%s873] sm:%s871] %v870
    %s875 = scalar_lea.vmem [#allocation0], 240
    %v876 = vld [vmem:[%s875] sm:%s697]
    %s877 = sshllo.u32 0, 4
    %s878 = smul.addr 4, 30
    %s879 = scalar_lea.vmem %s1, %s878
    %880 = vst [vmem:[%s879] sm:%s877] %v876
    %s881 = scalar_lea.vmem [#allocation0], 248
    %v882 = vld [vmem:[%s881] sm:%s697]
    %s883 = sshllo.u32 0, 4
    %s884 = smul.addr 4, 31
    %s885 = scalar_lea.vmem %s1, %s884
    %886 = vst [vmem:[%s885] sm:%s883] %v882
    %s887 = scalar_lea.vmem [#allocation0], 256
    %v888 = vld [vmem:[%s887] sm:%s697]
    %s889 = sshllo.u32 0, 4
    %s890 = smul.addr 4, 32
    %s891 = scalar_lea.vmem %s1, %s890
    %892 = vst [vmem:[%s891] sm:%s889] %v888
    %s893 = scalar_lea.vmem [#allocation0], 264
    %v894 = vld [vmem:[%s893] sm:%s697]
    %s895 = sshllo.u32 0, 4
    %s896 = smul.addr 4, 33
    %s897 = scalar_lea.vmem %s1, %s896
    %898 = vst [vmem:[%s897] sm:%s895] %v894
    %s899 = scalar_lea.vmem [#allocation0], 272
    %v900 = vld [vmem:[%s899] sm:%s697]
    %s901 = sshllo.u32 0, 4
    %s902 = smul.addr 4, 34
    %s903 = scalar_lea.vmem %s1, %s902
    %904 = vst [vmem:[%s903] sm:%s901] %v900
    %s905 = scalar_lea.vmem [#allocation0], 280
    %v906 = vld [vmem:[%s905] sm:%s697]
    %s907 = sshllo.u32 0, 4
    %s908 = smul.addr 4, 35
    %s909 = scalar_lea.vmem %s1, %s908
    %910 = vst [vmem:[%s909] sm:%s907] %v906
    %s911 = scalar_lea.vmem [#allocation0], 288
    %v912 = vld [vmem:[%s911] sm:%s697]
    %s913 = sshllo.u32 0, 4
    %s914 = smul.addr 4, 36
    %s915 = scalar_lea.vmem %s1, %s914
    %916 = vst [vmem:[%s915] sm:%s913] %v912
    %s917 = scalar_lea.vmem [#allocation0], 296
    %v918 = vld [vmem:[%s917] sm:%s697]
    %s919 = sshllo.u32 0, 4
    %s920 = smul.addr 4, 37
    %s921 = scalar_lea.vmem %s1, %s920
    %922 = vst [vmem:[%s921] sm:%s919] %v918
    %s923 = scalar_lea.vmem [#allocation0], 304
    %v924 = vld [vmem:[%s923] sm:%s697]
    %s925 = sshllo.u32 0, 4
    %s926 = smul.addr 4, 38
    %s927 = scalar_lea.vmem %s1, %s926
    %928 = vst [vmem:[%s927] sm:%s925] %v924
    %s929 = scalar_lea.vmem [#allocation0], 312
    %v930 = vld [vmem:[%s929] sm:%s697]
    %s931 = sshllo.u32 0, 4
    %s932 = smul.addr 4, 39
    %s933 = scalar_lea.vmem %s1, %s932
    %934 = vst [vmem:[%s933] sm:%s931] %v930
    %s935 = scalar_lea.vmem [#allocation0], 320
    %v936 = vld [vmem:[%s935] sm:%s697]
    %s937 = sshllo.u32 0, 4
    %s938 = smul.addr 4, 40
    %s939 = scalar_lea.vmem %s1, %s938
    %940 = vst [vmem:[%s939] sm:%s937] %v936
    %s941 = scalar_lea.vmem [#allocation0], 328
    %v942 = vld [vmem:[%s941] sm:%s697]
    %s943 = sshllo.u32 0, 4
    %s944 = smul.addr 4, 41
    %s945 = scalar_lea.vmem %s1, %s944
    %946 = vst [vmem:[%s945] sm:%s943] %v942
    %s947 = scalar_lea.vmem [#allocation0], 336
    %v948 = vld [vmem:[%s947] sm:%s697]
    %s949 = sshllo.u32 0, 4
    %s950 = smul.addr 4, 42
    %s951 = scalar_lea.vmem %s1, %s950
    %952 = vst [vmem:[%s951] sm:%s949] %v948
    %s953 = scalar_lea.vmem [#allocation0], 344
    %v954 = vld [vmem:[%s953] sm:%s697]
    %s955 = sshllo.u32 0, 4
    %s956 = smul.addr 4, 43
    %s957 = scalar_lea.vmem %s1, %s956
    %958 = vst [vmem:[%s957] sm:%s955] %v954
    %s959 = scalar_lea.vmem [#allocation0], 352
    %v960 = vld [vmem:[%s959] sm:%s697]
    %s961 = sshllo.u32 0, 4
    %s962 = smul.addr 4, 44
    %s963 = scalar_lea.vmem %s1, %s962
    %964 = vst [vmem:[%s963] sm:%s961] %v960
    %s965 = scalar_lea.vmem [#allocation0], 360
    %v966 = vld [vmem:[%s965] sm:%s697]
    %s967 = sshllo.u32 0, 4
    %s968 = smul.addr 4, 45
    %s969 = scalar_lea.vmem %s1, %s968
    %970 = vst [vmem:[%s969] sm:%s967] %v966
    %s971 = scalar_lea.vmem [#allocation0], 368
    %v972 = vld [vmem:[%s971] sm:%s697]
    %s973 = sshllo.u32 0, 4
    %s974 = smul.addr 4, 46
    %s975 = scalar_lea.vmem %s1, %s974
    %976 = vst [vmem:[%s975] sm:%s973] %v972
    %s977 = scalar_lea.vmem [#allocation0], 376
    %v978 = vld [vmem:[%s977] sm:%s697]
    %s979 = sshllo.u32 0, 4
    %s980 = smul.addr 4, 47
    %s981 = scalar_lea.vmem %s1, %s980
    %982 = vst [vmem:[%s981] sm:%s979] %v978
    %s983 = scalar_lea.vmem [#allocation0], 384
    %v984 = vld [vmem:[%s983] sm:%s697]
    %s985 = sshllo.u32 0, 4
    %s986 = smul.addr 4, 48
    %s987 = scalar_lea.vmem %s1, %s986
    %988 = vst [vmem:[%s987] sm:%s985] %v984
    %s989 = scalar_lea.vmem [#allocation0], 392
    %v990 = vld [vmem:[%s989] sm:%s697]
    %s991 = sshllo.u32 0, 4
    %s992 = smul.addr 4, 49
    %s993 = scalar_lea.vmem %s1, %s992
    %994 = vst [vmem:[%s993] sm:%s991] %v990
    %s995 = scalar_lea.vmem [#allocation0], 400
    %v996 = vld [vmem:[%s995] sm:%s697]
    %s997 = sshllo.u32 0, 4
    %s998 = smul.addr 4, 50
    %s999 = scalar_lea.vmem %s1, %s998
    %1000 = vst [vmem:[%s999] sm:%s997] %v996
    %s1001 = scalar_lea.vmem [#allocation0], 408
    %v1002 = vld [vmem:[%s1001] sm:%s697]
    %s1003 = sshllo.u32 0, 4
    %s1004 = smul.addr 4, 51
    %s1005 = scalar_lea.vmem %s1, %s1004
    %1006 = vst [vmem:[%s1005] sm:%s1003] %v1002
    %s1007 = scalar_lea.vmem [#allocation0], 416
    %v1008 = vld [vmem:[%s1007] sm:%s697]
    %s1009 = sshllo.u32 0, 4
    %s1010 = smul.addr 4, 52
    %s1011 = scalar_lea.vmem %s1, %s1010
    %1012 = vst [vmem:[%s1011] sm:%s1009] %v1008
    %s1013 = scalar_lea.vmem [#allocation0], 424
    %v1014 = vld [vmem:[%s1013] sm:%s697]
    %s1015 = sshllo.u32 0, 4
    %s1016 = smul.addr 4, 53
    %s1017 = scalar_lea.vmem %s1, %s1016
    %1018 = vst [vmem:[%s1017] sm:%s1015] %v1014
    %s1019 = scalar_lea.vmem [#allocation0], 432
    %v1020 = vld [vmem:[%s1019] sm:%s697]
    %s1021 = sshllo.u32 0, 4
    %s1022 = smul.addr 4, 54
    %s1023 = scalar_lea.vmem %s1, %s1022
    %1024 = vst [vmem:[%s1023] sm:%s1021] %v1020
    %s1025 = scalar_lea.vmem [#allocation0], 440
    %v1026 = vld [vmem:[%s1025] sm:%s697]
    %s1027 = sshllo.u32 0, 4
    %s1028 = smul.addr 4, 55
    %s1029 = scalar_lea.vmem %s1, %s1028
    %1030 = vst [vmem:[%s1029] sm:%s1027] %v1026
    %s1031 = scalar_lea.vmem [#allocation0], 448
    %v1032 = vld [vmem:[%s1031] sm:%s697]
    %s1033 = sshllo.u32 0, 4
    %s1034 = smul.addr 4, 56
    %s1035 = scalar_lea.vmem %s1, %s1034
    %1036 = vst [vmem:[%s1035] sm:%s1033] %v1032
    %s1037 = scalar_lea.vmem [#allocation0], 456
    %v1038 = vld [vmem:[%s1037] sm:%s697]
    %s1039 = sshllo.u32 0, 4
    %s1040 = smul.addr 4, 57
    %s1041 = scalar_lea.vmem %s1, %s1040
    %1042 = vst [vmem:[%s1041] sm:%s1039] %v1038
    %s1043 = scalar_lea.vmem [#allocation0], 464
    %v1044 = vld [vmem:[%s1043] sm:%s697]
    %s1045 = sshllo.u32 0, 4
    %s1046 = smul.addr 4, 58
    %s1047 = scalar_lea.vmem %s1, %s1046
    %1048 = vst [vmem:[%s1047] sm:%s1045] %v1044
    %s1049 = scalar_lea.vmem [#allocation0], 472
    %v1050 = vld [vmem:[%s1049] sm:%s697]
    %s1051 = sshllo.u32 0, 4
    %s1052 = smul.addr 4, 59
    %s1053 = scalar_lea.vmem %s1, %s1052
    %1054 = vst [vmem:[%s1053] sm:%s1051] %v1050
    %s1055 = scalar_lea.vmem [#allocation0], 480
    %v1056 = vld [vmem:[%s1055] sm:%s697]
    %s1057 = sshllo.u32 0, 4
    %s1058 = smul.addr 4, 60
    %s1059 = scalar_lea.vmem %s1, %s1058
    %1060 = vst [vmem:[%s1059] sm:%s1057] %v1056
    %s1061 = scalar_lea.vmem [#allocation0], 488
    %v1062 = vld [vmem:[%s1061] sm:%s697]
    %s1063 = sshllo.u32 0, 4
    %s1064 = smul.addr 4, 61
    %s1065 = scalar_lea.vmem %s1, %s1064
    %1066 = vst [vmem:[%s1065] sm:%s1063] %v1062
    %s1067 = scalar_lea.vmem [#allocation0], 496
    %v1068 = vld [vmem:[%s1067] sm:%s697]
    %s1069 = sshllo.u32 0, 4
    %s1070 = smul.addr 4, 62
    %s1071 = scalar_lea.vmem %s1, %s1070
    %1072 = vst [vmem:[%s1071] sm:%s1069] %v1068
    %s1073 = scalar_lea.vmem [#allocation0], 504
    %v1074 = vld [vmem:[%s1073] sm:%s697]
    %s1075 = sshllo.u32 0, 4
    %s1076 = smul.addr 4, 63
    %s1077 = scalar_lea.vmem %s1, %s1076
    %1078 = vst [vmem:[%s1077] sm:%s1075] %v1074
    %s1079 = scalar_lea.vmem [#allocation0], 512
    %v1080 = vld [vmem:[%s1079] sm:%s697]
    %s1081 = sshllo.u32 0, 4
    %s1082 = smul.addr 4, 64
    %s1083 = scalar_lea.vmem %s1, %s1082
    %1084 = vst [vmem:[%s1083] sm:%s1081] %v1080
    %s1085 = scalar_lea.vmem [#allocation0], 520
    %v1086 = vld [vmem:[%s1085] sm:%s697]
    %s1087 = sshllo.u32 0, 4
    %s1088 = smul.addr 4, 65
    %s1089 = scalar_lea.vmem %s1, %s1088
    %1090 = vst [vmem:[%s1089] sm:%s1087] %v1086
    %s1091 = scalar_lea.vmem [#allocation0], 528
    %v1092 = vld [vmem:[%s1091] sm:%s697]
    %s1093 = sshllo.u32 0, 4
    %s1094 = smul.addr 4, 66
    %s1095 = scalar_lea.vmem %s1, %s1094
    %1096 = vst [vmem:[%s1095] sm:%s1093] %v1092
    %s1097 = scalar_lea.vmem [#allocation0], 536
    %v1098 = vld [vmem:[%s1097] sm:%s697]
    %s1099 = sshllo.u32 0, 4
    %s1100 = smul.addr 4, 67
    %s1101 = scalar_lea.vmem %s1, %s1100
    %1102 = vst [vmem:[%s1101] sm:%s1099] %v1098
    %s1103 = scalar_lea.vmem [#allocation0], 544
    %v1104 = vld [vmem:[%s1103] sm:%s697]
    %s1105 = sshllo.u32 0, 4
    %s1106 = smul.addr 4, 68
    %s1107 = scalar_lea.vmem %s1, %s1106
    %1108 = vst [vmem:[%s1107] sm:%s1105] %v1104
    %s1109 = scalar_lea.vmem [#allocation0], 552
    %v1110 = vld [vmem:[%s1109] sm:%s697]
    %s1111 = sshllo.u32 0, 4
    %s1112 = smul.addr 4, 69
    %s1113 = scalar_lea.vmem %s1, %s1112
    %1114 = vst [vmem:[%s1113] sm:%s1111] %v1110
    %s1115 = scalar_lea.vmem [#allocation0], 560
    %v1116 = vld [vmem:[%s1115] sm:%s697]
    %s1117 = sshllo.u32 0, 4
    %s1118 = smul.addr 4, 70
    %s1119 = scalar_lea.vmem %s1, %s1118
    %1120 = vst [vmem:[%s1119] sm:%s1117] %v1116
    %s1121 = scalar_lea.vmem [#allocation0], 568
    %v1122 = vld [vmem:[%s1121] sm:%s697]
    %s1123 = sshllo.u32 0, 4
    %s1124 = smul.addr 4, 71
    %s1125 = scalar_lea.vmem %s1, %s1124
    %1126 = vst [vmem:[%s1125] sm:%s1123] %v1122
    %s1127 = scalar_lea.vmem [#allocation0], 576
    %v1128 = vld [vmem:[%s1127] sm:%s697]
    %s1129 = sshllo.u32 0, 4
    %s1130 = smul.addr 4, 72
    %s1131 = scalar_lea.vmem %s1, %s1130
    %1132 = vst [vmem:[%s1131] sm:%s1129] %v1128
    %s1133 = scalar_lea.vmem [#allocation0], 584
    %v1134 = vld [vmem:[%s1133] sm:%s697]
    %s1135 = sshllo.u32 0, 4
    %s1136 = smul.addr 4, 73
    %s1137 = scalar_lea.vmem %s1, %s1136
    %1138 = vst [vmem:[%s1137] sm:%s1135] %v1134
    %s1139 = scalar_lea.vmem [#allocation0], 592
    %v1140 = vld [vmem:[%s1139] sm:%s697]
    %s1141 = sshllo.u32 0, 4
    %s1142 = smul.addr 4, 74
    %s1143 = scalar_lea.vmem %s1, %s1142
    %1144 = vst [vmem:[%s1143] sm:%s1141] %v1140
    %s1145 = scalar_lea.vmem [#allocation0], 600
    %v1146 = vld [vmem:[%s1145] sm:%s697]
    %s1147 = sshllo.u32 0, 4
    %s1148 = smul.addr 4, 75
    %s1149 = scalar_lea.vmem %s1, %s1148
    %1150 = vst [vmem:[%s1149] sm:%s1147] %v1146
    %s1151 = scalar_lea.vmem [#allocation0], 608
    %v1152 = vld [vmem:[%s1151] sm:%s697]
    %s1153 = sshllo.u32 0, 4
    %s1154 = smul.addr 4, 76
    %s1155 = scalar_lea.vmem %s1, %s1154
    %1156 = vst [vmem:[%s1155] sm:%s1153] %v1152
    %s1157 = scalar_lea.vmem [#allocation0], 616
    %v1158 = vld [vmem:[%s1157] sm:%s697]
    %s1159 = sshllo.u32 0, 4
    %s1160 = smul.addr 4, 77
    %s1161 = scalar_lea.vmem %s1, %s1160
    %1162 = vst [vmem:[%s1161] sm:%s1159] %v1158
    %s1163 = scalar_lea.vmem [#allocation0], 624
    %v1164 = vld [vmem:[%s1163] sm:%s697]
    %s1165 = sshllo.u32 0, 4
    %s1166 = smul.addr 4, 78
    %s1167 = scalar_lea.vmem %s1, %s1166
    %1168 = vst [vmem:[%s1167] sm:%s1165] %v1164
    %s1169 = scalar_lea.vmem [#allocation0], 632
    %v1170 = vld [vmem:[%s1169] sm:%s697]
    %s1171 = sshllo.u32 0, 4
    %s1172 = smul.addr 4, 79
    %s1173 = scalar_lea.vmem %s1, %s1172
    %1174 = vst [vmem:[%s1173] sm:%s1171] %v1170
    %s1175 = scalar_lea.vmem [#allocation0], 640
    %v1176 = vld [vmem:[%s1175] sm:%s697]
    %s1177 = sshllo.u32 0, 4
    %s1178 = smul.addr 4, 80
    %s1179 = scalar_lea.vmem %s1, %s1178
    %1180 = vst [vmem:[%s1179] sm:%s1177] %v1176
    %s1181 = scalar_lea.vmem [#allocation0], 648
    %v1182 = vld [vmem:[%s1181] sm:%s697]
    %s1183 = sshllo.u32 0, 4
    %s1184 = smul.addr 4, 81
    %s1185 = scalar_lea.vmem %s1, %s1184
    %1186 = vst [vmem:[%s1185] sm:%s1183] %v1182
    %s1187 = scalar_lea.vmem [#allocation0], 656
    %v1188 = vld [vmem:[%s1187] sm:%s697]
    %s1189 = sshllo.u32 0, 4
    %s1190 = smul.addr 4, 82
    %s1191 = scalar_lea.vmem %s1, %s1190
    %1192 = vst [vmem:[%s1191] sm:%s1189] %v1188
    %s1193 = scalar_lea.vmem [#allocation0], 664
    %v1194 = vld [vmem:[%s1193] sm:%s697]
    %s1195 = sshllo.u32 0, 4
    %s1196 = smul.addr 4, 83
    %s1197 = scalar_lea.vmem %s1, %s1196
    %1198 = vst [vmem:[%s1197] sm:%s1195] %v1194
    %s1199 = scalar_lea.vmem [#allocation0], 672
    %v1200 = vld [vmem:[%s1199] sm:%s697]
    %s1201 = sshllo.u32 0, 4
    %s1202 = smul.addr 4, 84
    %s1203 = scalar_lea.vmem %s1, %s1202
    %1204 = vst [vmem:[%s1203] sm:%s1201] %v1200
    %s1205 = scalar_lea.vmem [#allocation0], 680
    %v1206 = vld [vmem:[%s1205] sm:%s697]
    %s1207 = sshllo.u32 0, 4
    %s1208 = smul.addr 4, 85
    %s1209 = scalar_lea.vmem %s1, %s1208
    %1210 = vst [vmem:[%s1209] sm:%s1207] %v1206
    %s1211 = scalar_lea.vmem [#allocation0], 688
    %v1212 = vld [vmem:[%s1211] sm:%s697]
    %s1213 = sshllo.u32 0, 4
    %s1214 = smul.addr 4, 86
    %s1215 = scalar_lea.vmem %s1, %s1214
    %1216 = vst [vmem:[%s1215] sm:%s1213] %v1212
    %s1217 = scalar_lea.vmem [#allocation0], 696
    %v1218 = vld [vmem:[%s1217] sm:%s697]
    %s1219 = sshllo.u32 0, 4
    %s1220 = smul.addr 4, 87
    %s1221 = scalar_lea.vmem %s1, %s1220
    %1222 = vst [vmem:[%s1221] sm:%s1219] %v1218
    %s1223 = scalar_lea.vmem [#allocation0], 704
    %v1224 = vld [vmem:[%s1223] sm:%s697]
    %s1225 = sshllo.u32 0, 4
    %s1226 = smul.addr 4, 88
    %s1227 = scalar_lea.vmem %s1, %s1226
    %1228 = vst [vmem:[%s1227] sm:%s1225] %v1224
    %s1229 = scalar_lea.vmem [#allocation0], 712
    %v1230 = vld [vmem:[%s1229] sm:%s697]
    %s1231 = sshllo.u32 0, 4
    %s1232 = smul.addr 4, 89
    %s1233 = scalar_lea.vmem %s1, %s1232
    %1234 = vst [vmem:[%s1233] sm:%s1231] %v1230
    %s1235 = scalar_lea.vmem [#allocation0], 720
    %v1236 = vld [vmem:[%s1235] sm:%s697]
    %s1237 = sshllo.u32 0, 4
    %s1238 = smul.addr 4, 90
    %s1239 = scalar_lea.vmem %s1, %s1238
    %1240 = vst [vmem:[%s1239] sm:%s1237] %v1236
    %s1241 = scalar_lea.vmem [#allocation0], 728
    %v1242 = vld [vmem:[%s1241] sm:%s697]
    %s1243 = sshllo.u32 0, 4
    %s1244 = smul.addr 4, 91
    %s1245 = scalar_lea.vmem %s1, %s1244
    %1246 = vst [vmem:[%s1245] sm:%s1243] %v1242
    %s1247 = scalar_lea.vmem [#allocation0], 736
    %v1248 = vld [vmem:[%s1247] sm:%s697]
    %s1249 = sshllo.u32 0, 4
    %s1250 = smul.addr 4, 92
    %s1251 = scalar_lea.vmem %s1, %s1250
    %1252 = vst [vmem:[%s1251] sm:%s1249] %v1248
    %s1253 = scalar_lea.vmem [#allocation0], 744
    %v1254 = vld [vmem:[%s1253] sm:%s697]
    %s1255 = sshllo.u32 0, 4
    %s1256 = smul.addr 4, 93
    %s1257 = scalar_lea.vmem %s1, %s1256
    %1258 = vst [vmem:[%s1257] sm:%s1255] %v1254
    %s1259 = scalar_lea.vmem [#allocation0], 752
    %v1260 = vld [vmem:[%s1259] sm:%s697]
    %s1261 = sshllo.u32 0, 4
    %s1262 = smul.addr 4, 94
    %s1263 = scalar_lea.vmem %s1, %s1262
    %1264 = vst [vmem:[%s1263] sm:%s1261] %v1260
    %s1265 = scalar_lea.vmem [#allocation0], 760
    %v1266 = vld [vmem:[%s1265] sm:%s697]
    %s1267 = sshllo.u32 0, 4
    %s1268 = smul.addr 4, 95
    %s1269 = scalar_lea.vmem %s1, %s1268
    %1270 = vst [vmem:[%s1269] sm:%s1267] %v1266
    %s1271 = scalar_lea.vmem [#allocation0], 768
    %v1272 = vld [vmem:[%s1271] sm:%s697]
    %s1273 = sshllo.u32 0, 4
    %s1274 = smul.addr 4, 96
    %s1275 = scalar_lea.vmem %s1, %s1274
    %1276 = vst [vmem:[%s1275] sm:%s1273] %v1272
    %s1277 = scalar_lea.vmem [#allocation0], 776
    %v1278 = vld [vmem:[%s1277] sm:%s697]
    %s1279 = sshllo.u32 0, 4
    %s1280 = smul.addr 4, 97
    %s1281 = scalar_lea.vmem %s1, %s1280
    %1282 = vst [vmem:[%s1281] sm:%s1279] %v1278
    %s1283 = scalar_lea.vmem [#allocation0], 784
    %v1284 = vld [vmem:[%s1283] sm:%s697]
    %s1285 = sshllo.u32 0, 4
    %s1286 = smul.addr 4, 98
    %s1287 = scalar_lea.vmem %s1, %s1286
    %1288 = vst [vmem:[%s1287] sm:%s1285] %v1284
    %s1289 = scalar_lea.vmem [#allocation0], 792
    %v1290 = vld [vmem:[%s1289] sm:%s697]
    %s1291 = sshllo.u32 0, 4
    %s1292 = smul.addr 4, 99
    %s1293 = scalar_lea.vmem %s1, %s1292
    %1294 = vst [vmem:[%s1293] sm:%s1291] %v1290
    %s1295 = scalar_lea.vmem [#allocation0], 800
    %v1296 = vld [vmem:[%s1295] sm:%s697]
    %s1297 = sshllo.u32 0, 4
    %s1298 = smul.addr 4, 100
    %s1299 = scalar_lea.vmem %s1, %s1298
    %1300 = vst [vmem:[%s1299] sm:%s1297] %v1296
    %s1301 = scalar_lea.vmem [#allocation0], 808
    %v1302 = vld [vmem:[%s1301] sm:%s697]
    %s1303 = sshllo.u32 0, 4
    %s1304 = smul.addr 4, 101
    %s1305 = scalar_lea.vmem %s1, %s1304
    %1306 = vst [vmem:[%s1305] sm:%s1303] %v1302
    %s1307 = scalar_lea.vmem [#allocation0], 816
    %v1308 = vld [vmem:[%s1307] sm:%s697]
    %s1309 = sshllo.u32 0, 4
    %s1310 = smul.addr 4, 102
    %s1311 = scalar_lea.vmem %s1, %s1310
    %1312 = vst [vmem:[%s1311] sm:%s1309] %v1308
    %s1313 = scalar_lea.vmem [#allocation0], 824
    %v1314 = vld [vmem:[%s1313] sm:%s697]
    %s1315 = sshllo.u32 0, 4
    %s1316 = smul.addr 4, 103
    %s1317 = scalar_lea.vmem %s1, %s1316
    %1318 = vst [vmem:[%s1317] sm:%s1315] %v1314
    %s1319 = scalar_lea.vmem [#allocation0], 832
    %v1320 = vld [vmem:[%s1319] sm:%s697]
    %s1321 = sshllo.u32 0, 4
    %s1322 = smul.addr 4, 104
    %s1323 = scalar_lea.vmem %s1, %s1322
    %1324 = vst [vmem:[%s1323] sm:%s1321] %v1320
    %s1325 = scalar_lea.vmem [#allocation0], 840
    %v1326 = vld [vmem:[%s1325] sm:%s697]
    %s1327 = sshllo.u32 0, 4
    %s1328 = smul.addr 4, 105
    %s1329 = scalar_lea.vmem %s1, %s1328
    %1330 = vst [vmem:[%s1329] sm:%s1327] %v1326
    %s1331 = scalar_lea.vmem [#allocation0], 848
    %v1332 = vld [vmem:[%s1331] sm:%s697]
    %s1333 = sshllo.u32 0, 4
    %s1334 = smul.addr 4, 106
    %s1335 = scalar_lea.vmem %s1, %s1334
    %1336 = vst [vmem:[%s1335] sm:%s1333] %v1332
    %s1337 = scalar_lea.vmem [#allocation0], 856
    %v1338 = vld [vmem:[%s1337] sm:%s697]
    %s1339 = sshllo.u32 0, 4
    %s1340 = smul.addr 4, 107
    %s1341 = scalar_lea.vmem %s1, %s1340
    %1342 = vst [vmem:[%s1341] sm:%s1339] %v1338
    %s1343 = scalar_lea.vmem [#allocation0], 864
    %v1344 = vld [vmem:[%s1343] sm:%s697]
    %s1345 = sshllo.u32 0, 4
    %s1346 = smul.addr 4, 108
    %s1347 = scalar_lea.vmem %s1, %s1346
    %1348 = vst [vmem:[%s1347] sm:%s1345] %v1344
    %s1349 = scalar_lea.vmem [#allocation0], 872
    %v1350 = vld [vmem:[%s1349] sm:%s697]
    %s1351 = sshllo.u32 0, 4
    %s1352 = smul.addr 4, 109
    %s1353 = scalar_lea.vmem %s1, %s1352
    %1354 = vst [vmem:[%s1353] sm:%s1351] %v1350
    %s1355 = scalar_lea.vmem [#allocation0], 880
    %v1356 = vld [vmem:[%s1355] sm:%s697]
    %s1357 = sshllo.u32 0, 4
    %s1358 = smul.addr 4, 110
    %s1359 = scalar_lea.vmem %s1, %s1358
    %1360 = vst [vmem:[%s1359] sm:%s1357] %v1356
    %s1361 = scalar_lea.vmem [#allocation0], 888
    %v1362 = vld [vmem:[%s1361] sm:%s697]
    %s1363 = sshllo.u32 0, 4
    %s1364 = smul.addr 4, 111
    %s1365 = scalar_lea.vmem %s1, %s1364
    %1366 = vst [vmem:[%s1365] sm:%s1363] %v1362
    %s1367 = scalar_lea.vmem [#allocation0], 896
    %v1368 = vld [vmem:[%s1367] sm:%s697]
    %s1369 = sshllo.u32 0, 4
    %s1370 = smul.addr 4, 112
    %s1371 = scalar_lea.vmem %s1, %s1370
    %1372 = vst [vmem:[%s1371] sm:%s1369] %v1368
    %s1373 = scalar_lea.vmem [#allocation0], 904
    %v1374 = vld [vmem:[%s1373] sm:%s697]
    %s1375 = sshllo.u32 0, 4
    %s1376 = smul.addr 4, 113
    %s1377 = scalar_lea.vmem %s1, %s1376
    %1378 = vst [vmem:[%s1377] sm:%s1375] %v1374
    %s1379 = scalar_lea.vmem [#allocation0], 912
    %v1380 = vld [vmem:[%s1379] sm:%s697]
    %s1381 = sshllo.u32 0, 4
    %s1382 = smul.addr 4, 114
    %s1383 = scalar_lea.vmem %s1, %s1382
    %1384 = vst [vmem:[%s1383] sm:%s1381] %v1380
    %s1385 = scalar_lea.vmem [#allocation0], 920
    %v1386 = vld [vmem:[%s1385] sm:%s697]
    %s1387 = sshllo.u32 0, 4
    %s1388 = smul.addr 4, 115
    %s1389 = scalar_lea.vmem %s1, %s1388
    %1390 = vst [vmem:[%s1389] sm:%s1387] %v1386
    %s1391 = scalar_lea.vmem [#allocation0], 928
    %v1392 = vld [vmem:[%s1391] sm:%s697]
    %s1393 = sshllo.u32 0, 4
    %s1394 = smul.addr 4, 116
    %s1395 = scalar_lea.vmem %s1, %s1394
    %1396 = vst [vmem:[%s1395] sm:%s1393] %v1392
    %s1397 = scalar_lea.vmem [#allocation0], 936
    %v1398 = vld [vmem:[%s1397] sm:%s697]
    %s1399 = sshllo.u32 0, 4
    %s1400 = smul.addr 4, 117
    %s1401 = scalar_lea.vmem %s1, %s1400
    %1402 = vst [vmem:[%s1401] sm:%s1399] %v1398
    %s1403 = scalar_lea.vmem [#allocation0], 944
    %v1404 = vld [vmem:[%s1403] sm:%s697]
    %s1405 = sshllo.u32 0, 4
    %s1406 = smul.addr 4, 118
    %s1407 = scalar_lea.vmem %s1, %s1406
    %1408 = vst [vmem:[%s1407] sm:%s1405] %v1404
    %s1409 = scalar_lea.vmem [#allocation0], 952
    %v1410 = vld [vmem:[%s1409] sm:%s697]
    %s1411 = sshllo.u32 0, 4
    %s1412 = smul.addr 4, 119
    %s1413 = scalar_lea.vmem %s1, %s1412
    %1414 = vst [vmem:[%s1413] sm:%s1411] %v1410
    %s1415 = scalar_lea.vmem [#allocation0], 960
    %v1416 = vld [vmem:[%s1415] sm:%s697]
    %s1417 = sshllo.u32 0, 4
    %s1418 = smul.addr 4, 120
    %s1419 = scalar_lea.vmem %s1, %s1418
    %1420 = vst [vmem:[%s1419] sm:%s1417] %v1416
    %s1421 = scalar_lea.vmem [#allocation0], 968
    %v1422 = vld [vmem:[%s1421] sm:%s697]
    %s1423 = sshllo.u32 0, 4
    %s1424 = smul.addr 4, 121
    %s1425 = scalar_lea.vmem %s1, %s1424
    %1426 = vst [vmem:[%s1425] sm:%s1423] %v1422
    %s1427 = scalar_lea.vmem [#allocation0], 976
    %v1428 = vld [vmem:[%s1427] sm:%s697]
    %s1429 = sshllo.u32 0, 4
    %s1430 = smul.addr 4, 122
    %s1431 = scalar_lea.vmem %s1, %s1430
    %1432 = vst [vmem:[%s1431] sm:%s1429] %v1428
    %s1433 = scalar_lea.vmem [#allocation0], 984
    %v1434 = vld [vmem:[%s1433] sm:%s697]
    %s1435 = sshllo.u32 0, 4
    %s1436 = smul.addr 4, 123
    %s1437 = scalar_lea.vmem %s1, %s1436
    %1438 = vst [vmem:[%s1437] sm:%s1435] %v1434
    %s1439 = scalar_lea.vmem [#allocation0], 992
    %v1440 = vld [vmem:[%s1439] sm:%s697]
    %s1441 = sshllo.u32 0, 4
    %s1442 = smul.addr 4, 124
    %s1443 = scalar_lea.vmem %s1, %s1442
    %1444 = vst [vmem:[%s1443] sm:%s1441] %v1440
    %s1445 = scalar_lea.vmem [#allocation0], 1000
    %v1446 = vld [vmem:[%s1445] sm:%s697]
    %s1447 = sshllo.u32 0, 4
    %s1448 = smul.addr 4, 125
    %s1449 = scalar_lea.vmem %s1, %s1448
    %1450 = vst [vmem:[%s1449] sm:%s1447] %v1446
    %s1451 = scalar_lea.vmem [#allocation0], 1008
    %v1452 = vld [vmem:[%s1451] sm:%s697]
    %s1453 = sshllo.u32 0, 4
    %s1454 = smul.addr 4, 126
    %s1455 = scalar_lea.vmem %s1, %s1454
    %1456 = vst [vmem:[%s1455] sm:%s1453] %v1452
    %s1457 = scalar_lea.vmem [#allocation0], 1016
    %v1458 = vld [vmem:[%s1457] sm:%s697]
    %s1459 = sshllo.u32 0, 4
    %s1460 = smul.addr 4, 127
    %s1461 = scalar_lea.vmem %s1, %s1460
    %1462 = vst [vmem:[%s1461] sm:%s1459] %v1458
    %s1463 = scalar_lea.vmem [#allocation0], 1024
    %v1464 = vld [vmem:[%s1463] sm:%s697]
    %s1465 = sshllo.u32 0, 4
    %s1466 = smul.addr 4, 128
    %s1467 = scalar_lea.vmem %s1, %s1466
    %1468 = vst [vmem:[%s1467] sm:%s1465] %v1464
    %s1469 = scalar_lea.vmem [#allocation0], 1032
    %v1470 = vld [vmem:[%s1469] sm:%s697]
    %s1471 = sshllo.u32 0, 4
    %s1472 = smul.addr 4, 129
    %s1473 = scalar_lea.vmem %s1, %s1472
    %1474 = vst [vmem:[%s1473] sm:%s1471] %v1470
    %s1475 = scalar_lea.vmem [#allocation0], 1040
    %v1476 = vld [vmem:[%s1475] sm:%s697]
    %s1477 = sshllo.u32 0, 4
    %s1478 = smul.addr 4, 130
    %s1479 = scalar_lea.vmem %s1, %s1478
    %1480 = vst [vmem:[%s1479] sm:%s1477] %v1476
    %s1481 = scalar_lea.vmem [#allocation0], 1048
    %v1482 = vld [vmem:[%s1481] sm:%s697]
    %s1483 = sshllo.u32 0, 4
    %s1484 = smul.addr 4, 131
    %s1485 = scalar_lea.vmem %s1, %s1484
    %1486 = vst [vmem:[%s1485] sm:%s1483] %v1482
    %s1487 = scalar_lea.vmem [#allocation0], 1056
    %v1488 = vld [vmem:[%s1487] sm:%s697]
    %s1489 = sshllo.u32 0, 4
    %s1490 = smul.addr 4, 132
    %s1491 = scalar_lea.vmem %s1, %s1490
    %1492 = vst [vmem:[%s1491] sm:%s1489] %v1488
    %s1493 = scalar_lea.vmem [#allocation0], 1064
    %v1494 = vld [vmem:[%s1493] sm:%s697]
    %s1495 = sshllo.u32 0, 4
    %s1496 = smul.addr 4, 133
    %s1497 = scalar_lea.vmem %s1, %s1496
    %1498 = vst [vmem:[%s1497] sm:%s1495] %v1494
    %s1499 = scalar_lea.vmem [#allocation0], 1072
    %v1500 = vld [vmem:[%s1499] sm:%s697]
    %s1501 = sshllo.u32 0, 4
    %s1502 = smul.addr 4, 134
    %s1503 = scalar_lea.vmem %s1, %s1502
    %1504 = vst [vmem:[%s1503] sm:%s1501] %v1500
    %s1505 = scalar_lea.vmem [#allocation0], 1080
    %v1506 = vld [vmem:[%s1505] sm:%s697]
    %s1507 = sshllo.u32 0, 4
    %s1508 = smul.addr 4, 135
    %s1509 = scalar_lea.vmem %s1, %s1508
    %1510 = vst [vmem:[%s1509] sm:%s1507] %v1506
    %s1511 = scalar_lea.vmem [#allocation0], 1088
    %v1512 = vld [vmem:[%s1511] sm:%s697]
    %s1513 = sshllo.u32 0, 4
    %s1514 = smul.addr 4, 136
    %s1515 = scalar_lea.vmem %s1, %s1514
    %1516 = vst [vmem:[%s1515] sm:%s1513] %v1512
    %s1517 = scalar_lea.vmem [#allocation0], 1096
    %v1518 = vld [vmem:[%s1517] sm:%s697]
    %s1519 = sshllo.u32 0, 4
    %s1520 = smul.addr 4, 137
    %s1521 = scalar_lea.vmem %s1, %s1520
    %1522 = vst [vmem:[%s1521] sm:%s1519] %v1518
    %s1523 = scalar_lea.vmem [#allocation0], 1104
    %v1524 = vld [vmem:[%s1523] sm:%s697]
    %s1525 = sshllo.u32 0, 4
    %s1526 = smul.addr 4, 138
    %s1527 = scalar_lea.vmem %s1, %s1526
    %1528 = vst [vmem:[%s1527] sm:%s1525] %v1524
    %s1529 = scalar_lea.vmem [#allocation0], 1112
    %v1530 = vld [vmem:[%s1529] sm:%s697]
    %s1531 = sshllo.u32 0, 4
    %s1532 = smul.addr 4, 139
    %s1533 = scalar_lea.vmem %s1, %s1532
    %1534 = vst [vmem:[%s1533] sm:%s1531] %v1530
    %s1535 = scalar_lea.vmem [#allocation0], 1120
    %v1536 = vld [vmem:[%s1535] sm:%s697]
    %s1537 = sshllo.u32 0, 4
    %s1538 = smul.addr 4, 140
    %s1539 = scalar_lea.vmem %s1, %s1538
    %1540 = vst [vmem:[%s1539] sm:%s1537] %v1536
    %s1541 = scalar_lea.vmem [#allocation0], 1128
    %v1542 = vld [vmem:[%s1541] sm:%s697]
    %s1543 = sshllo.u32 0, 4
    %s1544 = smul.addr 4, 141
    %s1545 = scalar_lea.vmem %s1, %s1544
    %1546 = vst [vmem:[%s1545] sm:%s1543] %v1542
    %s1547 = scalar_lea.vmem [#allocation0], 1136
    %v1548 = vld [vmem:[%s1547] sm:%s697]
    %s1549 = sshllo.u32 0, 4
    %s1550 = smul.addr 4, 142
    %s1551 = scalar_lea.vmem %s1, %s1550
    %1552 = vst [vmem:[%s1551] sm:%s1549] %v1548
    %s1553 = scalar_lea.vmem [#allocation0], 1144
    %v1554 = vld [vmem:[%s1553] sm:%s697]
    %s1555 = sshllo.u32 0, 4
    %s1556 = smul.addr 4, 143
    %s1557 = scalar_lea.vmem %s1, %s1556
    %1558 = vst [vmem:[%s1557] sm:%s1555] %v1554
    %s1559 = scalar_lea.vmem [#allocation0], 1152
    %v1560 = vld [vmem:[%s1559] sm:%s697]
    %s1561 = sshllo.u32 0, 4
    %s1562 = smul.addr 4, 144
    %s1563 = scalar_lea.vmem %s1, %s1562
    %1564 = vst [vmem:[%s1563] sm:%s1561] %v1560
    %s1565 = scalar_lea.vmem [#allocation0], 1160
    %v1566 = vld [vmem:[%s1565] sm:%s697]
    %s1567 = sshllo.u32 0, 4
    %s1568 = smul.addr 4, 145
    %s1569 = scalar_lea.vmem %s1, %s1568
    %1570 = vst [vmem:[%s1569] sm:%s1567] %v1566
    %s1571 = scalar_lea.vmem [#allocation0], 1168
    %v1572 = vld [vmem:[%s1571] sm:%s697]
    %s1573 = sshllo.u32 0, 4
    %s1574 = smul.addr 4, 146
    %s1575 = scalar_lea.vmem %s1, %s1574
    %1576 = vst [vmem:[%s1575] sm:%s1573] %v1572
    %s1577 = scalar_lea.vmem [#allocation0], 1176
    %v1578 = vld [vmem:[%s1577] sm:%s697]
    %s1579 = sshllo.u32 0, 4
    %s1580 = smul.addr 4, 147
    %s1581 = scalar_lea.vmem %s1, %s1580
    %1582 = vst [vmem:[%s1581] sm:%s1579] %v1578
    %s1583 = scalar_lea.vmem [#allocation0], 1184
    %v1584 = vld [vmem:[%s1583] sm:%s697]
    %s1585 = sshllo.u32 0, 4
    %s1586 = smul.addr 4, 148
    %s1587 = scalar_lea.vmem %s1, %s1586
    %1588 = vst [vmem:[%s1587] sm:%s1585] %v1584
    %s1589 = scalar_lea.vmem [#allocation0], 1192
    %v1590 = vld [vmem:[%s1589] sm:%s697]
    %s1591 = sshllo.u32 0, 4
    %s1592 = smul.addr 4, 149
    %s1593 = scalar_lea.vmem %s1, %s1592
    %1594 = vst [vmem:[%s1593] sm:%s1591] %v1590
    %s1595 = scalar_lea.vmem [#allocation0], 1200
    %v1596 = vld [vmem:[%s1595] sm:%s697]
    %s1597 = sshllo.u32 0, 4
    %s1598 = smul.addr 4, 150
    %s1599 = scalar_lea.vmem %s1, %s1598
    %1600 = vst [vmem:[%s1599] sm:%s1597] %v1596
    %s1601 = scalar_lea.vmem [#allocation0], 1208
    %v1602 = vld [vmem:[%s1601] sm:%s697]
    %s1603 = sshllo.u32 0, 4
    %s1604 = smul.addr 4, 151
    %s1605 = scalar_lea.vmem %s1, %s1604
    %1606 = vst [vmem:[%s1605] sm:%s1603] %v1602
    %s1607 = scalar_lea.vmem [#allocation0], 1216
    %v1608 = vld [vmem:[%s1607] sm:%s697]
    %s1609 = sshllo.u32 0, 4
    %s1610 = smul.addr 4, 152
    %s1611 = scalar_lea.vmem %s1, %s1610
    %1612 = vst [vmem:[%s1611] sm:%s1609] %v1608
    %s1613 = scalar_lea.vmem [#allocation0], 1224
    %v1614 = vld [vmem:[%s1613] sm:%s697]
    %s1615 = sshllo.u32 0, 4
    %s1616 = smul.addr 4, 153
    %s1617 = scalar_lea.vmem %s1, %s1616
    %1618 = vst [vmem:[%s1617] sm:%s1615] %v1614
    %s1619 = scalar_lea.vmem [#allocation0], 1232
    %v1620 = vld [vmem:[%s1619] sm:%s697]
    %s1621 = sshllo.u32 0, 4
    %s1622 = smul.addr 4, 154
    %s1623 = scalar_lea.vmem %s1, %s1622
    %1624 = vst [vmem:[%s1623] sm:%s1621] %v1620
    %s1625 = scalar_lea.vmem [#allocation0], 1240
    %v1626 = vld [vmem:[%s1625] sm:%s697]
    %s1627 = sshllo.u32 0, 4
    %s1628 = smul.addr 4, 155
    %s1629 = scalar_lea.vmem %s1, %s1628
    %1630 = vst [vmem:[%s1629] sm:%s1627] %v1626
    %s1631 = scalar_lea.vmem [#allocation0], 1248
    %v1632 = vld [vmem:[%s1631] sm:%s697]
    %s1633 = sshllo.u32 0, 4
    %s1634 = smul.addr 4, 156
    %s1635 = scalar_lea.vmem %s1, %s1634
    %1636 = vst [vmem:[%s1635] sm:%s1633] %v1632
    %s1637 = scalar_lea.vmem [#allocation0], 1256
    %v1638 = vld [vmem:[%s1637] sm:%s697]
    %s1639 = sshllo.u32 0, 4
    %s1640 = smul.addr 4, 157
    %s1641 = scalar_lea.vmem %s1, %s1640
    %1642 = vst [vmem:[%s1641] sm:%s1639] %v1638
    %s1643 = scalar_lea.vmem [#allocation0], 1264
    %v1644 = vld [vmem:[%s1643] sm:%s697]
    %s1645 = sshllo.u32 0, 4
    %s1646 = smul.addr 4, 158
    %s1647 = scalar_lea.vmem %s1, %s1646
    %1648 = vst [vmem:[%s1647] sm:%s1645] %v1644
    %s1649 = scalar_lea.vmem [#allocation0], 1272
    %v1650 = vld [vmem:[%s1649] sm:%s697]
    %s1651 = sshllo.u32 0, 4
    %s1652 = smul.addr 4, 159
    %s1653 = scalar_lea.vmem %s1, %s1652
    %1654 = vst [vmem:[%s1653] sm:%s1651] %v1650
    %s1655 = scalar_lea.vmem [#allocation0], 1280
    %v1656 = vld [vmem:[%s1655] sm:%s697]
    %s1657 = sshllo.u32 0, 4
    %s1658 = smul.addr 4, 160
    %s1659 = scalar_lea.vmem %s1, %s1658
    %1660 = vst [vmem:[%s1659] sm:%s1657] %v1656
    %s1661 = scalar_lea.vmem [#allocation0], 1288
    %v1662 = vld [vmem:[%s1661] sm:%s697]
    %s1663 = sshllo.u32 0, 4
    %s1664 = smul.addr 4, 161
    %s1665 = scalar_lea.vmem %s1, %s1664
    %1666 = vst [vmem:[%s1665] sm:%s1663] %v1662
    %s1667 = scalar_lea.vmem [#allocation0], 1296
    %v1668 = vld [vmem:[%s1667] sm:%s697]
    %s1669 = sshllo.u32 0, 4
    %s1670 = smul.addr 4, 162
    %s1671 = scalar_lea.vmem %s1, %s1670
    %1672 = vst [vmem:[%s1671] sm:%s1669] %v1668
    %s1673 = scalar_lea.vmem [#allocation0], 1304
    %v1674 = vld [vmem:[%s1673] sm:%s697]
    %s1675 = sshllo.u32 0, 4
    %s1676 = smul.addr 4, 163
    %s1677 = scalar_lea.vmem %s1, %s1676
    %1678 = vst [vmem:[%s1677] sm:%s1675] %v1674
    %s1679 = scalar_lea.vmem [#allocation0], 1312
    %v1680 = vld [vmem:[%s1679] sm:%s697]
    %s1681 = sshllo.u32 0, 4
    %s1682 = smul.addr 4, 164
    %s1683 = scalar_lea.vmem %s1, %s1682
    %1684 = vst [vmem:[%s1683] sm:%s1681] %v1680
    %s1685 = scalar_lea.vmem [#allocation0], 1320
    %v1686 = vld [vmem:[%s1685] sm:%s697]
    %s1687 = sshllo.u32 0, 4
    %s1688 = smul.addr 4, 165
    %s1689 = scalar_lea.vmem %s1, %s1688
    %1690 = vst [vmem:[%s1689] sm:%s1687] %v1686
    %s1691 = scalar_lea.vmem [#allocation0], 1328
    %v1692 = vld [vmem:[%s1691] sm:%s697]
    %s1693 = sshllo.u32 0, 4
    %s1694 = smul.addr 4, 166
    %s1695 = scalar_lea.vmem %s1, %s1694
    %1696 = vst [vmem:[%s1695] sm:%s1693] %v1692
    %s1697 = scalar_lea.vmem [#allocation0], 1336
    %v1698 = vld [vmem:[%s1697] sm:%s697]
    %s1699 = sshllo.u32 0, 4
    %s1700 = smul.addr 4, 167
    %s1701 = scalar_lea.vmem %s1, %s1700
    %1702 = vst [vmem:[%s1701] sm:%s1699] %v1698
    %s1703 = scalar_lea.vmem [#allocation0], 1344
    %v1704 = vld [vmem:[%s1703] sm:%s697]
    %s1705 = sshllo.u32 0, 4
    %s1706 = smul.addr 4, 168
    %s1707 = scalar_lea.vmem %s1, %s1706
    %1708 = vst [vmem:[%s1707] sm:%s1705] %v1704
    %s1709 = scalar_lea.vmem [#allocation0], 1352
    %v1710 = vld [vmem:[%s1709] sm:%s697]
    %s1711 = sshllo.u32 0, 4
    %s1712 = smul.addr 4, 169
    %s1713 = scalar_lea.vmem %s1, %s1712
    %1714 = vst [vmem:[%s1713] sm:%s1711] %v1710
    %s1715 = scalar_lea.vmem [#allocation0], 1360
    %v1716 = vld [vmem:[%s1715] sm:%s697]
    %s1717 = sshllo.u32 0, 4
    %s1718 = smul.addr 4, 170
    %s1719 = scalar_lea.vmem %s1, %s1718
    %1720 = vst [vmem:[%s1719] sm:%s1717] %v1716
    %s1721 = scalar_lea.vmem [#allocation0], 1368
    %v1722 = vld [vmem:[%s1721] sm:%s697]
    %s1723 = sshllo.u32 0, 4
    %s1724 = smul.addr 4, 171
    %s1725 = scalar_lea.vmem %s1, %s1724
    %1726 = vst [vmem:[%s1725] sm:%s1723] %v1722
    %s1727 = scalar_lea.vmem [#allocation0], 1376
    %v1728 = vld [vmem:[%s1727] sm:%s697]
    %s1729 = sshllo.u32 0, 4
    %s1730 = smul.addr 4, 172
    %s1731 = scalar_lea.vmem %s1, %s1730
    %1732 = vst [vmem:[%s1731] sm:%s1729] %v1728
    %s1733 = scalar_lea.vmem [#allocation0], 1384
    %v1734 = vld [vmem:[%s1733] sm:%s697]
    %s1735 = sshllo.u32 0, 4
    %s1736 = smul.addr 4, 173
    %s1737 = scalar_lea.vmem %s1, %s1736
    %1738 = vst [vmem:[%s1737] sm:%s1735] %v1734
    %s1739 = scalar_lea.vmem [#allocation0], 1392
    %v1740 = vld [vmem:[%s1739] sm:%s697]
    %s1741 = sshllo.u32 0, 4
    %s1742 = smul.addr 4, 174
    %s1743 = scalar_lea.vmem %s1, %s1742
    %1744 = vst [vmem:[%s1743] sm:%s1741] %v1740
    %s1745 = scalar_lea.vmem [#allocation0], 1400
    %v1746 = vld [vmem:[%s1745] sm:%s697]
    %s1747 = sshllo.u32 0, 4
    %s1748 = smul.addr 4, 175
    %s1749 = scalar_lea.vmem %s1, %s1748
    %1750 = vst [vmem:[%s1749] sm:%s1747] %v1746
    %s1751 = scalar_lea.vmem [#allocation0], 1408
    %v1752 = vld [vmem:[%s1751] sm:%s697]
    %s1753 = sshllo.u32 0, 4
    %s1754 = smul.addr 4, 176
    %s1755 = scalar_lea.vmem %s1, %s1754
    %1756 = vst [vmem:[%s1755] sm:%s1753] %v1752
    %s1757 = scalar_lea.vmem [#allocation0], 1416
    %v1758 = vld [vmem:[%s1757] sm:%s697]
    %s1759 = sshllo.u32 0, 4
    %s1760 = smul.addr 4, 177
    %s1761 = scalar_lea.vmem %s1, %s1760
    %1762 = vst [vmem:[%s1761] sm:%s1759] %v1758
    %s1763 = scalar_lea.vmem [#allocation0], 1424
    %v1764 = vld [vmem:[%s1763] sm:%s697]
    %s1765 = sshllo.u32 0, 4
    %s1766 = smul.addr 4, 178
    %s1767 = scalar_lea.vmem %s1, %s1766
    %1768 = vst [vmem:[%s1767] sm:%s1765] %v1764
    %s1769 = scalar_lea.vmem [#allocation0], 1432
    %v1770 = vld [vmem:[%s1769] sm:%s697]
    %s1771 = sshllo.u32 0, 4
    %s1772 = smul.addr 4, 179
    %s1773 = scalar_lea.vmem %s1, %s1772
    %1774 = vst [vmem:[%s1773] sm:%s1771] %v1770
    %s1775 = scalar_lea.vmem [#allocation0], 1440
    %v1776 = vld [vmem:[%s1775] sm:%s697]
    %s1777 = sshllo.u32 0, 4
    %s1778 = smul.addr 4, 180
    %s1779 = scalar_lea.vmem %s1, %s1778
    %1780 = vst [vmem:[%s1779] sm:%s1777] %v1776
    %s1781 = scalar_lea.vmem [#allocation0], 1448
    %v1782 = vld [vmem:[%s1781] sm:%s697]
    %s1783 = sshllo.u32 0, 4
    %s1784 = smul.addr 4, 181
    %s1785 = scalar_lea.vmem %s1, %s1784
    %1786 = vst [vmem:[%s1785] sm:%s1783] %v1782
    %s1787 = scalar_lea.vmem [#allocation0], 1456
    %v1788 = vld [vmem:[%s1787] sm:%s697]
    %s1789 = sshllo.u32 0, 4
    %s1790 = smul.addr 4, 182
    %s1791 = scalar_lea.vmem %s1, %s1790
    %1792 = vst [vmem:[%s1791] sm:%s1789] %v1788
    %s1793 = scalar_lea.vmem [#allocation0], 1464
    %v1794 = vld [vmem:[%s1793] sm:%s697]
    %s1795 = sshllo.u32 0, 4
    %s1796 = smul.addr 4, 183
    %s1797 = scalar_lea.vmem %s1, %s1796
    %1798 = vst [vmem:[%s1797] sm:%s1795] %v1794
    %s1799 = scalar_lea.vmem [#allocation0], 1472
    %v1800 = vld [vmem:[%s1799] sm:%s697]
    %s1801 = sshllo.u32 0, 4
    %s1802 = smul.addr 4, 184
    %s1803 = scalar_lea.vmem %s1, %s1802
    %1804 = vst [vmem:[%s1803] sm:%s1801] %v1800
    %s1805 = scalar_lea.vmem [#allocation0], 1480
    %v1806 = vld [vmem:[%s1805] sm:%s697]
    %s1807 = sshllo.u32 0, 4
    %s1808 = smul.addr 4, 185
    %s1809 = scalar_lea.vmem %s1, %s1808
    %1810 = vst [vmem:[%s1809] sm:%s1807] %v1806
    %s1811 = scalar_lea.vmem [#allocation0], 1488
    %v1812 = vld [vmem:[%s1811] sm:%s697]
    %s1813 = sshllo.u32 0, 4
    %s1814 = smul.addr 4, 186
    %s1815 = scalar_lea.vmem %s1, %s1814
    %1816 = vst [vmem:[%s1815] sm:%s1813] %v1812
    %s1817 = scalar_lea.vmem [#allocation0], 1496
    %v1818 = vld [vmem:[%s1817] sm:%s697]
    %s1819 = sshllo.u32 0, 4
    %s1820 = smul.addr 4, 187
    %s1821 = scalar_lea.vmem %s1, %s1820
    %1822 = vst [vmem:[%s1821] sm:%s1819] %v1818
    %s1823 = scalar_lea.vmem [#allocation0], 1504
    %v1824 = vld [vmem:[%s1823] sm:%s697]
    %s1825 = sshllo.u32 0, 4
    %s1826 = smul.addr 4, 188
    %s1827 = scalar_lea.vmem %s1, %s1826
    %1828 = vst [vmem:[%s1827] sm:%s1825] %v1824
    %s1829 = scalar_lea.vmem [#allocation0], 1512
    %v1830 = vld [vmem:[%s1829] sm:%s697]
    %s1831 = sshllo.u32 0, 4
    %s1832 = smul.addr 4, 189
    %s1833 = scalar_lea.vmem %s1, %s1832
    %1834 = vst [vmem:[%s1833] sm:%s1831] %v1830
    %s1835 = scalar_lea.vmem [#allocation0], 1520
    %v1836 = vld [vmem:[%s1835] sm:%s697]
    %s1837 = sshllo.u32 0, 4
    %s1838 = smul.addr 4, 190
    %s1839 = scalar_lea.vmem %s1, %s1838
    %1840 = vst [vmem:[%s1839] sm:%s1837] %v1836
    %s1841 = scalar_lea.vmem [#allocation0], 1528
    %v1842 = vld [vmem:[%s1841] sm:%s697]
    %s1843 = sshllo.u32 0, 4
    %s1844 = smul.addr 4, 191
    %s1845 = scalar_lea.vmem %s1, %s1844
    %1846 = vst [vmem:[%s1845] sm:%s1843] %v1842

// kernel: forward.5
$region0: #{forward.5}
  #allocation0 [shape = 'u32[]', space=smem, size = 0x4, offset = 0x4, fixed_abs, tag = 'smem constant byte address 0x4 - core index']
  #allocation1 [shape = 'u32[144,128]{1,0:T(1,128)}', space=vmem, size = 0x12000, scoped, tag = 'internal scratch']
  %s0 = inlined_call_operand.vmem [shape: f32[64,288], index: 0, kind: input, shape index: {}]
  %s1 = inlined_call_operand.vmem [shape: bf16[288,64], index: 1, kind: input, shape index: {}]
  %s2 = inlined_call_operand.vmem [shape: f32[1,64], index: 2, kind: input, shape index: {}]
  %s3 = inlined_call_operand.vmem [shape: bf16[64,4], index: 3, kind: input, shape index: {}]
  %s4 = inlined_call_operand.vmem [shape: f32[1,4], index: 4, kind: input, shape index: {}]
  %s5 = inlined_call_operand.vmem [shape: f32[64,4], index: 5, kind: output, shape index: {}]
  %s6 = sld [smem:[#allocation0]]
  $region30: #{forward.5} parent=0
    _
  %s8 = ssub.s32 1, %s6
  %s9 = scalar_select 0, %s8, %s6
  // Predicated region
  $region2: #{forward.5} parent=0 // pred_check
    _
  $region3: #{forward.5} parent=0 // pred_check_branch
    %11 = sbr.rel (0) target = $region5
  $region4: #{forward.5} parent=0 // pred_region
    _
  $region5: #{forward.5} parent=0 // pred_fallthru
    _
  // Predicated region
  $region6: #{forward.5} parent=0 // pred_check
    _
  $region7: #{forward.5} parent=0 // pred_check_branch
    %13 = sbr.rel (0) target = $region9
  $region8: #{forward.5} parent=0 // pred_region
    _
  $region9: #{forward.5} parent=0 // pred_fallthru
    _
  // Predicated region
  $region10: #{forward.5} parent=0 // pred_check
    _
  $region11: #{forward.5} parent=0 // pred_check_branch
    %15 = sbr.rel (0) target = $region13
  $region12: #{forward.5} parent=0 // pred_region
    _
  $region13: #{forward.5} parent=0 // pred_fallthru
    _
  // Predicated region
  $region14: #{forward.5} parent=0 // pred_check
    _
  $region15: #{forward.5} parent=0 // pred_check_branch
    %17 = sbr.rel (0) target = $region17
  $region16: #{forward.5} parent=0 // pred_region
    _
  $region17: #{forward.5} parent=0 // pred_fallthru
    _
  // Predicated region
  $region18: #{forward.5} parent=0 // pred_check
    _
  $region19: #{forward.5} parent=0 // pred_check_branch
    %19 = sbr.rel (0) target = $region21
  $region20: #{forward.5} parent=0 // pred_region
    _
  $region21: #{forward.5} parent=0 // pred_fallthru
    _
  %v21 = vld [vmem:[%s0] sm:$0xff]
  %v22 = vld [vmem:[%s0 + $0x8] sm:$0xff]
  %v23 = vld [vmem:[%s0 + $0x10] sm:$0xff]
  %v24 = vld [vmem:[%s0 + $0x18] sm:$0xff]
  %v25 = vld [vmem:[%s0 + $0x20] sm:$0xff]
  %v26 = vld [vmem:[%s0 + $0x28] sm:$0xff]
  %v27 = vld [vmem:[%s0 + $0x30] sm:$0xff]
  %v28 = vld [vmem:[%s0 + $0x38] sm:$0xff]
  %v29 = vld [vmem:[%s0 + $0x40] sm:$0xff]
  %v30 = vld [vmem:[%s0 + $0x48] sm:$0xff]
  %v31 = vld [vmem:[%s0 + $0x50] sm:$0xff]
  %v32 = vld [vmem:[%s0 + $0x58] sm:$0xff]
  %v33 = vld [vmem:[%s0 + $0x60] sm:$0xff]
  %v34 = vld [vmem:[%s0 + $0x68] sm:$0xff]
  %v35 = vld [vmem:[%s0 + $0x70] sm:$0xff]
  %v36 = vld [vmem:[%s0 + $0x78] sm:$0xff]
  %v37 = vld [vmem:[%s0 + $0x80] sm:$0xff]
  %v38 = vld [vmem:[%s0 + $0x88] sm:$0xff]
  %v39 = vld [vmem:[%s0 + $0x90] sm:$0xff]
  %v40 = vld [vmem:[%s0 + $0x98] sm:$0xff]
  %v41 = vld [vmem:[%s0 + $0xa0] sm:$0xff]
  %v42 = vld [vmem:[%s0 + $0xa8] sm:$0xff]
  %v43 = vld [vmem:[%s0 + $0xb0] sm:$0xff]
  %v44 = vld [vmem:[%s0 + $0xb8] sm:$0xff]
  %v45 = vpack.c.bf16 %v24, %v21
  %v46 = vpack.c.bf16 %v25, %v22
  %v47 = vpack.c.bf16 %v26, %v23
  %v48 = vpack.c.bf16 %v30, %v27
  %v49 = vpack.c.bf16 %v31, %v28
  %v50 = vpack.c.bf16 %v32, %v29
  %v51 = vpack.c.bf16 %v36, %v33
  %v52 = vpack.c.bf16 %v37, %v34
  %v53 = vpack.c.bf16 %v38, %v35
  %v54 = vpack.c.bf16 %v42, %v39
  %v55 = vpack.c.bf16 %v43, %v40
  %v56 = vpack.c.bf16 %v44, %v41
  %v57 = vld [vmem:[%s1] sm:$0xf]
  %v58 = vld [vmem:[%s1 + $0x4] sm:$0xf]
  %v59 = vld [vmem:[%s1 + $0x8] sm:$0xf]
  %v60 = vld [vmem:[%s1 + $0xc] sm:$0xf]
  %v61 = vld [vmem:[%s1 + $0x10] sm:$0xf]
  %v62 = vld [vmem:[%s1 + $0x14] sm:$0xf]
  %v63 = vld [vmem:[%s1 + $0x18] sm:$0xf]
  %v64 = vld [vmem:[%s1 + $0x1c] sm:$0xf]
  %v65 = vld [vmem:[%s1 + $0x20] sm:$0xf]
  %v66 = vld [vmem:[%s1 + $0x24] sm:$0xf]
  %v67 = vld [vmem:[%s1 + $0x28] sm:$0xf]
  %v68 = vld [vmem:[%s1 + $0x2c] sm:$0xf]
  %v69 = vld [vmem:[%s1 + $0x30] sm:$0xf]
  %v70 = vld [vmem:[%s1 + $0x34] sm:$0xf]
  %v71 = vld [vmem:[%s1 + $0x38] sm:$0xf]
  %v72 = vld [vmem:[%s1 + $0x3c] sm:$0xf]
  %v73 = vld [vmem:[%s1 + $0x40] sm:$0xf]
  %v74 = vld [vmem:[%s1 + $0x44] sm:$0xf]
  %v75 = vld [vmem:[%s1 + $0x48] sm:$0xf]
  %v76 = vld [vmem:[%s1 + $0x4c] sm:$0xf]
  %v77 = vld [vmem:[%s1 + $0x50] sm:$0xf]
  %v78 = vld [vmem:[%s1 + $0x54] sm:$0xf]
  %v79 = vld [vmem:[%s1 + $0x58] sm:$0xf]
  %v80 = vld [vmem:[%s1 + $0x5c] sm:$0xf]
  %v81 = vld [vmem:[%s1 + $0x60] sm:$0xf]
  %v82 = vld [vmem:[%s1 + $0x64] sm:$0xf]
  %v83 = vld [vmem:[%s1 + $0x68] sm:$0xf]
  %v84 = vld [vmem:[%s1 + $0x6c] sm:$0xf]
  %v85 = vld [vmem:[%s1 + $0x70] sm:$0xf]
  %v86 = vld [vmem:[%s1 + $0x74] sm:$0xf]
  %v87 = vld [vmem:[%s1 + $0x78] sm:$0xf]
  %v88 = vld [vmem:[%s1 + $0x7c] sm:$0xf]
  %v89 = vld [vmem:[%s1 + $0x80] sm:$0xf]
  %v90 = vld [vmem:[%s1 + $0x84] sm:$0xf]
  %v91 = vld [vmem:[%s1 + $0x88] sm:$0xf]
  %v92 = vld [vmem:[%s1 + $0x8c] sm:$0xf]
  %v93 = vld [vmem:[%s2] sm:$0x1]
  %v95 = vlaneseq
  %v96 = vshrl.u32 %v95, 7
  %v97 = vsub.s32 0, %v96
  %v98 = vrot.slane %v93, %v97
  %v136 = vunpack.c.l.b16 %v57
  %v137 = vunpack.c.l.b16 %v58
  %v138 = vunpack.c.l.b16 %v59
  %v139 = vunpack.c.l.b16 %v60
  %v140 = vunpack.c.l.b16 %v61
  %v141 = vunpack.c.l.b16 %v62
  %v142 = vunpack.c.l.b16 %v63
  %v143 = vunpack.c.l.b16 %v64
  %v144 = vunpack.c.l.b16 %v65
  %v145 = vunpack.c.l.b16 %v66
  %v146 = vunpack.c.l.b16 %v67
  %v147 = vunpack.c.l.b16 %v68
  %v148 = vunpack.c.l.b16 %v69
  %v149 = vunpack.c.l.b16 %v70
  %v150 = vunpack.c.l.b16 %v71
  %v151 = vunpack.c.l.b16 %v72
  %v152 = vunpack.c.l.b16 %v73
  %v153 = vunpack.c.l.b16 %v74
  %v154 = vunpack.c.l.b16 %v75
  %v155 = vunpack.c.l.b16 %v76
  %v156 = vunpack.c.l.b16 %v77
  %v157 = vunpack.c.l.b16 %v78
  %v158 = vunpack.c.l.b16 %v79
  %v159 = vunpack.c.l.b16 %v80
  %v160 = vunpack.c.l.b16 %v81
  %v161 = vunpack.c.l.b16 %v82
  %v162 = vunpack.c.l.b16 %v83
  %v163 = vunpack.c.l.b16 %v84
  %v164 = vunpack.c.l.b16 %v85
  %v165 = vunpack.c.l.b16 %v86
  %v166 = vunpack.c.l.b16 %v87
  %v167 = vunpack.c.l.b16 %v88
  %v168 = vunpack.c.l.b16 %v89
  %v169 = vunpack.c.l.b16 %v90
  %v170 = vunpack.c.l.b16 %v91
  %v171 = vunpack.c.l.b16 %v92
  %v172 = vpack.c.b16 %v137, %v136
  %v173 = vpack.c.b16 %v139, %v138
  %v174 = vpack.c.b16 %v141, %v140
  %v175 = vpack.c.b16 %v143, %v142
  %v176 = vpack.c.b16 %v145, %v144
  %v177 = vpack.c.b16 %v147, %v146
  %v178 = vpack.c.b16 %v149, %v148
  %v179 = vpack.c.b16 %v151, %v150
  %v180 = vpack.c.b16 %v153, %v152
  %v181 = vpack.c.b16 %v155, %v154
  %v182 = vpack.c.b16 %v157, %v156
  %v183 = vpack.c.b16 %v159, %v158
  %v184 = vpack.c.b16 %v161, %v160
  %v185 = vpack.c.b16 %v163, %v162
  %v186 = vpack.c.b16 %v165, %v164
  %v187 = vpack.c.b16 %v167, %v166
  %v188 = vpack.c.b16 %v169, %v168
  %v189 = vpack.c.b16 %v171, %v170
  %vm208 = vcmask 261120
  %v210 = vsel %vm208, %v47, 0
  %v213 = vsel %vm208, %v50, 0
  %v216 = vsel %vm208, %v53, 0
  %v219 = vsel %vm208, %v56, 0
  %221 = vmatprep.subr.bf16.mxu0 0
  %222 = vmatpush1.bf16.msra.mxu0 %v172
  %223 = vmatprep.subr.bf16.mxu0 0
  %224 = vmatpush1.bf16.msra.mxu0 %v173
  %225 = vmatprep.subr.bf16.mxu0 0
  %226 = vmatpush1.bf16.msra.mxu0 %v174
  %227 = vmatprep.subr.bf16.mxu0 0
  %228 = vmatpush1.bf16.msra.mxu0 %v175
  %229 = vmatprep.subr.bf16.mxu0 0
  %230 = vmatpush1.bf16.msra.mxu0 %v176
  %231 = vmatprep.subr.bf16.mxu0 0
  %232 = vmatpush1.bf16.msra.mxu0 %v177
  %233 = vmatprep.subr.bf16.mxu0 0
  %234 = vmatpush1.bf16.msra.mxu0 %v178
  %235 = vmatprep.subr.bf16.mxu0 0
  %236 = vmatpush1.bf16.msra.mxu0 %v179
  %237 = vmatprep.subr.bf16.mxu0 0
  %238 = vmatpush1.bf16.msra.mxu0 %v180
  %239 = vmatprep.subr.bf16.mxu0 0
  %240 = vmatpush1.bf16.msra.mxu0 %v181
  %241 = vmatprep.subr.bf16.mxu0 0
  %242 = vmatpush1.bf16.msra.mxu0 %v182
  %243 = vmatprep.subr.bf16.mxu0 0
  %244 = vmatpush1.bf16.msra.mxu0 %v183
  %245 = vmatprep.subr.bf16.mxu0 0
  %246 = vmatpush1.bf16.msra.mxu0 %v184
  %247 = vmatprep.subr.bf16.mxu0 0
  %248 = vmatpush1.bf16.msra.mxu0 %v185
  %249 = vmatprep.subr.bf16.mxu0 0
  %250 = vmatpush1.bf16.msra.mxu0 %v186
  %251 = vmatprep.subr.bf16.mxu0 0
  %252 = vmatpush1.bf16.msra.mxu0 %v187
  %253 = vmatprep.mubr.bf16.mxu0 %v46
  %254 = vmatmul.mubr.bf16.gmra.mrb[0].mxu0 %v45
  %v255 = vpop.f32.mrb[0].mxu0
  %v256 = vadd.f32 %v98, %v255
  %v257 = vpop.f32.mrb[0].mxu0
  %v258 = vpop.f32.mrb[0].mxu0
  %v259 = vadd.f32 %v98, %v258
  %v260 = vpop.f32.mrb[0].mxu0
  %261 = vmatprep.mubr.bf16.mxu0 %v49
  %262 = vmatmul.mubr.bf16.gmra.mrb[0].mxu0 %v48
  %v263 = vpop.f32.mrb[0].mxu0
  %v264 = vadd.f32 %v98, %v263
  %v265 = vpop.f32.mrb[0].mxu0
  %v266 = vpop.f32.mrb[0].mxu0
  %v267 = vadd.f32 %v98, %v266
  %v268 = vpop.f32.mrb[0].mxu0
  %269 = vmatprep.mubr.bf16.mxu0 %v52
  %270 = vmatmul.mubr.bf16.gmra.mrb[0].mxu0 %v51
  %v271 = vpop.f32.mrb[0].mxu0
  %v272 = vadd.f32 %v98, %v271
  %v273 = vpop.f32.mrb[0].mxu0
  %v274 = vpop.f32.mrb[0].mxu0
  %v275 = vadd.f32 %v98, %v274
  %v276 = vpop.f32.mrb[0].mxu0
  %277 = vmatprep.mubr.bf16.mxu0 %v55
  %278 = vmatmul.mubr.bf16.gmra.mrb[0].mxu0 %v54
  %v279 = vpop.f32.mrb[0].mxu0
  %v280 = vadd.f32 %v98, %v279
  %v281 = vpop.f32.mrb[0].mxu0
  %v282 = vpop.f32.mrb[0].mxu0
  %v283 = vadd.f32 %v98, %v282
  %v284 = vpop.f32.mrb[0].mxu0
  %285 = vdwg.mxu0
  %286 = vmatprep.subr.bf16.mxu0 0
  %287 = vmatpush1.bf16.msra.mxu0 %v188
  %288 = vmatprep.subr.bf16.mxu0 0
  %289 = vmatpush1.bf16.msra.mxu0 %v189
  %290 = vmatprep.subr.bf16.mxu0 0
  %291 = vmatpush1.bf16.msra.mxu0 0
  %292 = vmatprep.subr.bf16.mxu0 0
  %293 = vmatpush1.bf16.msra.mxu0 0
  %294 = vmatprep.subr.bf16.mxu0 0
  %295 = vmatpush1.bf16.msra.mxu0 0
  %296 = vmatprep.subr.bf16.mxu0 0
  %297 = vmatpush1.bf16.msra.mxu0 0
  %298 = vmatprep.subr.bf16.mxu0 0
  %299 = vmatpush1.bf16.msra.mxu0 0
  %300 = vmatprep.subr.bf16.mxu0 0
  %301 = vmatpush1.bf16.msra.mxu0 0
  %302 = vmatprep.subr.bf16.mxu0 0
  %303 = vmatpush1.bf16.msra.mxu0 0
  %304 = vmatprep.subr.bf16.mxu0 0
  %305 = vmatpush1.bf16.msra.mxu0 0
  %306 = vmatprep.subr.bf16.mxu0 0
  %307 = vmatpush1.bf16.msra.mxu0 0
  %308 = vmatprep.subr.bf16.mxu0 0
  %309 = vmatpush1.bf16.msra.mxu0 0
  %310 = vmatprep.subr.bf16.mxu0 0
  %311 = vmatpush1.bf16.msra.mxu0 0
  %312 = vmatprep.subr.bf16.mxu0 0
  %313 = vmatpush1.bf16.msra.mxu0 0
  %314 = vmatprep.subr.bf16.mxu0 0
  %315 = vmatpush1.bf16.msra.mxu0 0
  %316 = vmatprep.subr.bf16.mxu0 0
  %317 = vmatpush1.bf16.msra.mxu0 0
  %318 = vmatprep.mubr.bf16.mxu0 0
  %319 = vmatmul.mubr.bf16.gmra.mrb[0].mxu0 %v210
  %v320 = vpop.f32.mrb[0].mxu0
  %v321 = vadd.f32 %v256, %v320
  %v322 = vpop.f32.mrb[0].mxu0
  %v323 = vpop.f32.mrb[0].mxu0
  %v324 = vadd.f32 %v259, %v323
  %v325 = vpop.f32.mrb[0].mxu0
  %326 = vmatprep.mubr.bf16.mxu0 0
  %327 = vmatmul.mubr.bf16.gmra.mrb[0].mxu0 %v213
  %v328 = vpop.f32.mrb[0].mxu0
  %v329 = vadd.f32 %v264, %v328
  %v330 = vpop.f32.mrb[0].mxu0
  %v331 = vpop.f32.mrb[0].mxu0
  %v332 = vadd.f32 %v267, %v331
  %v333 = vpop.f32.mrb[0].mxu0
  %334 = vmatprep.mubr.bf16.mxu0 0
  %335 = vmatmul.mubr.bf16.gmra.mrb[0].mxu0 %v216
  %v336 = vpop.f32.mrb[0].mxu0
  %v337 = vadd.f32 %v272, %v336
  %v338 = vpop.f32.mrb[0].mxu0
  %v339 = vpop.f32.mrb[0].mxu0
  %v340 = vadd.f32 %v275, %v339
  %v341 = vpop.f32.mrb[0].mxu0
  %342 = vmatprep.mubr.bf16.mxu0 0
  %343 = vmatmul.mubr.bf16.gmra.mrb[0].mxu0 %v219
  %v344 = vpop.f32.mrb[0].mxu0
  %v345 = vadd.f32 %v280, %v344
  %v346 = vpop.f32.mrb[0].mxu0
  %v347 = vpop.f32.mrb[0].mxu0
  %v348 = vadd.f32 %v283, %v347
  %v349 = vpop.f32.mrb[0].mxu0
  %350 = vdwg.mxu0
  %v351 = vmax.f32 %v321, 0.0
  %v352 = vmax.f32 %v324, 0.0
  %v353 = vmax.f32 %v329, 0.0
  %v354 = vmax.f32 %v332, 0.0
  %v355 = vmax.f32 %v337, 0.0
  %v356 = vmax.f32 %v340, 0.0
  %v357 = vmax.f32 %v345, 0.0
  %v358 = vmax.f32 %v348, 0.0
  %v359 = vpack.c.bf16 %v352, %v351
  %v360 = vpack.c.bf16 %v354, %v353
  %v361 = vpack.c.bf16 %v356, %v355
  %v362 = vpack.c.bf16 %v358, %v357
  %v363 = vld [vmem:[%s3] sm:$0xf]
  %v364 = vld [vmem:[%s3 + $0x4] sm:$0xf]
  %v365 = vld [vmem:[%s3 + $0x8] sm:$0xf]
  %v366 = vld [vmem:[%s3 + $0xc] sm:$0xf]
  %v367 = vld [vmem:[%s3 + $0x10] sm:$0xf]
  %v368 = vld [vmem:[%s3 + $0x14] sm:$0xf]
  %v369 = vld [vmem:[%s3 + $0x18] sm:$0xf]
  %v370 = vld [vmem:[%s3 + $0x1c] sm:$0xf]
  %v371 = vld [vmem:[%s4] sm:$0x1]
  %v373 = vlaneseq
  %v374 = vshrl.u32 %v373, 7
  %v375 = vsub.s32 0, %v374
  %v376 = vrot.slane %v371, %v375
  %v386 = vunpack.c.l.b16 %v363
  %v387 = vunpack.c.l.b16 %v364
  %v388 = vunpack.c.l.b16 %v365
  %v389 = vunpack.c.l.b16 %v366
  %v390 = vunpack.c.l.b16 %v367
  %v391 = vunpack.c.l.b16 %v368
  %v392 = vunpack.c.l.b16 %v369
  %v393 = vunpack.c.l.b16 %v370
  %v394 = vpack.c.b16 %v387, %v386
  %v395 = vpack.c.b16 %v389, %v388
  %v396 = vpack.c.b16 %v391, %v390
  %v397 = vpack.c.b16 %v393, %v392
  %vm402 = vcmask 523264
  %v404 = vsel %vm402, %v359, 0
  %v407 = vsel %vm402, %v360, 0
  %v410 = vsel %vm402, %v361, 0
  %v413 = vsel %vm402, %v362, 0
  %415 = vmatprep.subr.bf16.mxu0 0
  %416 = vmatpush1.bf16.msra.mxu0 %v394
  %417 = vmatprep.subr.bf16.mxu0 0
  %418 = vmatpush1.bf16.msra.mxu0 %v395
  %419 = vmatprep.subr.bf16.mxu0 0
  %420 = vmatpush1.bf16.msra.mxu0 %v396
  %421 = vmatprep.subr.bf16.mxu0 0
  %422 = vmatpush1.bf16.msra.mxu0 %v397
  %423 = vmatprep.subr.bf16.mxu0 0
  %424 = vmatpush1.bf16.msra.mxu0 0
  %425 = vmatprep.subr.bf16.mxu0 0
  %426 = vmatpush1.bf16.msra.mxu0 0
  %427 = vmatprep.subr.bf16.mxu0 0
  %428 = vmatpush1.bf16.msra.mxu0 0
  %429 = vmatprep.subr.bf16.mxu0 0
  %430 = vmatpush1.bf16.msra.mxu0 0
  %431 = vmatprep.subr.bf16.mxu0 0
  %432 = vmatpush1.bf16.msra.mxu0 0
  %433 = vmatprep.subr.bf16.mxu0 0
  %434 = vmatpush1.bf16.msra.mxu0 0
  %435 = vmatprep.subr.bf16.mxu0 0
  %436 = vmatpush1.bf16.msra.mxu0 0
  %437 = vmatprep.subr.bf16.mxu0 0
  %438 = vmatpush1.bf16.msra.mxu0 0
  %439 = vmatprep.subr.bf16.mxu0 0
  %440 = vmatpush1.bf16.msra.mxu0 0
  %441 = vmatprep.subr.bf16.mxu0 0
  %442 = vmatpush1.bf16.msra.mxu0 0
  %443 = vmatprep.subr.bf16.mxu0 0
  %444 = vmatpush1.bf16.msra.mxu0 0
  %445 = vmatprep.subr.bf16.mxu0 0
  %446 = vmatpush1.bf16.msra.mxu0 0
  %447 = vmatprep.mubr.bf16.mxu0 0
  %448 = vmatmul.mubr.bf16.gmra.mrb[0].mxu0 %v404
  %v449 = vpop.f32.mrb[0].mxu0
  %v450 = vadd.f32 %v376, %v449
  %v451 = vpop.f32.mrb[0].mxu0
  %v452 = vpop.f32.mrb[0].mxu0
  %v453 = vadd.f32 %v376, %v452
  %v454 = vpop.f32.mrb[0].mxu0
  %455 = vmatprep.mubr.bf16.mxu0 0
  %456 = vmatmul.mubr.bf16.gmra.mrb[0].mxu0 %v407
  %v457 = vpop.f32.mrb[0].mxu0
  %v458 = vadd.f32 %v376, %v457
  %v459 = vpop.f32.mrb[0].mxu0
  %v460 = vpop.f32.mrb[0].mxu0
  %v461 = vadd.f32 %v376, %v460
  %v462 = vpop.f32.mrb[0].mxu0
  %463 = vmatprep.mubr.bf16.mxu0 0
  %464 = vmatmul.mubr.bf16.gmra.mrb[0].mxu0 %v410
  %v465 = vpop.f32.mrb[0].mxu0
  %v466 = vadd.f32 %v376, %v465
  %v467 = vpop.f32.mrb[0].mxu0
  %v468 = vpop.f32.mrb[0].mxu0
  %v469 = vadd.f32 %v376, %v468
  %v470 = vpop.f32.mrb[0].mxu0
  %471 = vmatprep.mubr.bf16.mxu0 0
  %472 = vmatmul.mubr.bf16.gmra.mrb[0].mxu0 %v413
  %v473 = vpop.f32.mrb[0].mxu0
  %v474 = vadd.f32 %v376, %v473
  %v475 = vpop.f32.mrb[0].mxu0
  %v476 = vpop.f32.mrb[0].mxu0
  %v477 = vadd.f32 %v376, %v476
  %v478 = vpop.f32.mrb[0].mxu0
  %479 = vdwg.mxu0
  %vm480 = vcmask 31744
  %481 = vst.msk [vmem:[%s5] sm:$0xff] %vm480, %v450
  %482 = vst.msk [vmem:[%s5 + $0x8] sm:$0xff] %vm480, %v453
  %483 = vst.msk [vmem:[%s5 + $0x10] sm:$0xff] %vm480, %v458
  %484 = vst.msk [vmem:[%s5 + $0x18] sm:$0xff] %vm480, %v461
  %485 = vst.msk [vmem:[%s5 + $0x20] sm:$0xff] %vm480, %v466
  %486 = vst.msk [vmem:[%s5 + $0x28] sm:$0xff] %vm480, %v469
  %487 = vst.msk [vmem:[%s5 + $0x30] sm:$0xff] %vm480, %v474
  %488 = vst.msk [vmem:[%s5 + $0x38] sm:$0xff] %vm480, %v477
  // Predicated region
  $region22: #{forward.5} parent=0 // pred_check
    _
  $region23: #{forward.5} parent=0 // pred_check_branch
    %490 = sbr.rel (0) target = $region25
  $region24: #{forward.5} parent=0 // pred_region
    _
  $region25: #{forward.5} parent=0 // pred_fallthru
    _
  // Predicated region
  $region26: #{forward.5} parent=0 // pred_check
    _
  $region27: #{forward.5} parent=0 // pred_check_branch
    %492 = sbr.rel (0) target = $region29
  $region28: #{forward.5} parent=0 // pred_region
    _
  $region29: #{forward.5} parent=0 // pred_fallthru
    _

</llo_original>
